<compile_context>
chip_gen: v7x
topology: tpu7x:2x2x1
jax: 0.10.0
libtpu: 0.0.40
codegen_flags: <defaults>
</compile_context>

<pallas_src>
import functools

import jax
import jax.numpy as jnp
from jax import lax
from jax.experimental import pallas as pl
from jax.experimental.pallas import tpu as pltpu

INTRINSIC = (250.0, 250.0, 112.0, 112.0)   # fx, fy, cx, cy
IMG_SIZE = (224.0, 224.0)                  # w0, h0


def _graph_project_kernel(verts_ref, *refs, levels, fx, fy, cx, cy, h0, w0):
    feat_refs = refs[:-1]
    out_ref = refs[-1]

    pts = verts_ref[0]                      # [TN, 3] f32
    out_ref[0, :, 0:3] = pts                # vertex pass-through

    X = pts[:, 0:1]
    Y = pts[:, 1:2]
    Z = pts[:, 2:3]
    # Same expressions as the PyTorch module (shared across all 4 levels).
    h_img = fy * (Y / Z) + cy               # drives the H (row) index
    w_img = fx * (X / (-Z)) + cx            # drives the W (col) index

    off = 3
    for feat_ref, (C, H, W) in zip(feat_refs, levels):
        # Scale factors are exact powers of two (224/56, 224/28, ...), so the
        # reciprocal multiply is bit-identical to the reference's divide.
        x = jnp.clip(h_img * (float(H) / h0), 0.0, float(H) - 1.0)   # row coord
        y = jnp.clip(w_img * (float(W) / w0), 0.0, float(W) - 1.0)   # col coord

        x1 = jnp.floor(x); x2 = jnp.ceil(x)
        y1 = jnp.floor(y); y2 = jnp.ceil(y)
        wx1 = x2 - x; wx2 = x - x1          # weights along H
        wy1 = y2 - y; wy2 = y - y1          # weights along W
        x1i = x1.astype(jnp.int32); x2i = x2.astype(jnp.int32)
        y1i = y1.astype(jnp.int32); y2i = y2.astype(jnp.int32)

        # ---- W direction: tiny weighted one-hot [TN, W], contracted on MXU ---
        wcol = lax.broadcasted_iota(jnp.int32, (1, W), 1)
        By = (jnp.where(wcol == y1i, wy1, 0.0)
              + jnp.where(wcol == y2i, wy2, 0.0))                    # [TN, W]

        F = feat_ref[0]                                              # [C*H, W]
        # Contract the shared last axis (W) of both operands -> [TN, C*H].
        T = lax.dot_general(By, F, (((1,), (1,)), ((), ())),
                            preferred_element_type=jnp.float32)

        # ---- H direction: weights broadcast along the C*H lane axis ----------
        CH = C * H
        jlane = lax.broadcasted_iota(jnp.int32, (1, CH), 1).astype(jnp.float32)
        # h-index of lane j = c*H + h (float math is exact for these ranges).
        hidx = (jlane - jnp.floor(jlane / float(H)) * float(H)).astype(jnp.int32)
        Axt = (jnp.where(hidx == x1i, wx1, 0.0)
               + jnp.where(hidx == x2i, wx2, 0.0))                   # [TN, C*H]

        Xw = T * Axt                                                 # [TN, C*H]

        # Segmented sum over each channel's H lanes as a constant 0/1 matmul
        # (block-diagonal matrix of ones; MXU slot, no lane-splitting reshape).
        jrow = lax.broadcasted_iota(jnp.int32, (CH, C), 0)
        ccol = lax.broadcasted_iota(jnp.int32, (CH, C), 1)
        lower = ccol * H
        Msum = ((jrow >= lower) & (jrow < lower + H)).astype(jnp.float32)

        out_ref[0, :, off:off + C] = jnp.dot(
            Xw, Msum, preferred_element_type=jnp.float32)            # [TN, C]
        off += C


def _round_up(a, m):
    return -(-a // m) * m


def graph_project(vertices, img_feats, proj_mat=None, *, tile_n=128):
    """vertices: [B, N, 3]; img_feats: list of NCHW arrays [B, C_l, H_l, W_l]."""
    del proj_mat  # forward() ignores it, exactly as in the PyTorch module
    fx, fy, cx, cy = INTRINSIC
    w0, h0 = IMG_SIZE

    B, N, _ = vertices.shape
    vertices = vertices.astype(jnp.float32)

    # Tile the vertex axis; pad N up to a multiple of the tile (pad rows use
    # Z=1 so there is no divide-by-zero; they are sliced off at the end).
    TN = min(tile_n, _round_up(N, 8))
    Npad = _round_up(N, TN)
    if Npad != N:
        pad = jnp.zeros((B, Npad - N, 3), jnp.float32).at[:, :, 2].set(1.0)
        verts_p = jnp.concatenate([vertices, pad], axis=1)
    else:
        verts_p = vertices

    levels = []
    feat_flat = []
    in_specs = [pl.BlockSpec((1, TN, 3), lambda b, n: (b, n, 0))]
    for feat in img_feats:
        Bf, C, H, W = feat.shape
        assert Bf == B
        levels.append((C, H, W))
        # Free row-major reshape (no transpose, no extra HBM roundtrip).
        feat_flat.append(feat.astype(jnp.float32).reshape(B, C * H, W))
        # Constant block index along the inner (vertex-tile) grid axis -> the
        # feature slab stays resident in VMEM across it (no re-fetch).
        in_specs.append(pl.BlockSpec((1, C * H, W), lambda b, n: (b, 0, 0)))

    Dout = 3 + sum(C for C, _, _ in levels)
    kernel = functools.partial(
        _graph_project_kernel, levels=tuple(levels),
        fx=fx, fy=fy, cx=cx, cy=cy, h0=h0, w0=w0)

    out = pl.pallas_call(
        kernel,
        out_shape=jax.ShapeDtypeStruct((B, Npad, Dout), jnp.float32),
        grid=(B, Npad // TN),
        in_specs=in_specs,
        out_specs=pl.BlockSpec((1, TN, Dout), lambda b, n: (b, n, 0)),
        compiler_params=pltpu.CompilerParams(
            dimension_semantics=("parallel", "parallel")),
    )(verts_p, *feat_flat)

    return out[:, :N, :]


# ---------------- pure-JAX reference (mirrors the PyTorch code) ----------------
def _bilinear_ref(img_feat, x, y):
    x1 = jnp.floor(x); x2 = jnp.ceil(x)
    y1 = jnp.floor(y); y2 = jnp.ceil(y)
    xi1 = x1.astype(jnp.int32); xi2 = x2.astype(jnp.int32)
    yi1 = y1.astype(jnp.int32); yi2 = y2.astype(jnp.int32)
    Q11 = img_feat[:, xi1, yi1].T
    Q12 = img_feat[:, xi1, yi2].T
    Q21 = img_feat[:, xi2, yi1].T
    Q22 = img_feat[:, xi2, yi2].T
    out = (((x2 - x) * (y2 - y))[:, None] * Q11
           + ((x2 - x) * (y - y1))[:, None] * Q12
           + ((x - x1) * (y2 - y))[:, None] * Q21
           + ((x - x1) * (y - y1))[:, None] * Q22)
    return out


def graph_project_ref(vertices, img_feats):
    fx, fy, cx, cy = INTRINSIC
    w0, h0 = IMG_SIZE
    X = vertices[:, :, 0]; Y = vertices[:, :, 1]; Z = vertices[:, :, 2]
    h = fy * (Y / Z) + cy
    w = fx * (X / (-Z)) + cx
    outs = [vertices]
    for feat in img_feats:
        res = float(feat.shape[2])
        x = jnp.clip(h / (h0 / res), 0.0, res - 1.0)
        y = jnp.clip(w / (w0 / res), 0.0, res - 1.0)
        lvl = jnp.stack([_bilinear_ref(feat[i], x[i], y[i])
                         for i in range(vertices.shape[0])], 0)
        outs.append(lvl)
    return jnp.concatenate(outs, axis=2)


if __name__ == "__main__":
    key = jax.random.PRNGKey(0)
    B, N = 2, 8
    channels = [8, 16, 32, 32]
    resolutions = [56, 28, 14, 7]

    kxy, kz, *kf = jax.random.split(key, 2 + len(channels))
    XY = jax.random.uniform(kxy, (B, N, 2), minval=-1.0, maxval=1.0,
                            dtype=jnp.float32)
    Z = jax.random.uniform(kz, (B, N, 1), minval=1.0, maxval=3.0,
                           dtype=jnp.float32)
    vertices = jnp.concatenate([XY, Z], axis=2)

    img_feats = [
        jax.random.normal(kf[i], (B, channels[i], resolutions[i],
                                  resolutions[i]), dtype=jnp.float32)
        for i in range(4)
    ]
    proj_mat = jnp.eye(4, dtype=jnp.float32)  # unused, mirrors forward() args

    out = graph_project(vertices, img_feats, proj_mat)
    out = jax.block_until_ready(out)

    ref = graph_project_ref(vertices, img_feats)
    assert out.shape == (B, N, 3 + sum(channels)), out.shape
    assert jnp.allclose(out, ref, atol=1e-4, rtol=1e-4), \
        float(jnp.max(jnp.abs(out - ref)))

    print("KERNEL_OK")
</pallas_src>

<mosaic_0001>
module attributes {stable_mosaic.version = 11 : i64} {
  func.func @_graph_project_kernel(%arg0: i32, %arg1: i32, %arg2: memref<1x8x3xf32, #tpu.memory_space<vmem>>, %arg3: memref<1x448x56xf32, #tpu.memory_space<vmem>>, %arg4: memref<1x448x28xf32, #tpu.memory_space<vmem>>, %arg5: memref<1x448x14xf32, #tpu.memory_space<vmem>>, %arg6: memref<1x224x7xf32, #tpu.memory_space<vmem>>, %arg7: memref<1x8x91xf32, #tpu.memory_space<vmem>>) attributes {dimension_semantics = [#tpu.dimension_semantics<parallel>, #tpu.dimension_semantics<parallel>], iteration_bounds = array<i64: 2, 1>, scalar_prefetch = 0 : i64, scratch_operands = 0 : i64, tpu.core_type = #tpu.core_type<tc>, window_params = [{transform_indices = @transform_0, window_bounds = array<i64: 1, 8, 3>}, {transform_indices = @transform_1, window_bounds = array<i64: 1, 448, 56>}, {transform_indices = @transform_2, window_bounds = array<i64: 1, 448, 28>}, {transform_indices = @transform_3, window_bounds = array<i64: 1, 448, 14>}, {transform_indices = @transform_4, window_bounds = array<i64: 1, 224, 7>}, {transform_indices = @transform_5, window_bounds = array<i64: 1, 8, 91>}]} {
    %c0 = arith.constant 0 : index
    %c0_0 = arith.constant 0 : index
    %c0_1 = arith.constant 0 : index
    %0 = vector.load %arg2[%c0, %c0_0, %c0_1] : memref<1x8x3xf32, #tpu.memory_space<vmem>>, vector<1x8x3xf32>
    %1 = vector.shape_cast %0 : vector<1x8x3xf32> to vector<8x3xf32>
    %c0_2 = arith.constant 0 : index
    %c0_3 = arith.constant 0 : index
    %c0_4 = arith.constant 0 : index
    %2 = vector.load %arg7[%c0_2, %c0_3, %c0_4] : memref<1x8x91xf32, #tpu.memory_space<vmem>>, vector<1x8x3xf32>
    %3 = vector.shape_cast %2 : vector<1x8x3xf32> to vector<8x3xf32>
    %4 = vector.shape_cast %1 : vector<8x3xf32> to vector<1x8x3xf32>
    tpu.vector_store %arg7[%c0_2, %c0_3, %c0_4], %4 {strides = array<i32>} : memref<1x8x91xf32, #tpu.memory_space<vmem>>, vector<1x8x3xf32>,
    %5 = vector.extract_strided_slice %1 {offsets = [0, 0], sizes = [8, 1], strides = [1, 1]} : vector<8x3xf32> to vector<8x1xf32>
    %6 = vector.extract_strided_slice %1 {offsets = [0, 1], sizes = [8, 1], strides = [1, 1]} : vector<8x3xf32> to vector<8x1xf32>
    %7 = vector.extract_strided_slice %1 {offsets = [0, 2], sizes = [8, 1], strides = [1, 1]} : vector<8x3xf32> to vector<8x1xf32>
    %8 = arith.divf %6, %7 : vector<8x1xf32>
    %cst = arith.constant 2.500000e+02 : f32
    %9 = vector.broadcast %cst : f32 to vector<8x1xf32>
    %10 = arith.mulf %9, %8 : vector<8x1xf32>
    %cst_5 = arith.constant 1.120000e+02 : f32
    %11 = vector.broadcast %cst_5 : f32 to vector<8x1xf32>
    %12 = arith.addf %10, %11 : vector<8x1xf32>
    %cst_6 = arith.constant 0.000000e+00 : f32
    %13 = vector.broadcast %cst_6 : f32 to vector<8x1xf32>
    %14 = arith.subf %13, %7 : vector<8x1xf32>
    %15 = arith.divf %5, %14 : vector<8x1xf32>
    %cst_7 = arith.constant 2.500000e+02 : f32
    %16 = vector.broadcast %cst_7 : f32 to vector<8x1xf32>
    %17 = arith.mulf %16, %15 : vector<8x1xf32>
    %cst_8 = arith.constant 1.120000e+02 : f32
    %18 = vector.broadcast %cst_8 : f32 to vector<8x1xf32>
    %19 = arith.addf %17, %18 : vector<8x1xf32>
    %cst_9 = arith.constant 2.500000e-01 : f32
    %20 = vector.broadcast %cst_9 : f32 to vector<8x1xf32>
    %21 = arith.mulf %12, %20 : vector<8x1xf32>
    %cst_10 = arith.constant 0.000000e+00 : f32
    %cst_11 = arith.constant 5.500000e+01 : f32
    %22 = vector.broadcast %cst_10 : f32 to vector<8x1xf32>
    %23 = arith.maximumf %22, %21 : vector<8x1xf32>
    %24 = vector.broadcast %cst_11 : f32 to vector<8x1xf32>
    %25 = arith.minimumf %24, %23 : vector<8x1xf32>
    %cst_12 = arith.constant 2.500000e-01 : f32
    %26 = vector.broadcast %cst_12 : f32 to vector<8x1xf32>
    %27 = arith.mulf %19, %26 : vector<8x1xf32>
    %cst_13 = arith.constant 0.000000e+00 : f32
    %cst_14 = arith.constant 5.500000e+01 : f32
    %28 = vector.broadcast %cst_13 : f32 to vector<8x1xf32>
    %29 = arith.maximumf %28, %27 : vector<8x1xf32>
    %30 = vector.broadcast %cst_14 : f32 to vector<8x1xf32>
    %31 = arith.minimumf %30, %29 : vector<8x1xf32>
    %32 = math.floor %25 : vector<8x1xf32>
    %33 = math.ceil %25 : vector<8x1xf32>
    %34 = math.floor %31 : vector<8x1xf32>
    %35 = math.ceil %31 : vector<8x1xf32>
    %36 = arith.subf %33, %25 : vector<8x1xf32>
    %37 = arith.subf %25, %32 : vector<8x1xf32>
    %38 = arith.subf %35, %31 : vector<8x1xf32>
    %39 = arith.subf %31, %34 : vector<8x1xf32>
    %40 = arith.fptosi %32 : vector<8x1xf32> to vector<8x1xi32>
    %41 = arith.fptosi %33 : vector<8x1xf32> to vector<8x1xi32>
    %42 = arith.fptosi %34 : vector<8x1xf32> to vector<8x1xi32>
    %43 = arith.fptosi %35 : vector<8x1xf32> to vector<8x1xi32>
    %44 = tpu.iota {dimensions = array<i32: 1>} : vector<1x56xi32>
    %45 = vector.broadcast %44 : vector<1x56xi32> to vector<8x56xi32>
    %46 = vector.broadcast %42 : vector<8x1xi32> to vector<8x56xi32>
    %47 = arith.cmpi eq, %45, %46 : vector<8x56xi32>
    %cst_15 = arith.constant 0.000000e+00 : f32
    %48 = vector.shape_cast %38 : vector<8x1xf32> to vector<8x1xf32>
    %49 = vector.broadcast %48 : vector<8x1xf32> to vector<8x56xf32>
    %50 = vector.broadcast %cst_15 : f32 to vector<8x56xf32>
    %51 = arith.select %47, %49, %50 : vector<8x56xi1>, vector<8x56xf32>
    %52 = vector.broadcast %44 : vector<1x56xi32> to vector<8x56xi32>
    %53 = vector.broadcast %43 : vector<8x1xi32> to vector<8x56xi32>
    %54 = arith.cmpi eq, %52, %53 : vector<8x56xi32>
    %cst_16 = arith.constant 0.000000e+00 : f32
    %55 = vector.shape_cast %39 : vector<8x1xf32> to vector<8x1xf32>
    %56 = vector.broadcast %55 : vector<8x1xf32> to vector<8x56xf32>
    %57 = vector.broadcast %cst_16 : f32 to vector<8x56xf32>
    %58 = arith.select %54, %56, %57 : vector<8x56xi1>, vector<8x56xf32>
    %59 = arith.addf %51, %58 : vector<8x56xf32>
    %c0_17 = arith.constant 0 : index
    %c0_18 = arith.constant 0 : index
    %c0_19 = arith.constant 0 : index
    %60 = vector.load %arg3[%c0_17, %c0_18, %c0_19] : memref<1x448x56xf32, #tpu.memory_space<vmem>>, vector<1x448x56xf32>
    %61 = vector.shape_cast %60 : vector<1x448x56xf32> to vector<448x56xf32>
    %cst_20 = arith.constant dense<0.000000e+00> : vector<8x448xf32>
    %62 = tpu.matmul %59, %61, %cst_20 {dimension_numbers = #tpu.dot_dimension_numbers<[1], [1], [0], [0], [0, 0, 1, 0], [], []>} : vector<8x56xf32>, vector<448x56xf32>, vector<8x448xf32> -> vector<8x448xf32>
    %63 = tpu.iota {dimensions = array<i32: 1>} : vector<1x448xi32>
    %64 = arith.sitofp %63 : vector<1x448xi32> to vector<1x448xf32>
    %cst_21 = arith.constant 5.600000e+01 : f32
    %65 = vector.broadcast %cst_21 : f32 to vector<1x448xf32>
    %66 = arith.divf %64, %65 : vector<1x448xf32>
    %67 = math.floor %66 : vector<1x448xf32>
    %cst_22 = arith.constant 5.600000e+01 : f32
    %68 = vector.broadcast %cst_22 : f32 to vector<1x448xf32>
    %69 = arith.mulf %67, %68 : vector<1x448xf32>
    %70 = arith.subf %64, %69 : vector<1x448xf32>
    %71 = arith.fptosi %70 : vector<1x448xf32> to vector<1x448xi32>
    %72 = vector.broadcast %71 : vector<1x448xi32> to vector<8x448xi32>
    %73 = vector.broadcast %40 : vector<8x1xi32> to vector<8x448xi32>
    %74 = arith.cmpi eq, %72, %73 : vector<8x448xi32>
    %cst_23 = arith.constant 0.000000e+00 : f32
    %75 = vector.shape_cast %36 : vector<8x1xf32> to vector<8x1xf32>
    %76 = vector.broadcast %75 : vector<8x1xf32> to vector<8x448xf32>
    %77 = vector.broadcast %cst_23 : f32 to vector<8x448xf32>
    %78 = arith.select %74, %76, %77 : vector<8x448xi1>, vector<8x448xf32>
    %79 = vector.broadcast %71 : vector<1x448xi32> to vector<8x448xi32>
    %80 = vector.broadcast %41 : vector<8x1xi32> to vector<8x448xi32>
    %81 = arith.cmpi eq, %79, %80 : vector<8x448xi32>
    %cst_24 = arith.constant 0.000000e+00 : f32
    %82 = vector.shape_cast %37 : vector<8x1xf32> to vector<8x1xf32>
    %83 = vector.broadcast %82 : vector<8x1xf32> to vector<8x448xf32>
    %84 = vector.broadcast %cst_24 : f32 to vector<8x448xf32>
    %85 = arith.select %81, %83, %84 : vector<8x448xi1>, vector<8x448xf32>
    %86 = arith.addf %78, %85 : vector<8x448xf32>
    %87 = arith.mulf %62, %86 : vector<8x448xf32>
    %88 = tpu.iota {dimensions = array<i32: 0>} : vector<448x8xi32>
    %89 = tpu.iota {dimensions = array<i32: 1>} : vector<448x8xi32>
    %c56_i32 = arith.constant 56 : i32
    %90 = vector.broadcast %c56_i32 : i32 to vector<448x8xi32>
    %91 = arith.muli %89, %90 : vector<448x8xi32>
    %92 = arith.cmpi sge, %88, %91 : vector<448x8xi32>
    %c56_i32_25 = arith.constant 56 : i32
    %93 = vector.broadcast %c56_i32_25 : i32 to vector<448x8xi32>
    %94 = arith.addi %91, %93 : vector<448x8xi32>
    %95 = arith.cmpi slt, %88, %94 : vector<448x8xi32>
    %96 = arith.andi %92, %95 : vector<448x8xi1>
    %97 = arith.extui %96 : vector<448x8xi1> to vector<448x8xi32>
    %98 = arith.sitofp %97 : vector<448x8xi32> to vector<448x8xf32>
    %cst_26 = arith.constant dense<0.000000e+00> : vector<8x8xf32>
    %99 = tpu.matmul %87, %98, %cst_26 {dimension_numbers = #tpu.dot_dimension_numbers<[1], [0], [0], [1], [0, 0, 1, 1], [], []>} : vector<8x448xf32>, vector<448x8xf32>, vector<8x8xf32> -> vector<8x8xf32>
    %c0_27 = arith.constant 0 : index
    %c0_28 = arith.constant 0 : index
    %c3 = arith.constant 3 : index
    %100 = vector.load %arg7[%c0_27, %c0_28, %c3] : memref<1x8x91xf32, #tpu.memory_space<vmem>>, vector<1x8x8xf32>
    %101 = vector.shape_cast %100 : vector<1x8x8xf32> to vector<8x8xf32>
    %102 = vector.shape_cast %99 : vector<8x8xf32> to vector<1x8x8xf32>
    tpu.vector_store %arg7[%c0_27, %c0_28, %c3], %102 {strides = array<i32>} : memref<1x8x91xf32, #tpu.memory_space<vmem>>, vector<1x8x8xf32>,
    %cst_29 = arith.constant 1.250000e-01 : f32
    %103 = vector.broadcast %cst_29 : f32 to vector<8x1xf32>
    %104 = arith.mulf %12, %103 : vector<8x1xf32>
    %cst_30 = arith.constant 0.000000e+00 : f32
    %cst_31 = arith.constant 2.700000e+01 : f32
    %105 = vector.broadcast %cst_30 : f32 to vector<8x1xf32>
    %106 = arith.maximumf %105, %104 : vector<8x1xf32>
    %107 = vector.broadcast %cst_31 : f32 to vector<8x1xf32>
    %108 = arith.minimumf %107, %106 : vector<8x1xf32>
    %cst_32 = arith.constant 1.250000e-01 : f32
    %109 = vector.broadcast %cst_32 : f32 to vector<8x1xf32>
    %110 = arith.mulf %19, %109 : vector<8x1xf32>
    %cst_33 = arith.constant 0.000000e+00 : f32
    %cst_34 = arith.constant 2.700000e+01 : f32
    %111 = vector.broadcast %cst_33 : f32 to vector<8x1xf32>
    %112 = arith.maximumf %111, %110 : vector<8x1xf32>
    %113 = vector.broadcast %cst_34 : f32 to vector<8x1xf32>
    %114 = arith.minimumf %113, %112 : vector<8x1xf32>
    %115 = math.floor %108 : vector<8x1xf32>
    %116 = math.ceil %108 : vector<8x1xf32>
    %117 = math.floor %114 : vector<8x1xf32>
    %118 = math.ceil %114 : vector<8x1xf32>
    %119 = arith.subf %116, %108 : vector<8x1xf32>
    %120 = arith.subf %108, %115 : vector<8x1xf32>
    %121 = arith.subf %118, %114 : vector<8x1xf32>
    %122 = arith.subf %114, %117 : vector<8x1xf32>
    %123 = arith.fptosi %115 : vector<8x1xf32> to vector<8x1xi32>
    %124 = arith.fptosi %116 : vector<8x1xf32> to vector<8x1xi32>
    %125 = arith.fptosi %117 : vector<8x1xf32> to vector<8x1xi32>
    %126 = arith.fptosi %118 : vector<8x1xf32> to vector<8x1xi32>
    %127 = tpu.iota {dimensions = array<i32: 1>} : vector<1x28xi32>
    %128 = vector.broadcast %127 : vector<1x28xi32> to vector<8x28xi32>
    %129 = vector.broadcast %125 : vector<8x1xi32> to vector<8x28xi32>
    %130 = arith.cmpi eq, %128, %129 : vector<8x28xi32>
    %cst_35 = arith.constant 0.000000e+00 : f32
    %131 = vector.shape_cast %121 : vector<8x1xf32> to vector<8x1xf32>
    %132 = vector.broadcast %131 : vector<8x1xf32> to vector<8x28xf32>
    %133 = vector.broadcast %cst_35 : f32 to vector<8x28xf32>
    %134 = arith.select %130, %132, %133 : vector<8x28xi1>, vector<8x28xf32>
    %135 = vector.broadcast %127 : vector<1x28xi32> to vector<8x28xi32>
    %136 = vector.broadcast %126 : vector<8x1xi32> to vector<8x28xi32>
    %137 = arith.cmpi eq, %135, %136 : vector<8x28xi32>
    %cst_36 = arith.constant 0.000000e+00 : f32
    %138 = vector.shape_cast %122 : vector<8x1xf32> to vector<8x1xf32>
    %139 = vector.broadcast %138 : vector<8x1xf32> to vector<8x28xf32>
    %140 = vector.broadcast %cst_36 : f32 to vector<8x28xf32>
    %141 = arith.select %137, %139, %140 : vector<8x28xi1>, vector<8x28xf32>
    %142 = arith.addf %134, %141 : vector<8x28xf32>
    %c0_37 = arith.constant 0 : index
    %c0_38 = arith.constant 0 : index
    %c0_39 = arith.constant 0 : index
    %143 = vector.load %arg4[%c0_37, %c0_38, %c0_39] : memref<1x448x28xf32, #tpu.memory_space<vmem>>, vector<1x448x28xf32>
    %144 = vector.shape_cast %143 : vector<1x448x28xf32> to vector<448x28xf32>
    %cst_40 = arith.constant dense<0.000000e+00> : vector<8x448xf32>
    %145 = tpu.matmul %142, %144, %cst_40 {dimension_numbers = #tpu.dot_dimension_numbers<[1], [1], [0], [0], [0, 0, 1, 0], [], []>} : vector<8x28xf32>, vector<448x28xf32>, vector<8x448xf32> -> vector<8x448xf32>
    %146 = tpu.iota {dimensions = array<i32: 1>} : vector<1x448xi32>
    %147 = arith.sitofp %146 : vector<1x448xi32> to vector<1x448xf32>
    %cst_41 = arith.constant 2.800000e+01 : f32
    %148 = vector.broadcast %cst_41 : f32 to vector<1x448xf32>
    %149 = arith.divf %147, %148 : vector<1x448xf32>
    %150 = math.floor %149 : vector<1x448xf32>
    %cst_42 = arith.constant 2.800000e+01 : f32
    %151 = vector.broadcast %cst_42 : f32 to vector<1x448xf32>
    %152 = arith.mulf %150, %151 : vector<1x448xf32>
    %153 = arith.subf %147, %152 : vector<1x448xf32>
    %154 = arith.fptosi %153 : vector<1x448xf32> to vector<1x448xi32>
    %155 = vector.broadcast %154 : vector<1x448xi32> to vector<8x448xi32>
    %156 = vector.broadcast %123 : vector<8x1xi32> to vector<8x448xi32>
    %157 = arith.cmpi eq, %155, %156 : vector<8x448xi32>
    %cst_43 = arith.constant 0.000000e+00 : f32
    %158 = vector.shape_cast %119 : vector<8x1xf32> to vector<8x1xf32>
    %159 = vector.broadcast %158 : vector<8x1xf32> to vector<8x448xf32>
    %160 = vector.broadcast %cst_43 : f32 to vector<8x448xf32>
    %161 = arith.select %157, %159, %160 : vector<8x448xi1>, vector<8x448xf32>
    %162 = vector.broadcast %154 : vector<1x448xi32> to vector<8x448xi32>
    %163 = vector.broadcast %124 : vector<8x1xi32> to vector<8x448xi32>
    %164 = arith.cmpi eq, %162, %163 : vector<8x448xi32>
    %cst_44 = arith.constant 0.000000e+00 : f32
    %165 = vector.shape_cast %120 : vector<8x1xf32> to vector<8x1xf32>
    %166 = vector.broadcast %165 : vector<8x1xf32> to vector<8x448xf32>
    %167 = vector.broadcast %cst_44 : f32 to vector<8x448xf32>
    %168 = arith.select %164, %166, %167 : vector<8x448xi1>, vector<8x448xf32>
    %169 = arith.addf %161, %168 : vector<8x448xf32>
    %170 = arith.mulf %145, %169 : vector<8x448xf32>
    %171 = tpu.iota {dimensions = array<i32: 0>} : vector<448x16xi32>
    %172 = tpu.iota {dimensions = array<i32: 1>} : vector<448x16xi32>
    %c28_i32 = arith.constant 28 : i32
    %173 = vector.broadcast %c28_i32 : i32 to vector<448x16xi32>
    %174 = arith.muli %172, %173 : vector<448x16xi32>
    %175 = arith.cmpi sge, %171, %174 : vector<448x16xi32>
    %c28_i32_45 = arith.constant 28 : i32
    %176 = vector.broadcast %c28_i32_45 : i32 to vector<448x16xi32>
    %177 = arith.addi %174, %176 : vector<448x16xi32>
    %178 = arith.cmpi slt, %171, %177 : vector<448x16xi32>
    %179 = arith.andi %175, %178 : vector<448x16xi1>
    %180 = arith.extui %179 : vector<448x16xi1> to vector<448x16xi32>
    %181 = arith.sitofp %180 : vector<448x16xi32> to vector<448x16xf32>
    %cst_46 = arith.constant dense<0.000000e+00> : vector<8x16xf32>
    %182 = tpu.matmul %170, %181, %cst_46 {dimension_numbers = #tpu.dot_dimension_numbers<[1], [0], [0], [1], [0, 0, 1, 1], [], []>} : vector<8x448xf32>, vector<448x16xf32>, vector<8x16xf32> -> vector<8x16xf32>
    %c0_47 = arith.constant 0 : index
    %c0_48 = arith.constant 0 : index
    %c11 = arith.constant 11 : index
    %183 = vector.load %arg7[%c0_47, %c0_48, %c11] : memref<1x8x91xf32, #tpu.memory_space<vmem>>, vector<1x8x16xf32>
    %184 = vector.shape_cast %183 : vector<1x8x16xf32> to vector<8x16xf32>
    %185 = vector.shape_cast %182 : vector<8x16xf32> to vector<1x8x16xf32>
    tpu.vector_store %arg7[%c0_47, %c0_48, %c11], %185 {strides = array<i32>} : memref<1x8x91xf32, #tpu.memory_space<vmem>>, vector<1x8x16xf32>,
    %cst_49 = arith.constant 6.250000e-02 : f32
    %186 = vector.broadcast %cst_49 : f32 to vector<8x1xf32>
    %187 = arith.mulf %12, %186 : vector<8x1xf32>
    %cst_50 = arith.constant 0.000000e+00 : f32
    %cst_51 = arith.constant 1.300000e+01 : f32
    %188 = vector.broadcast %cst_50 : f32 to vector<8x1xf32>
    %189 = arith.maximumf %188, %187 : vector<8x1xf32>
    %190 = vector.broadcast %cst_51 : f32 to vector<8x1xf32>
    %191 = arith.minimumf %190, %189 : vector<8x1xf32>
    %cst_52 = arith.constant 6.250000e-02 : f32
    %192 = vector.broadcast %cst_52 : f32 to vector<8x1xf32>
    %193 = arith.mulf %19, %192 : vector<8x1xf32>
    %cst_53 = arith.constant 0.000000e+00 : f32
    %cst_54 = arith.constant 1.300000e+01 : f32
    %194 = vector.broadcast %cst_53 : f32 to vector<8x1xf32>
    %195 = arith.maximumf %194, %193 : vector<8x1xf32>
    %196 = vector.broadcast %cst_54 : f32 to vector<8x1xf32>
    %197 = arith.minimumf %196, %195 : vector<8x1xf32>
    %198 = math.floor %191 : vector<8x1xf32>
    %199 = math.ceil %191 : vector<8x1xf32>
    %200 = math.floor %197 : vector<8x1xf32>
    %201 = math.ceil %197 : vector<8x1xf32>
    %202 = arith.subf %199, %191 : vector<8x1xf32>
    %203 = arith.subf %191, %198 : vector<8x1xf32>
    %204 = arith.subf %201, %197 : vector<8x1xf32>
    %205 = arith.subf %197, %200 : vector<8x1xf32>
    %206 = arith.fptosi %198 : vector<8x1xf32> to vector<8x1xi32>
    %207 = arith.fptosi %199 : vector<8x1xf32> to vector<8x1xi32>
    %208 = arith.fptosi %200 : vector<8x1xf32> to vector<8x1xi32>
    %209 = arith.fptosi %201 : vector<8x1xf32> to vector<8x1xi32>
    %210 = tpu.iota {dimensions = array<i32: 1>} : vector<1x14xi32>
    %211 = vector.broadcast %210 : vector<1x14xi32> to vector<8x14xi32>
    %212 = vector.broadcast %208 : vector<8x1xi32> to vector<8x14xi32>
    %213 = arith.cmpi eq, %211, %212 : vector<8x14xi32>
    %cst_55 = arith.constant 0.000000e+00 : f32
    %214 = vector.shape_cast %204 : vector<8x1xf32> to vector<8x1xf32>
    %215 = vector.broadcast %214 : vector<8x1xf32> to vector<8x14xf32>
    %216 = vector.broadcast %cst_55 : f32 to vector<8x14xf32>
    %217 = arith.select %213, %215, %216 : vector<8x14xi1>, vector<8x14xf32>
    %218 = vector.broadcast %210 : vector<1x14xi32> to vector<8x14xi32>
    %219 = vector.broadcast %209 : vector<8x1xi32> to vector<8x14xi32>
    %220 = arith.cmpi eq, %218, %219 : vector<8x14xi32>
    %cst_56 = arith.constant 0.000000e+00 : f32
    %221 = vector.shape_cast %205 : vector<8x1xf32> to vector<8x1xf32>
    %222 = vector.broadcast %221 : vector<8x1xf32> to vector<8x14xf32>
    %223 = vector.broadcast %cst_56 : f32 to vector<8x14xf32>
    %224 = arith.select %220, %222, %223 : vector<8x14xi1>, vector<8x14xf32>
    %225 = arith.addf %217, %224 : vector<8x14xf32>
    %c0_57 = arith.constant 0 : index
    %c0_58 = arith.constant 0 : index
    %c0_59 = arith.constant 0 : index
    %226 = vector.load %arg5[%c0_57, %c0_58, %c0_59] : memref<1x448x14xf32, #tpu.memory_space<vmem>>, vector<1x448x14xf32>
    %227 = vector.shape_cast %226 : vector<1x448x14xf32> to vector<448x14xf32>
    %cst_60 = arith.constant dense<0.000000e+00> : vector<8x448xf32>
    %228 = tpu.matmul %225, %227, %cst_60 {dimension_numbers = #tpu.dot_dimension_numbers<[1], [1], [0], [0], [0, 0, 1, 0], [], []>} : vector<8x14xf32>, vector<448x14xf32>, vector<8x448xf32> -> vector<8x448xf32>
    %229 = tpu.iota {dimensions = array<i32: 1>} : vector<1x448xi32>
    %230 = arith.sitofp %229 : vector<1x448xi32> to vector<1x448xf32>
    %cst_61 = arith.constant 1.400000e+01 : f32
    %231 = vector.broadcast %cst_61 : f32 to vector<1x448xf32>
    %232 = arith.divf %230, %231 : vector<1x448xf32>
    %233 = math.floor %232 : vector<1x448xf32>
    %cst_62 = arith.constant 1.400000e+01 : f32
    %234 = vector.broadcast %cst_62 : f32 to vector<1x448xf32>
    %235 = arith.mulf %233, %234 : vector<1x448xf32>
    %236 = arith.subf %230, %235 : vector<1x448xf32>
    %237 = arith.fptosi %236 : vector<1x448xf32> to vector<1x448xi32>
    %238 = vector.broadcast %237 : vector<1x448xi32> to vector<8x448xi32>
    %239 = vector.broadcast %206 : vector<8x1xi32> to vector<8x448xi32>
    %240 = arith.cmpi eq, %238, %239 : vector<8x448xi32>
    %cst_63 = arith.constant 0.000000e+00 : f32
    %241 = vector.shape_cast %202 : vector<8x1xf32> to vector<8x1xf32>
    %242 = vector.broadcast %241 : vector<8x1xf32> to vector<8x448xf32>
    %243 = vector.broadcast %cst_63 : f32 to vector<8x448xf32>
    %244 = arith.select %240, %242, %243 : vector<8x448xi1>, vector<8x448xf32>
    %245 = vector.broadcast %237 : vector<1x448xi32> to vector<8x448xi32>
    %246 = vector.broadcast %207 : vector<8x1xi32> to vector<8x448xi32>
    %247 = arith.cmpi eq, %245, %246 : vector<8x448xi32>
    %cst_64 = arith.constant 0.000000e+00 : f32
    %248 = vector.shape_cast %203 : vector<8x1xf32> to vector<8x1xf32>
    %249 = vector.broadcast %248 : vector<8x1xf32> to vector<8x448xf32>
    %250 = vector.broadcast %cst_64 : f32 to vector<8x448xf32>
    %251 = arith.select %247, %249, %250 : vector<8x448xi1>, vector<8x448xf32>
    %252 = arith.addf %244, %251 : vector<8x448xf32>
    %253 = arith.mulf %228, %252 : vector<8x448xf32>
    %254 = tpu.iota {dimensions = array<i32: 0>} : vector<448x32xi32>
    %255 = tpu.iota {dimensions = array<i32: 1>} : vector<448x32xi32>
    %c14_i32 = arith.constant 14 : i32
    %256 = vector.broadcast %c14_i32 : i32 to vector<448x32xi32>
    %257 = arith.muli %255, %256 : vector<448x32xi32>
    %258 = arith.cmpi sge, %254, %257 : vector<448x32xi32>
    %c14_i32_65 = arith.constant 14 : i32
    %259 = vector.broadcast %c14_i32_65 : i32 to vector<448x32xi32>
    %260 = arith.addi %257, %259 : vector<448x32xi32>
    %261 = arith.cmpi slt, %254, %260 : vector<448x32xi32>
    %262 = arith.andi %258, %261 : vector<448x32xi1>
    %263 = arith.extui %262 : vector<448x32xi1> to vector<448x32xi32>
    %264 = arith.sitofp %263 : vector<448x32xi32> to vector<448x32xf32>
    %cst_66 = arith.constant dense<0.000000e+00> : vector<8x32xf32>
    %265 = tpu.matmul %253, %264, %cst_66 {dimension_numbers = #tpu.dot_dimension_numbers<[1], [0], [0], [1], [0, 0, 1, 1], [], []>} : vector<8x448xf32>, vector<448x32xf32>, vector<8x32xf32> -> vector<8x32xf32>
    %c0_67 = arith.constant 0 : index
    %c0_68 = arith.constant 0 : index
    %c27 = arith.constant 27 : index
    %266 = vector.load %arg7[%c0_67, %c0_68, %c27] : memref<1x8x91xf32, #tpu.memory_space<vmem>>, vector<1x8x32xf32>
    %267 = vector.shape_cast %266 : vector<1x8x32xf32> to vector<8x32xf32>
    %268 = vector.shape_cast %265 : vector<8x32xf32> to vector<1x8x32xf32>
    tpu.vector_store %arg7[%c0_67, %c0_68, %c27], %268 {strides = array<i32>} : memref<1x8x91xf32, #tpu.memory_space<vmem>>, vector<1x8x32xf32>,
    %cst_69 = arith.constant 3.125000e-02 : f32
    %269 = vector.broadcast %cst_69 : f32 to vector<8x1xf32>
    %270 = arith.mulf %12, %269 : vector<8x1xf32>
    %cst_70 = arith.constant 0.000000e+00 : f32
    %cst_71 = arith.constant 6.000000e+00 : f32
    %271 = vector.broadcast %cst_70 : f32 to vector<8x1xf32>
    %272 = arith.maximumf %271, %270 : vector<8x1xf32>
    %273 = vector.broadcast %cst_71 : f32 to vector<8x1xf32>
    %274 = arith.minimumf %273, %272 : vector<8x1xf32>
    %cst_72 = arith.constant 3.125000e-02 : f32
    %275 = vector.broadcast %cst_72 : f32 to vector<8x1xf32>
    %276 = arith.mulf %19, %275 : vector<8x1xf32>
    %cst_73 = arith.constant 0.000000e+00 : f32
    %cst_74 = arith.constant 6.000000e+00 : f32
    %277 = vector.broadcast %cst_73 : f32 to vector<8x1xf32>
    %278 = arith.maximumf %277, %276 : vector<8x1xf32>
    %279 = vector.broadcast %cst_74 : f32 to vector<8x1xf32>
    %280 = arith.minimumf %279, %278 : vector<8x1xf32>
    %281 = math.floor %274 : vector<8x1xf32>
    %282 = math.ceil %274 : vector<8x1xf32>
    %283 = math.floor %280 : vector<8x1xf32>
    %284 = math.ceil %280 : vector<8x1xf32>
    %285 = arith.subf %282, %274 : vector<8x1xf32>
    %286 = arith.subf %274, %281 : vector<8x1xf32>
    %287 = arith.subf %284, %280 : vector<8x1xf32>
    %288 = arith.subf %280, %283 : vector<8x1xf32>
    %289 = arith.fptosi %281 : vector<8x1xf32> to vector<8x1xi32>
    %290 = arith.fptosi %282 : vector<8x1xf32> to vector<8x1xi32>
    %291 = arith.fptosi %283 : vector<8x1xf32> to vector<8x1xi32>
    %292 = arith.fptosi %284 : vector<8x1xf32> to vector<8x1xi32>
    %293 = tpu.iota {dimensions = array<i32: 1>} : vector<1x7xi32>
    %294 = vector.broadcast %293 : vector<1x7xi32> to vector<8x7xi32>
    %295 = vector.broadcast %291 : vector<8x1xi32> to vector<8x7xi32>
    %296 = arith.cmpi eq, %294, %295 : vector<8x7xi32>
    %cst_75 = arith.constant 0.000000e+00 : f32
    %297 = vector.shape_cast %287 : vector<8x1xf32> to vector<8x1xf32>
    %298 = vector.broadcast %297 : vector<8x1xf32> to vector<8x7xf32>
    %299 = vector.broadcast %cst_75 : f32 to vector<8x7xf32>
    %300 = arith.select %296, %298, %299 : vector<8x7xi1>, vector<8x7xf32>
    %301 = vector.broadcast %293 : vector<1x7xi32> to vector<8x7xi32>
    %302 = vector.broadcast %292 : vector<8x1xi32> to vector<8x7xi32>
    %303 = arith.cmpi eq, %301, %302 : vector<8x7xi32>
    %cst_76 = arith.constant 0.000000e+00 : f32
    %304 = vector.shape_cast %288 : vector<8x1xf32> to vector<8x1xf32>
    %305 = vector.broadcast %304 : vector<8x1xf32> to vector<8x7xf32>
    %306 = vector.broadcast %cst_76 : f32 to vector<8x7xf32>
    %307 = arith.select %303, %305, %306 : vector<8x7xi1>, vector<8x7xf32>
    %308 = arith.addf %300, %307 : vector<8x7xf32>
    %c0_77 = arith.constant 0 : index
    %c0_78 = arith.constant 0 : index
    %c0_79 = arith.constant 0 : index
    %309 = vector.load %arg6[%c0_77, %c0_78, %c0_79] : memref<1x224x7xf32, #tpu.memory_space<vmem>>, vector<1x224x7xf32>
    %310 = vector.shape_cast %309 : vector<1x224x7xf32> to vector<224x7xf32>
    %cst_80 = arith.constant dense<0.000000e+00> : vector<8x224xf32>
    %311 = tpu.matmul %308, %310, %cst_80 {dimension_numbers = #tpu.dot_dimension_numbers<[1], [1], [0], [0], [0, 0, 1, 0], [], []>} : vector<8x7xf32>, vector<224x7xf32>, vector<8x224xf32> -> vector<8x224xf32>
    %312 = tpu.iota {dimensions = array<i32: 1>} : vector<1x224xi32>
    %313 = arith.sitofp %312 : vector<1x224xi32> to vector<1x224xf32>
    %cst_81 = arith.constant 7.000000e+00 : f32
    %314 = vector.broadcast %cst_81 : f32 to vector<1x224xf32>
    %315 = arith.divf %313, %314 : vector<1x224xf32>
    %316 = math.floor %315 : vector<1x224xf32>
    %cst_82 = arith.constant 7.000000e+00 : f32
    %317 = vector.broadcast %cst_82 : f32 to vector<1x224xf32>
    %318 = arith.mulf %316, %317 : vector<1x224xf32>
    %319 = arith.subf %313, %318 : vector<1x224xf32>
    %320 = arith.fptosi %319 : vector<1x224xf32> to vector<1x224xi32>
    %321 = vector.broadcast %320 : vector<1x224xi32> to vector<8x224xi32>
    %322 = vector.broadcast %289 : vector<8x1xi32> to vector<8x224xi32>
    %323 = arith.cmpi eq, %321, %322 : vector<8x224xi32>
    %cst_83 = arith.constant 0.000000e+00 : f32
    %324 = vector.shape_cast %285 : vector<8x1xf32> to vector<8x1xf32>
    %325 = vector.broadcast %324 : vector<8x1xf32> to vector<8x224xf32>
    %326 = vector.broadcast %cst_83 : f32 to vector<8x224xf32>
    %327 = arith.select %323, %325, %326 : vector<8x224xi1>, vector<8x224xf32>
    %328 = vector.broadcast %320 : vector<1x224xi32> to vector<8x224xi32>
    %329 = vector.broadcast %290 : vector<8x1xi32> to vector<8x224xi32>
    %330 = arith.cmpi eq, %328, %329 : vector<8x224xi32>
    %cst_84 = arith.constant 0.000000e+00 : f32
    %331 = vector.shape_cast %286 : vector<8x1xf32> to vector<8x1xf32>
    %332 = vector.broadcast %331 : vector<8x1xf32> to vector<8x224xf32>
    %333 = vector.broadcast %cst_84 : f32 to vector<8x224xf32>
    %334 = arith.select %330, %332, %333 : vector<8x224xi1>, vector<8x224xf32>
    %335 = arith.addf %327, %334 : vector<8x224xf32>
    %336 = arith.mulf %311, %335 : vector<8x224xf32>
    %337 = tpu.iota {dimensions = array<i32: 0>} : vector<224x32xi32>
    %338 = tpu.iota {dimensions = array<i32: 1>} : vector<224x32xi32>
    %c7_i32 = arith.constant 7 : i32
    %339 = vector.broadcast %c7_i32 : i32 to vector<224x32xi32>
    %340 = arith.muli %338, %339 : vector<224x32xi32>
    %341 = arith.cmpi sge, %337, %340 : vector<224x32xi32>
    %c7_i32_85 = arith.constant 7 : i32
    %342 = vector.broadcast %c7_i32_85 : i32 to vector<224x32xi32>
    %343 = arith.addi %340, %342 : vector<224x32xi32>
    %344 = arith.cmpi slt, %337, %343 : vector<224x32xi32>
    %345 = arith.andi %341, %344 : vector<224x32xi1>
    %346 = arith.extui %345 : vector<224x32xi1> to vector<224x32xi32>
    %347 = arith.sitofp %346 : vector<224x32xi32> to vector<224x32xf32>
    %cst_86 = arith.constant dense<0.000000e+00> : vector<8x32xf32>
    %348 = tpu.matmul %336, %347, %cst_86 {dimension_numbers = #tpu.dot_dimension_numbers<[1], [0], [0], [1], [0, 0, 1, 1], [], []>} : vector<8x224xf32>, vector<224x32xf32>, vector<8x32xf32> -> vector<8x32xf32>
    %c0_87 = arith.constant 0 : index
    %c0_88 = arith.constant 0 : index
    %c59 = arith.constant 59 : index
    %349 = vector.load %arg7[%c0_87, %c0_88, %c59] : memref<1x8x91xf32, #tpu.memory_space<vmem>>, vector<1x8x32xf32>
    %350 = vector.shape_cast %349 : vector<1x8x32xf32> to vector<8x32xf32>
    %351 = vector.shape_cast %348 : vector<8x32xf32> to vector<1x8x32xf32>
    tpu.vector_store %arg7[%c0_87, %c0_88, %c59], %351 {strides = array<i32>} : memref<1x8x91xf32, #tpu.memory_space<vmem>>, vector<1x8x32xf32>,
    return
  }
  func.func @transform_0(%arg0: i32, %arg1: i32) -> (i32, i32, i32) {
    %c0_i32 = arith.constant 0 : i32
    %c0_i32_0 = arith.constant 0 : i32
    return %arg0, %arg1, %c0_i32 : i32, i32, i32
  }
  func.func @transform_1(%arg0: i32, %arg1: i32) -> (i32, i32, i32) {
    %c0_i32 = arith.constant 0 : i32
    %c0_i32_0 = arith.constant 0 : i32
    %c0_i32_1 = arith.constant 0 : i32
    return %arg0, %c0_i32, %c0_i32_0 : i32, i32, i32
  }
  func.func @transform_2(%arg0: i32, %arg1: i32) -> (i32, i32, i32) {
    %c0_i32 = arith.constant 0 : i32
    %c0_i32_0 = arith.constant 0 : i32
    %c0_i32_1 = arith.constant 0 : i32
    return %arg0, %c0_i32, %c0_i32_0 : i32, i32, i32
  }
  func.func @transform_3(%arg0: i32, %arg1: i32) -> (i32, i32, i32) {
    %c0_i32 = arith.constant 0 : i32
    %c0_i32_0 = arith.constant 0 : i32
    %c0_i32_1 = arith.constant 0 : i32
    return %arg0, %c0_i32, %c0_i32_0 : i32, i32, i32
  }
  func.func @transform_4(%arg0: i32, %arg1: i32) -> (i32, i32, i32) {
    %c0_i32 = arith.constant 0 : i32
    %c0_i32_0 = arith.constant 0 : i32
    %c0_i32_1 = arith.constant 0 : i32
    return %arg0, %c0_i32, %c0_i32_0 : i32, i32, i32
  }
  func.func @transform_5(%arg0: i32, %arg1: i32) -> (i32, i32, i32) {
    %c0_i32 = arith.constant 0 : i32
    %c0_i32_0 = arith.constant 0 : i32
    return %arg0, %arg1, %c0_i32 : i32, i32, i32
  }
}

</mosaic_0001>

<llo_original>
// kernel: tpu_custom_call.1
$region0: #{tpu_custom_call.1}
  #allocation0 [shape = 'u32[]', space=smem, size = 0x4, offset = 0x4, fixed_abs, tag = 'smem constant byte address 0x4 - core index']
  #allocation1 [shape = 'u32[144,128]{1,0:T(1,128)}', space=vmem, size = 0x12000, scoped, tag = 'internal scratch']
  %s0 = inlined_call_operand.vmem [shape: f32[2,8,3], index: 0, kind: input, shape index: {}]
  %s1 = inlined_call_operand.vmem [shape: f32[2,448,56], index: 1, kind: input, shape index: {}]
  %s2 = inlined_call_operand.vmem [shape: f32[2,448,28], index: 2, kind: input, shape index: {}]
  %s3 = inlined_call_operand.vmem [shape: f32[2,448,14], index: 3, kind: input, shape index: {}]
  %s4 = inlined_call_operand.vmem [shape: f32[2,224,7], index: 4, kind: input, shape index: {}]
  %s5 = inlined_call_operand.hbm [shape: f32[2,8,91], index: 5, kind: output, shape index: {}]
  %s6 = sld [smem:[#allocation0]]
  $region53: #{tpu_custom_call.1} parent=0
    _
  %s8 = ssub.s32 1, %s6
  %s9 = scalar_select 0, %s8, %s6
  $region1: #{tpu_custom_call.1} parent=0
    #allocation2 [shape = 'u8[8192]{0}', space=vmem, size = 0x2000, scoped, tag = 'output window, operand 0']
    #allocation3 [shape = 's32[2]{0}', space=sflag, size = 0x8, scoped, tag = 'scoped memory for tpu_custom_call.1']
    %10 = vsyncpa [#allocation3], 0
    %s11 = scalar_lea.sflag [#allocation3], 1
    %12 = vsyncpa %s11, 0
    loop: start=0, step=1, limit=4
    $region2: #{tpu_custom_call.1} parent=1 // loop_pre_header
      _
    $region3: #{tpu_custom_call.1} parent=1 // loop_header
      %s14 = sphi 0, %s18
      %p15 = scmp.ge.s32.totalorder %s14, 4
      %s21 = sphi 0, %s33
      %s22 = sphi 0, %s29
      %s23 = sphi 0, %s21
      %s24 = sphi 0, %s22
      %s25 = sphi 0, %s23
      %s26 = sphi 0, %s24
      %s38 = sphi 0, %s40
      %s41 = sphi 0, %s38
      %s42 = sphi 0, %s41
      %s58 = sphi 0, %s42
      %s64 = sphi 0, %s66
      %s67 = sphi 0, %s64
      %s68 = sphi 0, %s67
      %s84 = sphi 0, %s68
      %s90 = sphi 0, %s92
      %s93 = sphi 0, %s90
      %s94 = sphi 0, %s93
      %s110 = sphi 0, %s94
      %s116 = sphi 0, %s118
      %s119 = sphi 0, %s116
      %s120 = sphi 0, %s119
      %s136 = sphi 0, %s120
      %s142 = sphi 0, %s144
      %s145 = sphi 0, %s142
      %s146 = sphi 0, %s145
      %s162 = sphi 0, %s146
      %s170 = sphi 0, %s172
      %s173 = sphi 0, %s170
      %s174 = sphi 0, %s173
      %s190 = sphi 0, %s174
    $region4: #{tpu_custom_call.1} parent=1 // loop_header_branch
      %17 = sbr.rel (%p15) target = $region8
    $region5: #{tpu_custom_call.1} parent=1 // loop_body
      %s19 = ssub.s32 %s14, 1
      %s20 = ssub.s32 %s14, 2
      %s27 = sadd.s32 1, %s22
      %p28 = scmp.ge.s32.totalorder %s27, 1
      %s29 = scalar_select %p28, 0, %s27
      %s30 = sadd.s32 1, %s21
      %s31 = scalar_select %p28, %s30, %s21
      %p32 = scmp.ge.s32.totalorder %s31, 2
      %s33 = scalar_select %p32, 0, %s31
      %s34 = ssub.s32 %s21, %s33
      %s35 = ssub.s32 %s22, %s29
      %s36 = sor.u32 %s34, %s35
      %p37 = scmp.eq.s32.totalorder %s36, 0
      %s39 = sadd.s32 %s38, 1
      %s40 = scalar_select %p37, %s38, %s39
      %p43 = pneg %p37
      %p44 = scmp.eq.s32.totalorder %s14, 1
      %p45 = por %p43, %p44
      %p46 = scmp.ne.s32.totalorder %s38, %s41
      %p47 = scmp.eq.s32.totalorder %s14, 0
      %p48 = por %p46, %p47
      %p49 = scmp.ne.s32.totalorder %s38, %s41
      %p50 = scmp.eq.s32.totalorder %s19, 1
      %p51 = por %p49, %p50
      %p52 = scmp.ne.s32.totalorder %s41, %s42
      %p53 = scmp.eq.s32.totalorder %s19, 0
      %p54 = por %p52, %p53
      %p55 = scmp.ne.s32.totalorder %s41, %s42
      %p56 = scmp.eq.s32.totalorder %s20, 1
      %p57 = por %p55, %p56
      %p59 = scmp.ne.s32.totalorder %s42, %s58
      %p60 = scmp.eq.s32.totalorder %s20, 0
      %p61 = por %p59, %p60
      %s62 = ssub.s32 %s21, %s33
      %p63 = scmp.eq.s32.totalorder %s62, 0
      %s65 = sadd.s32 %s64, 1
      %s66 = scalar_select %p63, %s64, %s65
      %p69 = pneg %p63
      %p70 = scmp.eq.s32.totalorder %s14, 1
      %p71 = por %p69, %p70
      %p72 = scmp.ne.s32.totalorder %s64, %s67
      %p73 = scmp.eq.s32.totalorder %s14, 0
      %p74 = por %p72, %p73
      %p75 = scmp.ne.s32.totalorder %s64, %s67
      %p76 = scmp.eq.s32.totalorder %s19, 1
      %p77 = por %p75, %p76
      %p78 = scmp.ne.s32.totalorder %s67, %s68
      %p79 = scmp.eq.s32.totalorder %s19, 0
      %p80 = por %p78, %p79
      %p81 = scmp.ne.s32.totalorder %s67, %s68
      %p82 = scmp.eq.s32.totalorder %s20, 1
      %p83 = por %p81, %p82
      %p85 = scmp.ne.s32.totalorder %s68, %s84
      %p86 = scmp.eq.s32.totalorder %s20, 0
      %p87 = por %p85, %p86
      %s88 = ssub.s32 %s21, %s33
      %p89 = scmp.eq.s32.totalorder %s88, 0
      %s91 = sadd.s32 %s90, 1
      %s92 = scalar_select %p89, %s90, %s91
      %p95 = pneg %p89
      %p96 = scmp.eq.s32.totalorder %s14, 1
      %p97 = por %p95, %p96
      %p98 = scmp.ne.s32.totalorder %s90, %s93
      %p99 = scmp.eq.s32.totalorder %s14, 0
      %p100 = por %p98, %p99
      %p101 = scmp.ne.s32.totalorder %s90, %s93
      %p102 = scmp.eq.s32.totalorder %s19, 1
      %p103 = por %p101, %p102
      %p104 = scmp.ne.s32.totalorder %s93, %s94
      %p105 = scmp.eq.s32.totalorder %s19, 0
      %p106 = por %p104, %p105
      %p107 = scmp.ne.s32.totalorder %s93, %s94
      %p108 = scmp.eq.s32.totalorder %s20, 1
      %p109 = por %p107, %p108
      %p111 = scmp.ne.s32.totalorder %s94, %s110
      %p112 = scmp.eq.s32.totalorder %s20, 0
      %p113 = por %p111, %p112
      %s114 = ssub.s32 %s21, %s33
      %p115 = scmp.eq.s32.totalorder %s114, 0
      %s117 = sadd.s32 %s116, 1
      %s118 = scalar_select %p115, %s116, %s117
      %p121 = pneg %p115
      %p122 = scmp.eq.s32.totalorder %s14, 1
      %p123 = por %p121, %p122
      %p124 = scmp.ne.s32.totalorder %s116, %s119
      %p125 = scmp.eq.s32.totalorder %s14, 0
      %p126 = por %p124, %p125
      %p127 = scmp.ne.s32.totalorder %s116, %s119
      %p128 = scmp.eq.s32.totalorder %s19, 1
      %p129 = por %p127, %p128
      %p130 = scmp.ne.s32.totalorder %s119, %s120
      %p131 = scmp.eq.s32.totalorder %s19, 0
      %p132 = por %p130, %p131
      %p133 = scmp.ne.s32.totalorder %s119, %s120
      %p134 = scmp.eq.s32.totalorder %s20, 1
      %p135 = por %p133, %p134
      %p137 = scmp.ne.s32.totalorder %s120, %s136
      %p138 = scmp.eq.s32.totalorder %s20, 0
      %p139 = por %p137, %p138
      %s140 = ssub.s32 %s21, %s33
      %p141 = scmp.eq.s32.totalorder %s140, 0
      %s143 = sadd.s32 %s142, 1
      %s144 = scalar_select %p141, %s142, %s143
      %p147 = pneg %p141
      %p148 = scmp.eq.s32.totalorder %s14, 1
      %p149 = por %p147, %p148
      %p150 = scmp.ne.s32.totalorder %s142, %s145
      %p151 = scmp.eq.s32.totalorder %s14, 0
      %p152 = por %p150, %p151
      %p153 = scmp.ne.s32.totalorder %s142, %s145
      %p154 = scmp.eq.s32.totalorder %s19, 1
      %p155 = por %p153, %p154
      %p156 = scmp.ne.s32.totalorder %s145, %s146
      %p157 = scmp.eq.s32.totalorder %s19, 0
      %p158 = por %p156, %p157
      %p159 = scmp.ne.s32.totalorder %s145, %s146
      %p160 = scmp.eq.s32.totalorder %s20, 1
      %p161 = por %p159, %p160
      %p163 = scmp.ne.s32.totalorder %s146, %s162
      %p164 = scmp.eq.s32.totalorder %s20, 0
      %p165 = por %p163, %p164
      %s166 = ssub.s32 %s21, %s33
      %s167 = ssub.s32 %s22, %s29
      %s168 = sor.u32 %s166, %s167
      %p169 = scmp.eq.s32.totalorder %s168, 0
      %s171 = sadd.s32 %s170, 1
      %s172 = scalar_select %p169, %s170, %s171
      %p175 = pneg %p169
      %p176 = scmp.eq.s32.totalorder %s14, 1
      %p177 = por %p175, %p176
      %p178 = scmp.ne.s32.totalorder %s170, %s173
      %p179 = scmp.eq.s32.totalorder %s14, 0
      %p180 = por %p178, %p179
      %p181 = scmp.ne.s32.totalorder %s170, %s173
      %p182 = scmp.eq.s32.totalorder %s19, 1
      %p183 = por %p181, %p182
      %p184 = scmp.ne.s32.totalorder %s173, %s174
      %p185 = scmp.eq.s32.totalorder %s19, 0
      %p186 = por %p184, %p185
      %p187 = scmp.ne.s32.totalorder %s173, %s174
      %p188 = scmp.eq.s32.totalorder %s20, 1
      %p189 = por %p187, %p188
      %p191 = scmp.ne.s32.totalorder %s174, %s190
      %p192 = scmp.eq.s32.totalorder %s20, 0
      %p193 = por %p191, %p192
      %p194 = scmp.le.s32.totalorder 1, %s14
      %p195 = scmp.lt.s32.totalorder %s14, 3
      %p196 = pnand %p194, %p195
      %p197 = pneg %p196
      // Predicated region
      $region9: #{tpu_custom_call.1} parent=5 // pred_check
        _
      $region10: #{tpu_custom_call.1} parent=5 // pred_check_branch
        %199 = sbr.rel (%p196) target = $region12
      $region11: #{tpu_custom_call.1} parent=5 // pred_region
        %s200 = ssub.s32 %s14, 1
      $region12: #{tpu_custom_call.1} parent=5 // pred_fallthru
        _
      %p201 = scmp.lt.s32.totalorder %s14, 2
      // Predicated region
      $region13: #{tpu_custom_call.1} parent=5 // pred_check
        %p202 = pneg %p201
      $region14: #{tpu_custom_call.1} parent=5 // pred_check_branch
        %204 = sbr.rel (%p202) target = $region16
      $region15: #{tpu_custom_call.1} parent=5 // pred_region
        // Predicated region
        $region17: #{tpu_custom_call.1} parent=15 // pred_check
          %p205 = pneg %p48
        $region18: #{tpu_custom_call.1} parent=15 // pred_check_branch
          %207 = sbr.rel (%p205) target = $region20
        $region19: #{tpu_custom_call.1} parent=15 // pred_region
          %p208 = scmp.lt.s32.totalorder %s21, 1
          %s209 = scalar_select %p208, %s21, 1
          %p210 = scmp.lt.s32.totalorder %s22, 0
          %s211 = scalar_select %p210, %s22, 0
          %s212 = sadd.s32 %s211, %s209
          %s213 = smul.addr %s212, 8
          %s214 = scalar_lea.vmem %s0, %s213
        $region20: #{tpu_custom_call.1} parent=15 // pred_fallthru
          _
        // Predicated region
        $region21: #{tpu_custom_call.1} parent=15 // pred_check
          %p215 = pneg %p74
        $region22: #{tpu_custom_call.1} parent=15 // pred_check_branch
          %217 = sbr.rel (%p215) target = $region24
        $region23: #{tpu_custom_call.1} parent=15 // pred_region
          %p218 = scmp.lt.s32.totalorder %s21, 1
          %s219 = scalar_select %p218, %s21, 1
          %s220 = smul.addr %s219, 56
          %s221 = smul.addr %s220, 8
          %s222 = scalar_lea.vmem %s1, %s221
        $region24: #{tpu_custom_call.1} parent=15 // pred_fallthru
          _
        // Predicated region
        $region25: #{tpu_custom_call.1} parent=15 // pred_check
          %p223 = pneg %p100
        $region26: #{tpu_custom_call.1} parent=15 // pred_check_branch
          %225 = sbr.rel (%p223) target = $region28
        $region27: #{tpu_custom_call.1} parent=15 // pred_region
          %p226 = scmp.lt.s32.totalorder %s21, 1
          %s227 = scalar_select %p226, %s21, 1
          %s228 = smul.addr %s227, 56
          %s229 = smul.addr %s228, 8
          %s230 = scalar_lea.vmem %s2, %s229
        $region28: #{tpu_custom_call.1} parent=15 // pred_fallthru
          _
        // Predicated region
        $region29: #{tpu_custom_call.1} parent=15 // pred_check
          %p231 = pneg %p126
        $region30: #{tpu_custom_call.1} parent=15 // pred_check_branch
          %233 = sbr.rel (%p231) target = $region32
        $region31: #{tpu_custom_call.1} parent=15 // pred_region
          %p234 = scmp.lt.s32.totalorder %s21, 1
          %s235 = scalar_select %p234, %s21, 1
          %s236 = smul.addr %s235, 56
          %s237 = smul.addr %s236, 8
          %s238 = scalar_lea.vmem %s3, %s237
        $region32: #{tpu_custom_call.1} parent=15 // pred_fallthru
          _
        // Predicated region
        $region33: #{tpu_custom_call.1} parent=15 // pred_check
          %p239 = pneg %p152
        $region34: #{tpu_custom_call.1} parent=15 // pred_check_branch
          %241 = sbr.rel (%p239) target = $region36
        $region35: #{tpu_custom_call.1} parent=15 // pred_region
          %p242 = scmp.lt.s32.totalorder %s21, 1
          %s243 = scalar_select %p242, %s21, 1
          %s244 = smul.addr %s243, 28
          %s245 = smul.addr %s244, 8
          %s246 = scalar_lea.vmem %s4, %s245
        $region36: #{tpu_custom_call.1} parent=15 // pred_fallthru
          _
      $region16: #{tpu_custom_call.1} parent=5 // pred_fallthru
        _
      %p247 = scmp.le.s32.totalorder 1, %s14
      %p248 = scmp.lt.s32.totalorder %s14, 3
      %p249 = pnand %p247, %p248
      %p250 = pneg %p249
      // Predicated region
      $region37: #{tpu_custom_call.1} parent=5 // pred_check
        _
      $region38: #{tpu_custom_call.1} parent=5 // pred_check_branch
        %252 = sbr.rel (%p249) target = $region40
      $region39: #{tpu_custom_call.1} parent=5 // pred_region
        %s253 = ssub.s32 %s14, 1
        %p254 = scmp.lt.s32.totalorder %s23, 1
        %s255 = scalar_select %p254, %s23, 1
        %p256 = scmp.lt.s32.totalorder %s24, 0
        %s257 = scalar_select %p256, %s24, 0
        %s258 = sadd.s32 %s257, %s255
        %s259 = smul.addr %s258, 8
        %s260 = scalar_lea.vmem %s0, %s259
        %p261 = pneg %p54
        %p262 = pneg %p51
        %p263 = scmp.lt.s32.totalorder %s23, 1
        %s264 = scalar_select %p263, %s23, 1
        %s265 = smul.addr %s264, 56
        %s266 = smul.addr %s265, 8
        %s267 = scalar_lea.vmem %s1, %s266
        %p268 = pneg %p80
        %p269 = pneg %p77
        %p270 = scmp.lt.s32.totalorder %s23, 1
        %s271 = scalar_select %p270, %s23, 1
        %s272 = smul.addr %s271, 56
        %s273 = smul.addr %s272, 8
        %s274 = scalar_lea.vmem %s2, %s273
        %p275 = pneg %p106
        %p276 = pneg %p103
        %p277 = scmp.lt.s32.totalorder %s23, 1
        %s278 = scalar_select %p277, %s23, 1
        %s279 = smul.addr %s278, 56
        %s280 = smul.addr %s279, 8
        %s281 = scalar_lea.vmem %s3, %s280
        %p282 = pneg %p132
        %p283 = pneg %p129
        %p284 = scmp.lt.s32.totalorder %s23, 1
        %s285 = scalar_select %p284, %s23, 1
        %s286 = smul.addr %s285, 28
        %s287 = smul.addr %s286, 8
        %s288 = scalar_lea.vmem %s4, %s287
        %p289 = pneg %p158
        %p290 = pneg %p155
        %p291 = pneg %p186
        %p292 = pneg %p183
        %s293 = sand.u32 %s173, 1
        %s294 = scalar_lea.sflag [#allocation3], %s293
        %s295 = sand.u32 %s173, 1
        %s296 = smul.addr %s295, 8
        %s297 = scalar_lea.vmem [#allocation2], %s296
        %p298 = scmp.lt.s32.totalorder %s23, 1
        %s299 = scalar_select %p298, %s23, 1
        %p300 = scmp.lt.s32.totalorder %s24, 0
        %s301 = scalar_select %p300, %s24, 0
        %s302 = sadd.s32 %s301, %s299
        %s303 = smul.addr %s302, 8
        %s304 = scalar_lea.vmem %s0, %s303
        %p305 = scmp.lt.s32.totalorder %s23, 1
        %s306 = scalar_select %p305, %s23, 1
        %s307 = smul.addr %s306, 56
        %s308 = smul.addr %s307, 8
        %s309 = scalar_lea.vmem %s1, %s308
        %p310 = scmp.lt.s32.totalorder %s23, 1
        %s311 = scalar_select %p310, %s23, 1
        %s312 = smul.addr %s311, 56
        %s313 = smul.addr %s312, 8
        %s314 = scalar_lea.vmem %s2, %s313
        %p315 = scmp.lt.s32.totalorder %s23, 1
        %s316 = scalar_select %p315, %s23, 1
        %s317 = smul.addr %s316, 56
        %s318 = smul.addr %s317, 8
        %s319 = scalar_lea.vmem %s3, %s318
        %p320 = scmp.lt.s32.totalorder %s23, 1
        %s321 = scalar_select %p320, %s23, 1
        %s322 = smul.addr %s321, 28
        %s323 = smul.addr %s322, 8
        %s324 = scalar_lea.vmem %s4, %s323
        %v325 = vld [vmem:[%s304] sm:$0xff]
        %vm326 = vcmask 23552
        %327 = vst.msk [vmem:[%s297] sm:$0xff] %vm326, %v325
        %329 = vrot.lane.b32.xlu0 %v325, 127
        %v330 = vpop.permute.xlu0 %329
        %v332 = vrcp.pop %v330
        %v333 = vmul.f32 %v325, %v332
        %v334 = vmul.f32 %v333, 250.0
        %v335 = vadd.f32 %v334, 112.0
        %v336 = vsub.f32 0.0, %v325
        %338 = vrot.lane.b32.xlu0 %v336, 126
        %v339 = vpop.permute.xlu0 %338
        %v341 = vrcp.pop %v339
        %v342 = vmul.f32 %v325, %v341
        %v343 = vmul.f32 %v342, 250.0
        %v344 = vadd.f32 %v343, 112.0
        %v345 = vmul.f32 %v335, 0.25
        %v346 = vmax.f32 %v345, 0.0
        %v347 = vmin.f32 %v346, 55.0
        %v348 = vmul.f32 %v344, 0.25
        %v349 = vmax.f32 %v348, 0.0
        %v350 = vmin.f32 %v349, 55.0
        %v351 = vfloor.f32 %v347
        %v352 = vceil.f32 %v347
        %v353 = vfloor.f32 %v350
        %v354 = vceil.f32 %v350
        %v355 = vsub.f32 %v352, %v347
        %v356 = vsub.f32 %v347, %v351
        %v357 = vsub.f32 %v354, %v350
        %v358 = vsub.f32 %v350, %v353
        %v359 = vcvt.f32.s32.to.zero.pseudo %v351
        %v360 = vcvt.f32.s32.to.zero.pseudo %v352
        %v361 = vcvt.f32.s32.to.zero.pseudo %v353
        %v362 = vcvt.f32.s32.to.zero.pseudo %v354
        %v363 = vlaneseq
        %v364 = vand.u32 %v363, 127
        %365 = vset.pattern.permute.xlu0 0
        %366 = vperm.xlu0 %365, %v361
        %v367 = vpop.permute.xlu0 %366
        %vm368 = vcmp.eq.s32.totalorder %v364, %v367
        %370 = vset.pattern.permute.xlu0 0
        %371 = vperm.xlu0 %370, %v357
        %v372 = vpop.permute.xlu0 %371
        %v374 = vsel %vm368, %v372, 0.0
        %375 = vset.pattern.permute.xlu0 0
        %376 = vperm.xlu0 %375, %v362
        %v377 = vpop.permute.xlu0 %376
        %vm378 = vcmp.eq.s32.totalorder %v364, %v377
        %380 = vset.pattern.permute.xlu0 0
        %381 = vperm.xlu0 %380, %v358
        %v382 = vpop.permute.xlu0 %381
        %v384 = vsel %vm378, %v382, 0.0
        %v385 = vadd.f32 %v374, %v384
        %v386 = vld [vmem:[%s309] sm:$0xff]
        %v387 = vld [vmem:[%s309 + $0x8] sm:$0xff]
        %v388 = vld [vmem:[%s309 + $0x10] sm:$0xff]
        %v389 = vld [vmem:[%s309 + $0x18] sm:$0xff]
        %v390 = vld [vmem:[%s309 + $0x20] sm:$0xff]
        %v391 = vld [vmem:[%s309 + $0x28] sm:$0xff]
        %v392 = vld [vmem:[%s309 + $0x30] sm:$0xff]
        %v393 = vld [vmem:[%s309 + $0x38] sm:$0xff]
        %v394 = vld [vmem:[%s309 + $0x40] sm:$0xff]
        %v395 = vld [vmem:[%s309 + $0x48] sm:$0xff]
        %v396 = vld [vmem:[%s309 + $0x50] sm:$0xff]
        %v397 = vld [vmem:[%s309 + $0x58] sm:$0xff]
        %v398 = vld [vmem:[%s309 + $0x60] sm:$0xff]
        %v399 = vld [vmem:[%s309 + $0x68] sm:$0xff]
        %v400 = vld [vmem:[%s309 + $0x70] sm:$0xff]
        %v401 = vld [vmem:[%s309 + $0x78] sm:$0xff]
        %v402 = vld [vmem:[%s309 + $0x80] sm:$0xff]
        %v403 = vld [vmem:[%s309 + $0x88] sm:$0xff]
        %v404 = vld [vmem:[%s309 + $0x90] sm:$0xff]
        %v405 = vld [vmem:[%s309 + $0x98] sm:$0xff]
        %v406 = vld [vmem:[%s309 + $0xa0] sm:$0xff]
        %v407 = vld [vmem:[%s309 + $0xa8] sm:$0xff]
        %v408 = vld [vmem:[%s309 + $0xb0] sm:$0xff]
        %v409 = vld [vmem:[%s309 + $0xb8] sm:$0xff]
        %v410 = vld [vmem:[%s309 + $0xc0] sm:$0xff]
        %v411 = vld [vmem:[%s309 + $0xc8] sm:$0xff]
        %v412 = vld [vmem:[%s309 + $0xd0] sm:$0xff]
        %v413 = vld [vmem:[%s309 + $0xd8] sm:$0xff]
        %v414 = vld [vmem:[%s309 + $0xe0] sm:$0xff]
        %v415 = vld [vmem:[%s309 + $0xe8] sm:$0xff]
        %v416 = vld [vmem:[%s309 + $0xf0] sm:$0xff]
        %v417 = vld [vmem:[%s309 + $0xf8] sm:$0xff]
        %v418 = vld [vmem:[%s309 + $0x100] sm:$0xff]
        %v419 = vld [vmem:[%s309 + $0x108] sm:$0xff]
        %v420 = vld [vmem:[%s309 + $0x110] sm:$0xff]
        %v421 = vld [vmem:[%s309 + $0x118] sm:$0xff]
        %v422 = vld [vmem:[%s309 + $0x120] sm:$0xff]
        %v423 = vld [vmem:[%s309 + $0x128] sm:$0xff]
        %v424 = vld [vmem:[%s309 + $0x130] sm:$0xff]
        %v425 = vld [vmem:[%s309 + $0x138] sm:$0xff]
        %v426 = vld [vmem:[%s309 + $0x140] sm:$0xff]
        %v427 = vld [vmem:[%s309 + $0x148] sm:$0xff]
        %v428 = vld [vmem:[%s309 + $0x150] sm:$0xff]
        %v429 = vld [vmem:[%s309 + $0x158] sm:$0xff]
        %v430 = vld [vmem:[%s309 + $0x160] sm:$0xff]
        %v431 = vld [vmem:[%s309 + $0x168] sm:$0xff]
        %v432 = vld [vmem:[%s309 + $0x170] sm:$0xff]
        %v433 = vld [vmem:[%s309 + $0x178] sm:$0xff]
        %v434 = vld [vmem:[%s309 + $0x180] sm:$0xff]
        %v435 = vld [vmem:[%s309 + $0x188] sm:$0xff]
        %v436 = vld [vmem:[%s309 + $0x190] sm:$0xff]
        %v437 = vld [vmem:[%s309 + $0x198] sm:$0xff]
        %v438 = vld [vmem:[%s309 + $0x1a0] sm:$0xff]
        %v439 = vld [vmem:[%s309 + $0x1a8] sm:$0xff]
        %v440 = vld [vmem:[%s309 + $0x1b0] sm:$0xff]
        %v441 = vld [vmem:[%s309 + $0x1b8] sm:$0xff]
        %vm442 = vcmask 457728
        %v444 = vsel %vm442, %v385, 0
        %v447 = vsel %vm442, %v386, 0
        %v450 = vsel %vm442, %v387, 0
        %v453 = vsel %vm442, %v388, 0
        %v456 = vsel %vm442, %v389, 0
        %v459 = vsel %vm442, %v390, 0
        %v462 = vsel %vm442, %v391, 0
        %v465 = vsel %vm442, %v392, 0
        %v468 = vsel %vm442, %v393, 0
        %v471 = vsel %vm442, %v394, 0
        %v474 = vsel %vm442, %v395, 0
        %v477 = vsel %vm442, %v396, 0
        %v480 = vsel %vm442, %v397, 0
        %v483 = vsel %vm442, %v398, 0
        %v486 = vsel %vm442, %v399, 0
        %v489 = vsel %vm442, %v400, 0
        %v492 = vsel %vm442, %v401, 0
        %v495 = vsel %vm442, %v402, 0
        %v498 = vsel %vm442, %v403, 0
        %v501 = vsel %vm442, %v404, 0
        %v504 = vsel %vm442, %v405, 0
        %v507 = vsel %vm442, %v406, 0
        %v510 = vsel %vm442, %v407, 0
        %v513 = vsel %vm442, %v408, 0
        %v516 = vsel %vm442, %v409, 0
        %v519 = vsel %vm442, %v410, 0
        %v522 = vsel %vm442, %v411, 0
        %v525 = vsel %vm442, %v412, 0
        %v528 = vsel %vm442, %v413, 0
        %v531 = vsel %vm442, %v414, 0
        %v534 = vsel %vm442, %v415, 0
        %v537 = vsel %vm442, %v416, 0
        %v540 = vsel %vm442, %v417, 0
        %v543 = vsel %vm442, %v418, 0
        %v546 = vsel %vm442, %v419, 0
        %v549 = vsel %vm442, %v420, 0
        %v552 = vsel %vm442, %v421, 0
        %v555 = vsel %vm442, %v422, 0
        %v558 = vsel %vm442, %v423, 0
        %v561 = vsel %vm442, %v424, 0
        %v564 = vsel %vm442, %v425, 0
        %v567 = vsel %vm442, %v426, 0
        %v570 = vsel %vm442, %v427, 0
        %v573 = vsel %vm442, %v428, 0
        %v576 = vsel %vm442, %v429, 0
        %v579 = vsel %vm442, %v430, 0
        %v582 = vsel %vm442, %v431, 0
        %v585 = vsel %vm442, %v432, 0
        %v588 = vsel %vm442, %v433, 0
        %v591 = vsel %vm442, %v434, 0
        %v594 = vsel %vm442, %v435, 0
        %v597 = vsel %vm442, %v436, 0
        %v600 = vsel %vm442, %v437, 0
        %v603 = vsel %vm442, %v438, 0
        %v606 = vsel %vm442, %v439, 0
        %v609 = vsel %vm442, %v440, 0
        %v612 = vsel %vm442, %v441, 0
        %614 = vmatprep.subr.mxu0 0.0
        %615 = vmatpush1.xpose.msra.mxu0 %v447
        %616 = vmatprep.subr.mxu0 0.0
        %617 = vmatpush1.xpose.msra.mxu0 %v450
        %618 = vmatprep.subr.mxu0 0.0
        %619 = vmatpush1.xpose.msra.mxu0 %v453
        %620 = vmatprep.subr.mxu0 0.0
        %621 = vmatpush1.xpose.msra.mxu0 %v456
        %622 = vmatprep.subr.mxu0 0.0
        %623 = vmatpush1.xpose.msra.mxu0 %v459
        %624 = vmatprep.subr.mxu0 0.0
        %625 = vmatpush1.xpose.msra.mxu0 %v462
        %626 = vmatprep.subr.mxu0 0.0
        %627 = vmatpush1.xpose.msra.mxu0 %v465
        %628 = vmatprep.subr.mxu0 0.0
        %629 = vmatpush1.xpose.msra.mxu0 %v468
        %630 = vmatprep.subr.mxu0 0.0
        %631 = vmatpush1.xpose.msra.mxu0 %v471
        %632 = vmatprep.subr.mxu0 0.0
        %633 = vmatpush1.xpose.msra.mxu0 %v474
        %634 = vmatprep.subr.mxu0 0.0
        %635 = vmatpush1.xpose.msra.mxu0 %v477
        %636 = vmatprep.subr.mxu0 0.0
        %637 = vmatpush1.xpose.msra.mxu0 %v480
        %638 = vmatprep.subr.mxu0 0.0
        %639 = vmatpush1.xpose.msra.mxu0 %v483
        %640 = vmatprep.subr.mxu0 0.0
        %641 = vmatpush1.xpose.msra.mxu0 %v486
        %642 = vmatprep.subr.mxu0 0.0
        %643 = vmatpush1.xpose.msra.mxu0 %v489
        %644 = vmatprep.subr.mxu0 0.0
        %645 = vmatpush1.xpose.msra.mxu0 %v492
        %646 = vmatprep.subr.mxu0 0.0
        %647 = vmatpush1.xpose.msra.mxu0 %v495
        %648 = vmatprep.subr.mxu0 0.0
        %649 = vmatpush1.xpose.msra.mxu0 %v498
        %650 = vmatprep.subr.mxu0 0.0
        %651 = vmatpush1.xpose.msra.mxu0 %v501
        %652 = vmatprep.subr.mxu0 0.0
        %653 = vmatpush1.xpose.msra.mxu0 %v504
        %654 = vmatprep.subr.mxu0 0.0
        %655 = vmatpush1.xpose.msra.mxu0 %v507
        %656 = vmatprep.subr.mxu0 0.0
        %657 = vmatpush1.xpose.msra.mxu0 %v510
        %658 = vmatprep.subr.mxu0 0.0
        %659 = vmatpush1.xpose.msra.mxu0 %v513
        %660 = vmatprep.subr.mxu0 0.0
        %661 = vmatpush1.xpose.msra.mxu0 %v516
        %662 = vmatprep.subr.mxu0 0.0
        %663 = vmatpush1.xpose.msra.mxu0 %v519
        %664 = vmatprep.subr.mxu0 0.0
        %665 = vmatpush1.xpose.msra.mxu0 %v522
        %666 = vmatprep.subr.mxu0 0.0
        %667 = vmatpush1.xpose.msra.mxu0 %v525
        %668 = vmatprep.subr.mxu0 0.0
        %669 = vmatpush1.xpose.msra.mxu0 %v528
        %670 = vmatprep.subr.mxu0 0.0
        %671 = vmatpush1.xpose.msra.mxu0 %v531
        %672 = vmatprep.subr.mxu0 0.0
        %673 = vmatpush1.xpose.msra.mxu0 %v534
        %674 = vmatprep.subr.mxu0 0.0
        %675 = vmatpush1.xpose.msra.mxu0 %v537
        %676 = vmatprep.subr.mxu0 0.0
        %677 = vmatpush1.xpose.msra.mxu0 %v540
        %678 = vmatprep.mubr.f32.mxu0 0.0
        %679 = vmatmul.mubr.f32.gmra.mrb[0].mxu0 %v444
        %v680 = vpop.f32.mrb[0].mxu0
        %v681 = vadd.f32 0.0, %v680
        %v682 = vpop.f32.mrb[0].mxu0
        %v683 = vadd.f32 0.0, %v682
        %684 = vdwg.mxu0
        %685 = vmatprep.subr.mxu0 0.0
        %686 = vmatpush1.xpose.msra.mxu0 %v543
        %687 = vmatprep.subr.mxu0 0.0
        %688 = vmatpush1.xpose.msra.mxu0 %v546
        %689 = vmatprep.subr.mxu0 0.0
        %690 = vmatpush1.xpose.msra.mxu0 %v549
        %691 = vmatprep.subr.mxu0 0.0
        %692 = vmatpush1.xpose.msra.mxu0 %v552
        %693 = vmatprep.subr.mxu0 0.0
        %694 = vmatpush1.xpose.msra.mxu0 %v555
        %695 = vmatprep.subr.mxu0 0.0
        %696 = vmatpush1.xpose.msra.mxu0 %v558
        %697 = vmatprep.subr.mxu0 0.0
        %698 = vmatpush1.xpose.msra.mxu0 %v561
        %699 = vmatprep.subr.mxu0 0.0
        %700 = vmatpush1.xpose.msra.mxu0 %v564
        %701 = vmatprep.subr.mxu0 0.0
        %702 = vmatpush1.xpose.msra.mxu0 %v567
        %703 = vmatprep.subr.mxu0 0.0
        %704 = vmatpush1.xpose.msra.mxu0 %v570
        %705 = vmatprep.subr.mxu0 0.0
        %706 = vmatpush1.xpose.msra.mxu0 %v573
        %707 = vmatprep.subr.mxu0 0.0
        %708 = vmatpush1.xpose.msra.mxu0 %v576
        %709 = vmatprep.subr.mxu0 0.0
        %710 = vmatpush1.xpose.msra.mxu0 %v579
        %711 = vmatprep.subr.mxu0 0.0
        %712 = vmatpush1.xpose.msra.mxu0 %v582
        %713 = vmatprep.subr.mxu0 0.0
        %714 = vmatpush1.xpose.msra.mxu0 %v585
        %715 = vmatprep.subr.mxu0 0.0
        %716 = vmatpush1.xpose.msra.mxu0 %v588
        %717 = vmatprep.subr.mxu0 0.0
        %718 = vmatpush1.xpose.msra.mxu0 %v591
        %719 = vmatprep.subr.mxu0 0.0
        %720 = vmatpush1.xpose.msra.mxu0 %v594
        %721 = vmatprep.subr.mxu0 0.0
        %722 = vmatpush1.xpose.msra.mxu0 %v597
        %723 = vmatprep.subr.mxu0 0.0
        %724 = vmatpush1.xpose.msra.mxu0 %v600
        %725 = vmatprep.subr.mxu0 0.0
        %726 = vmatpush1.xpose.msra.mxu0 %v603
        %727 = vmatprep.subr.mxu0 0.0
        %728 = vmatpush1.xpose.msra.mxu0 %v606
        %729 = vmatprep.subr.mxu0 0.0
        %730 = vmatpush1.xpose.msra.mxu0 %v609
        %731 = vmatprep.subr.mxu0 0.0
        %732 = vmatpush1.xpose.msra.mxu0 %v612
        %733 = vmatprep.subr.mxu0 0.0
        %734 = vmatpush1.xpose.msra.mxu0 0.0
        %735 = vmatprep.subr.mxu0 0.0
        %736 = vmatpush1.xpose.msra.mxu0 0.0
        %737 = vmatprep.subr.mxu0 0.0
        %738 = vmatpush1.xpose.msra.mxu0 0.0
        %739 = vmatprep.subr.mxu0 0.0
        %740 = vmatpush1.xpose.msra.mxu0 0.0
        %741 = vmatprep.subr.mxu0 0.0
        %742 = vmatpush1.xpose.msra.mxu0 0.0
        %743 = vmatprep.subr.mxu0 0.0
        %744 = vmatpush1.xpose.msra.mxu0 0.0
        %745 = vmatprep.subr.mxu0 0.0
        %746 = vmatpush1.xpose.msra.mxu0 0.0
        %747 = vmatprep.subr.mxu0 0.0
        %748 = vmatpush1.xpose.msra.mxu0 0.0
        %749 = vmatprep.mubr.f32.mxu0 0.0
        %750 = vmatmul.mubr.f32.gmra.mrb[0].mxu0 %v444
        %v751 = vpop.f32.mrb[0].mxu0
        %v752 = vadd.f32 0.0, %v751
        %v753 = vpop.f32.mrb[0].mxu0
        %v754 = vadd.f32 0.0, %v753
        %755 = vdwg.mxu0
        %v756 = vadd.s32 %v364, 128
        %v757 = vadd.s32 %v364, 256
        %v758 = vadd.s32 %v364, 384
        %v759 = vcvt.s32.f32 %v364
        %v760 = vcvt.s32.f32 %v756
        %v761 = vcvt.s32.f32 %v757
        %v762 = vcvt.s32.f32 %v758
        %v763 = vrcp.pop 56.0
        %v764 = vmul.f32 %v759, %v763
        %v765 = vmul.f32 %v760, %v763
        %v766 = vmul.f32 %v761, %v763
        %v767 = vmul.f32 %v762, %v763
        %v768 = vfloor.f32 %v764
        %v769 = vfloor.f32 %v765
        %v770 = vfloor.f32 %v766
        %v771 = vfloor.f32 %v767
        %v772 = vmul.f32 %v768, 56.0
        %v773 = vmul.f32 %v769, 56.0
        %v774 = vmul.f32 %v770, 56.0
        %v775 = vmul.f32 %v771, 56.0
        %v776 = vsub.f32 %v759, %v772
        %v777 = vsub.f32 %v760, %v773
        %v778 = vsub.f32 %v761, %v774
        %v779 = vsub.f32 %v762, %v775
        %v780 = vcvt.f32.s32.to.zero.pseudo %v776
        %v781 = vcvt.f32.s32.to.zero.pseudo %v777
        %v782 = vcvt.f32.s32.to.zero.pseudo %v778
        %v783 = vcvt.f32.s32.to.zero.pseudo %v779
        %784 = vset.pattern.permute.xlu0 1
        %785 = vperm.xlu0 %784, %v359
        %v786 = vpop.permute.xlu0 %785
        %vm787 = vcmp.eq.s32.totalorder %v780, %v786
        %vm788 = vcmp.eq.s32.totalorder %v781, %v786
        %vm789 = vcmp.eq.s32.totalorder %v782, %v786
        %vm790 = vcmp.eq.s32.totalorder %v783, %v786
        %792 = vset.pattern.permute.xlu0 1
        %793 = vperm.xlu0 %792, %v355
        %v794 = vpop.permute.xlu0 %793
        %v796 = vsel %vm787, %v794, 0.0
        %v797 = vsel %vm788, %v794, 0.0
        %v798 = vsel %vm789, %v794, 0.0
        %v799 = vsel %vm790, %v794, 0.0
        %800 = vset.pattern.permute.xlu0 1
        %801 = vperm.xlu0 %800, %v360
        %v802 = vpop.permute.xlu0 %801
        %vm803 = vcmp.eq.s32.totalorder %v780, %v802
        %vm804 = vcmp.eq.s32.totalorder %v781, %v802
        %vm805 = vcmp.eq.s32.totalorder %v782, %v802
        %vm806 = vcmp.eq.s32.totalorder %v783, %v802
        %808 = vset.pattern.permute.xlu0 1
        %809 = vperm.xlu0 %808, %v356
        %v810 = vpop.permute.xlu0 %809
        %v812 = vsel %vm803, %v810, 0.0
        %v813 = vsel %vm804, %v810, 0.0
        %v814 = vsel %vm805, %v810, 0.0
        %v815 = vsel %vm806, %v810, 0.0
        %v816 = vadd.f32 %v796, %v812
        %v817 = vadd.f32 %v797, %v813
        %v818 = vadd.f32 %v798, %v814
        %v819 = vadd.f32 %v799, %v815
        %v820 = vmul.f32 %v681, %v816
        %v821 = vmul.f32 %v683, %v817
        %v822 = vmul.f32 %v752, %v818
        %v823 = vmul.f32 %v754, %v819
        %v824 = vlaneseq
        %v825 = vshrl.u32 %v824, 7
        %v826 = vadd.s32 %v825, 8
        %v827 = vadd.s32 %v825, 16
        %v828 = vadd.s32 %v825, 24
        %v829 = vadd.s32 %v825, 32
        %v830 = vadd.s32 %v825, 40
        %v831 = vadd.s32 %v825, 48
        %v832 = vadd.s32 %v825, 56
        %v833 = vadd.s32 %v825, 64
        %v834 = vadd.s32 %v825, 72
        %v835 = vadd.s32 %v825, 80
        %v836 = vadd.s32 %v825, 88
        %v837 = vadd.s32 %v825, 96
        %v838 = vadd.s32 %v825, 104
        %v839 = vadd.s32 %v825, 112
        %v840 = vadd.s32 %v825, 120
        %v841 = vadd.s32 %v825, 128
        %v842 = vadd.s32 %v825, 136
        %v843 = vadd.s32 %v825, 144
        %v844 = vadd.s32 %v825, 152
        %v845 = vadd.s32 %v825, 160
        %v846 = vadd.s32 %v825, 168
        %v847 = vadd.s32 %v825, 176
        %v848 = vadd.s32 %v825, 184
        %v849 = vadd.s32 %v825, 192
        %v850 = vadd.s32 %v825, 200
        %v851 = vadd.s32 %v825, 208
        %v852 = vadd.s32 %v825, 216
        %v853 = vadd.s32 %v825, 224
        %v854 = vadd.s32 %v825, 232
        %v855 = vadd.s32 %v825, 240
        %v856 = vadd.s32 %v825, 248
        %v857 = vadd.s32 %v825, 256
        %v858 = vadd.s32 %v825, 264
        %v859 = vadd.s32 %v825, 272
        %v860 = vadd.s32 %v825, 280
        %v861 = vadd.s32 %v825, 288
        %v862 = vadd.s32 %v825, 296
        %v863 = vadd.s32 %v825, 304
        %v864 = vadd.s32 %v825, 312
        %v865 = vadd.s32 %v825, 320
        %v866 = vadd.s32 %v825, 328
        %v867 = vadd.s32 %v825, 336
        %v868 = vadd.s32 %v825, 344
        %v869 = vadd.s32 %v825, 352
        %v870 = vadd.s32 %v825, 360
        %v871 = vadd.s32 %v825, 368
        %v872 = vadd.s32 %v825, 376
        %v873 = vadd.s32 %v825, 384
        %v874 = vadd.s32 %v825, 392
        %v875 = vadd.s32 %v825, 400
        %v876 = vadd.s32 %v825, 408
        %v877 = vadd.s32 %v825, 416
        %v878 = vadd.s32 %v825, 424
        %v879 = vadd.s32 %v825, 432
        %v880 = vadd.s32 %v825, 440
        %v881 = vmul.u32 %v364, 56
        %vm882 = vcmp.ge.s32.totalorder %v825, %v881
        %vm883 = vcmp.ge.s32.totalorder %v826, %v881
        %vm884 = vcmp.ge.s32.totalorder %v827, %v881
        %vm885 = vcmp.ge.s32.totalorder %v828, %v881
        %vm886 = vcmp.ge.s32.totalorder %v829, %v881
        %vm887 = vcmp.ge.s32.totalorder %v830, %v881
        %vm888 = vcmp.ge.s32.totalorder %v831, %v881
        %vm889 = vcmp.ge.s32.totalorder %v832, %v881
        %vm890 = vcmp.ge.s32.totalorder %v833, %v881
        %vm891 = vcmp.ge.s32.totalorder %v834, %v881
        %vm892 = vcmp.ge.s32.totalorder %v835, %v881
        %vm893 = vcmp.ge.s32.totalorder %v836, %v881
        %vm894 = vcmp.ge.s32.totalorder %v837, %v881
        %vm895 = vcmp.ge.s32.totalorder %v838, %v881
        %vm896 = vcmp.ge.s32.totalorder %v839, %v881
        %vm897 = vcmp.ge.s32.totalorder %v840, %v881
        %vm898 = vcmp.ge.s32.totalorder %v841, %v881
        %vm899 = vcmp.ge.s32.totalorder %v842, %v881
        %vm900 = vcmp.ge.s32.totalorder %v843, %v881
        %vm901 = vcmp.ge.s32.totalorder %v844, %v881
        %vm902 = vcmp.ge.s32.totalorder %v845, %v881
        %vm903 = vcmp.ge.s32.totalorder %v846, %v881
        %vm904 = vcmp.ge.s32.totalorder %v847, %v881
        %vm905 = vcmp.ge.s32.totalorder %v848, %v881
        %vm906 = vcmp.ge.s32.totalorder %v849, %v881
        %vm907 = vcmp.ge.s32.totalorder %v850, %v881
        %vm908 = vcmp.ge.s32.totalorder %v851, %v881
        %vm909 = vcmp.ge.s32.totalorder %v852, %v881
        %vm910 = vcmp.ge.s32.totalorder %v853, %v881
        %vm911 = vcmp.ge.s32.totalorder %v854, %v881
        %vm912 = vcmp.ge.s32.totalorder %v855, %v881
        %vm913 = vcmp.ge.s32.totalorder %v856, %v881
        %vm914 = vcmp.ge.s32.totalorder %v857, %v881
        %vm915 = vcmp.ge.s32.totalorder %v858, %v881
        %vm916 = vcmp.ge.s32.totalorder %v859, %v881
        %vm917 = vcmp.ge.s32.totalorder %v860, %v881
        %vm918 = vcmp.ge.s32.totalorder %v861, %v881
        %vm919 = vcmp.ge.s32.totalorder %v862, %v881
        %vm920 = vcmp.ge.s32.totalorder %v863, %v881
        %vm921 = vcmp.ge.s32.totalorder %v864, %v881
        %vm922 = vcmp.ge.s32.totalorder %v865, %v881
        %vm923 = vcmp.ge.s32.totalorder %v866, %v881
        %vm924 = vcmp.ge.s32.totalorder %v867, %v881
        %vm925 = vcmp.ge.s32.totalorder %v868, %v881
        %vm926 = vcmp.ge.s32.totalorder %v869, %v881
        %vm927 = vcmp.ge.s32.totalorder %v870, %v881
        %vm928 = vcmp.ge.s32.totalorder %v871, %v881
        %vm929 = vcmp.ge.s32.totalorder %v872, %v881
        %vm930 = vcmp.ge.s32.totalorder %v873, %v881
        %vm931 = vcmp.ge.s32.totalorder %v874, %v881
        %vm932 = vcmp.ge.s32.totalorder %v875, %v881
        %vm933 = vcmp.ge.s32.totalorder %v876, %v881
        %vm934 = vcmp.ge.s32.totalorder %v877, %v881
        %vm935 = vcmp.ge.s32.totalorder %v878, %v881
        %vm936 = vcmp.ge.s32.totalorder %v879, %v881
        %vm937 = vcmp.ge.s32.totalorder %v880, %v881
        %v938 = vadd.s32 %v881, 56
        %vm939 = vcmp.lt.s32.totalorder %v825, %v938
        %vm940 = vcmp.lt.s32.totalorder %v826, %v938
        %vm941 = vcmp.lt.s32.totalorder %v827, %v938
        %vm942 = vcmp.lt.s32.totalorder %v828, %v938
        %vm943 = vcmp.lt.s32.totalorder %v829, %v938
        %vm944 = vcmp.lt.s32.totalorder %v830, %v938
        %vm945 = vcmp.lt.s32.totalorder %v831, %v938
        %vm946 = vcmp.lt.s32.totalorder %v832, %v938
        %vm947 = vcmp.lt.s32.totalorder %v833, %v938
        %vm948 = vcmp.lt.s32.totalorder %v834, %v938
        %vm949 = vcmp.lt.s32.totalorder %v835, %v938
        %vm950 = vcmp.lt.s32.totalorder %v836, %v938
        %vm951 = vcmp.lt.s32.totalorder %v837, %v938
        %vm952 = vcmp.lt.s32.totalorder %v838, %v938
        %vm953 = vcmp.lt.s32.totalorder %v839, %v938
        %vm954 = vcmp.lt.s32.totalorder %v840, %v938
        %vm955 = vcmp.lt.s32.totalorder %v841, %v938
        %vm956 = vcmp.lt.s32.totalorder %v842, %v938
        %vm957 = vcmp.lt.s32.totalorder %v843, %v938
        %vm958 = vcmp.lt.s32.totalorder %v844, %v938
        %vm959 = vcmp.lt.s32.totalorder %v845, %v938
        %vm960 = vcmp.lt.s32.totalorder %v846, %v938
        %vm961 = vcmp.lt.s32.totalorder %v847, %v938
        %vm962 = vcmp.lt.s32.totalorder %v848, %v938
        %vm963 = vcmp.lt.s32.totalorder %v849, %v938
        %vm964 = vcmp.lt.s32.totalorder %v850, %v938
        %vm965 = vcmp.lt.s32.totalorder %v851, %v938
        %vm966 = vcmp.lt.s32.totalorder %v852, %v938
        %vm967 = vcmp.lt.s32.totalorder %v853, %v938
        %vm968 = vcmp.lt.s32.totalorder %v854, %v938
        %vm969 = vcmp.lt.s32.totalorder %v855, %v938
        %vm970 = vcmp.lt.s32.totalorder %v856, %v938
        %vm971 = vcmp.lt.s32.totalorder %v857, %v938
        %vm972 = vcmp.lt.s32.totalorder %v858, %v938
        %vm973 = vcmp.lt.s32.totalorder %v859, %v938
        %vm974 = vcmp.lt.s32.totalorder %v860, %v938
        %vm975 = vcmp.lt.s32.totalorder %v861, %v938
        %vm976 = vcmp.lt.s32.totalorder %v862, %v938
        %vm977 = vcmp.lt.s32.totalorder %v863, %v938
        %vm978 = vcmp.lt.s32.totalorder %v864, %v938
        %vm979 = vcmp.lt.s32.totalorder %v865, %v938
        %vm980 = vcmp.lt.s32.totalorder %v866, %v938
        %vm981 = vcmp.lt.s32.totalorder %v867, %v938
        %vm982 = vcmp.lt.s32.totalorder %v868, %v938
        %vm983 = vcmp.lt.s32.totalorder %v869, %v938
        %vm984 = vcmp.lt.s32.totalorder %v870, %v938
        %vm985 = vcmp.lt.s32.totalorder %v871, %v938
        %vm986 = vcmp.lt.s32.totalorder %v872, %v938
        %vm987 = vcmp.lt.s32.totalorder %v873, %v938
        %vm988 = vcmp.lt.s32.totalorder %v874, %v938
        %vm989 = vcmp.lt.s32.totalorder %v875, %v938
        %vm990 = vcmp.lt.s32.totalorder %v876, %v938
        %vm991 = vcmp.lt.s32.totalorder %v877, %v938
        %vm992 = vcmp.lt.s32.totalorder %v878, %v938
        %vm993 = vcmp.lt.s32.totalorder %v879, %v938
        %vm994 = vcmp.lt.s32.totalorder %v880, %v938
        %vm995 = vmand %vm882, %vm939
        %vm996 = vmand %vm883, %vm940
        %vm997 = vmand %vm884, %vm941
        %vm998 = vmand %vm885, %vm942
        %vm999 = vmand %vm886, %vm943
        %vm1000 = vmand %vm887, %vm944
        %vm1001 = vmand %vm888, %vm945
        %vm1002 = vmand %vm889, %vm946
        %vm1003 = vmand %vm890, %vm947
        %vm1004 = vmand %vm891, %vm948
        %vm1005 = vmand %vm892, %vm949
        %vm1006 = vmand %vm893, %vm950
        %vm1007 = vmand %vm894, %vm951
        %vm1008 = vmand %vm895, %vm952
        %vm1009 = vmand %vm896, %vm953
        %vm1010 = vmand %vm897, %vm954
        %vm1011 = vmand %vm898, %vm955
        %vm1012 = vmand %vm899, %vm956
        %vm1013 = vmand %vm900, %vm957
        %vm1014 = vmand %vm901, %vm958
        %vm1015 = vmand %vm902, %vm959
        %vm1016 = vmand %vm903, %vm960
        %vm1017 = vmand %vm904, %vm961
        %vm1018 = vmand %vm905, %vm962
        %vm1019 = vmand %vm906, %vm963
        %vm1020 = vmand %vm907, %vm964
        %vm1021 = vmand %vm908, %vm965
        %vm1022 = vmand %vm909, %vm966
        %vm1023 = vmand %vm910, %vm967
        %vm1024 = vmand %vm911, %vm968
        %vm1025 = vmand %vm912, %vm969
        %vm1026 = vmand %vm913, %vm970
        %vm1027 = vmand %vm914, %vm971
        %vm1028 = vmand %vm915, %vm972
        %vm1029 = vmand %vm916, %vm973
        %vm1030 = vmand %vm917, %vm974
        %vm1031 = vmand %vm918, %vm975
        %vm1032 = vmand %vm919, %vm976
        %vm1033 = vmand %vm920, %vm977
        %vm1034 = vmand %vm921, %vm978
        %vm1035 = vmand %vm922, %vm979
        %vm1036 = vmand %vm923, %vm980
        %vm1037 = vmand %vm924, %vm981
        %vm1038 = vmand %vm925, %vm982
        %vm1039 = vmand %vm926, %vm983
        %vm1040 = vmand %vm927, %vm984
        %vm1041 = vmand %vm928, %vm985
        %vm1042 = vmand %vm929, %vm986
        %vm1043 = vmand %vm930, %vm987
        %vm1044 = vmand %vm931, %vm988
        %vm1045 = vmand %vm932, %vm989
        %vm1046 = vmand %vm933, %vm990
        %vm1047 = vmand %vm934, %vm991
        %vm1048 = vmand %vm935, %vm992
        %vm1049 = vmand %vm936, %vm993
        %vm1050 = vmand %vm937, %vm994
        %v1051 = vsel %vm995, 1, 0
        %v1052 = vsel %vm996, 1, 0
        %v1053 = vsel %vm997, 1, 0
        %v1054 = vsel %vm998, 1, 0
        %v1055 = vsel %vm999, 1, 0
        %v1056 = vsel %vm1000, 1, 0
        %v1057 = vsel %vm1001, 1, 0
        %v1058 = vsel %vm1002, 1, 0
        %v1059 = vsel %vm1003, 1, 0
        %v1060 = vsel %vm1004, 1, 0
        %v1061 = vsel %vm1005, 1, 0
        %v1062 = vsel %vm1006, 1, 0
        %v1063 = vsel %vm1007, 1, 0
        %v1064 = vsel %vm1008, 1, 0
        %v1065 = vsel %vm1009, 1, 0
        %v1066 = vsel %vm1010, 1, 0
        %v1067 = vsel %vm1011, 1, 0
        %v1068 = vsel %vm1012, 1, 0
        %v1069 = vsel %vm1013, 1, 0
        %v1070 = vsel %vm1014, 1, 0
        %v1071 = vsel %vm1015, 1, 0
        %v1072 = vsel %vm1016, 1, 0
        %v1073 = vsel %vm1017, 1, 0
        %v1074 = vsel %vm1018, 1, 0
        %v1075 = vsel %vm1019, 1, 0
        %v1076 = vsel %vm1020, 1, 0
        %v1077 = vsel %vm1021, 1, 0
        %v1078 = vsel %vm1022, 1, 0
        %v1079 = vsel %vm1023, 1, 0
        %v1080 = vsel %vm1024, 1, 0
        %v1081 = vsel %vm1025, 1, 0
        %v1082 = vsel %vm1026, 1, 0
        %v1083 = vsel %vm1027, 1, 0
        %v1084 = vsel %vm1028, 1, 0
        %v1085 = vsel %vm1029, 1, 0
        %v1086 = vsel %vm1030, 1, 0
        %v1087 = vsel %vm1031, 1, 0
        %v1088 = vsel %vm1032, 1, 0
        %v1089 = vsel %vm1033, 1, 0
        %v1090 = vsel %vm1034, 1, 0
        %v1091 = vsel %vm1035, 1, 0
        %v1092 = vsel %vm1036, 1, 0
        %v1093 = vsel %vm1037, 1, 0
        %v1094 = vsel %vm1038, 1, 0
        %v1095 = vsel %vm1039, 1, 0
        %v1096 = vsel %vm1040, 1, 0
        %v1097 = vsel %vm1041, 1, 0
        %v1098 = vsel %vm1042, 1, 0
        %v1099 = vsel %vm1043, 1, 0
        %v1100 = vsel %vm1044, 1, 0
        %v1101 = vsel %vm1045, 1, 0
        %v1102 = vsel %vm1046, 1, 0
        %v1103 = vsel %vm1047, 1, 0
        %v1104 = vsel %vm1048, 1, 0
        %v1105 = vsel %vm1049, 1, 0
        %v1106 = vsel %vm1050, 1, 0
        %v1107 = vcvt.s32.f32 %v1051
        %v1108 = vcvt.s32.f32 %v1052
        %v1109 = vcvt.s32.f32 %v1053
        %v1110 = vcvt.s32.f32 %v1054
        %v1111 = vcvt.s32.f32 %v1055
        %v1112 = vcvt.s32.f32 %v1056
        %v1113 = vcvt.s32.f32 %v1057
        %v1114 = vcvt.s32.f32 %v1058
        %v1115 = vcvt.s32.f32 %v1059
        %v1116 = vcvt.s32.f32 %v1060
        %v1117 = vcvt.s32.f32 %v1061
        %v1118 = vcvt.s32.f32 %v1062
        %v1119 = vcvt.s32.f32 %v1063
        %v1120 = vcvt.s32.f32 %v1064
        %v1121 = vcvt.s32.f32 %v1065
        %v1122 = vcvt.s32.f32 %v1066
        %v1123 = vcvt.s32.f32 %v1067
        %v1124 = vcvt.s32.f32 %v1068
        %v1125 = vcvt.s32.f32 %v1069
        %v1126 = vcvt.s32.f32 %v1070
        %v1127 = vcvt.s32.f32 %v1071
        %v1128 = vcvt.s32.f32 %v1072
        %v1129 = vcvt.s32.f32 %v1073
        %v1130 = vcvt.s32.f32 %v1074
        %v1131 = vcvt.s32.f32 %v1075
        %v1132 = vcvt.s32.f32 %v1076
        %v1133 = vcvt.s32.f32 %v1077
        %v1134 = vcvt.s32.f32 %v1078
        %v1135 = vcvt.s32.f32 %v1079
        %v1136 = vcvt.s32.f32 %v1080
        %v1137 = vcvt.s32.f32 %v1081
        %v1138 = vcvt.s32.f32 %v1082
        %v1139 = vcvt.s32.f32 %v1083
        %v1140 = vcvt.s32.f32 %v1084
        %v1141 = vcvt.s32.f32 %v1085
        %v1142 = vcvt.s32.f32 %v1086
        %v1143 = vcvt.s32.f32 %v1087
        %v1144 = vcvt.s32.f32 %v1088
        %v1145 = vcvt.s32.f32 %v1089
        %v1146 = vcvt.s32.f32 %v1090
        %v1147 = vcvt.s32.f32 %v1091
        %v1148 = vcvt.s32.f32 %v1092
        %v1149 = vcvt.s32.f32 %v1093
        %v1150 = vcvt.s32.f32 %v1094
        %v1151 = vcvt.s32.f32 %v1095
        %v1152 = vcvt.s32.f32 %v1096
        %v1153 = vcvt.s32.f32 %v1097
        %v1154 = vcvt.s32.f32 %v1098
        %v1155 = vcvt.s32.f32 %v1099
        %v1156 = vcvt.s32.f32 %v1100
        %v1157 = vcvt.s32.f32 %v1101
        %v1158 = vcvt.s32.f32 %v1102
        %v1159 = vcvt.s32.f32 %v1103
        %v1160 = vcvt.s32.f32 %v1104
        %v1161 = vcvt.s32.f32 %v1105
        %v1162 = vcvt.s32.f32 %v1106
        %vm1163 = vcmask 523264
        %v1165 = vsel %vm1163, %v823, 0
        %1167 = vmatprep.subr.mxu0 0.0
        %1168 = vmatpush1.msra.mxu0 %v1107
        %1169 = vmatprep.subr.mxu0 0.0
        %1170 = vmatpush1.msra.mxu0 %v1108
        %1171 = vmatprep.subr.mxu0 0.0
        %1172 = vmatpush1.msra.mxu0 %v1109
        %1173 = vmatprep.subr.mxu0 0.0
        %1174 = vmatpush1.msra.mxu0 %v1110
        %1175 = vmatprep.subr.mxu0 0.0
        %1176 = vmatpush1.msra.mxu0 %v1111
        %1177 = vmatprep.subr.mxu0 0.0
        %1178 = vmatpush1.msra.mxu0 %v1112
        %1179 = vmatprep.subr.mxu0 0.0
        %1180 = vmatpush1.msra.mxu0 %v1113
        %1181 = vmatprep.subr.mxu0 0.0
        %1182 = vmatpush1.msra.mxu0 %v1114
        %1183 = vmatprep.subr.mxu0 0.0
        %1184 = vmatpush1.msra.mxu0 %v1115
        %1185 = vmatprep.subr.mxu0 0.0
        %1186 = vmatpush1.msra.mxu0 %v1116
        %1187 = vmatprep.subr.mxu0 0.0
        %1188 = vmatpush1.msra.mxu0 %v1117
        %1189 = vmatprep.subr.mxu0 0.0
        %1190 = vmatpush1.msra.mxu0 %v1118
        %1191 = vmatprep.subr.mxu0 0.0
        %1192 = vmatpush1.msra.mxu0 %v1119
        %1193 = vmatprep.subr.mxu0 0.0
        %1194 = vmatpush1.msra.mxu0 %v1120
        %1195 = vmatprep.subr.mxu0 0.0
        %1196 = vmatpush1.msra.mxu0 %v1121
        %1197 = vmatprep.subr.mxu0 0.0
        %1198 = vmatpush1.msra.mxu0 %v1122
        %1199 = vmatprep.subr.mxu0 0.0
        %1200 = vmatpush1.msra.mxu0 %v1123
        %1201 = vmatprep.subr.mxu0 0.0
        %1202 = vmatpush1.msra.mxu0 %v1124
        %1203 = vmatprep.subr.mxu0 0.0
        %1204 = vmatpush1.msra.mxu0 %v1125
        %1205 = vmatprep.subr.mxu0 0.0
        %1206 = vmatpush1.msra.mxu0 %v1126
        %1207 = vmatprep.subr.mxu0 0.0
        %1208 = vmatpush1.msra.mxu0 %v1127
        %1209 = vmatprep.subr.mxu0 0.0
        %1210 = vmatpush1.msra.mxu0 %v1128
        %1211 = vmatprep.subr.mxu0 0.0
        %1212 = vmatpush1.msra.mxu0 %v1129
        %1213 = vmatprep.subr.mxu0 0.0
        %1214 = vmatpush1.msra.mxu0 %v1130
        %1215 = vmatprep.subr.mxu0 0.0
        %1216 = vmatpush1.msra.mxu0 %v1131
        %1217 = vmatprep.subr.mxu0 0.0
        %1218 = vmatpush1.msra.mxu0 %v1132
        %1219 = vmatprep.subr.mxu0 0.0
        %1220 = vmatpush1.msra.mxu0 %v1133
        %1221 = vmatprep.subr.mxu0 0.0
        %1222 = vmatpush1.msra.mxu0 %v1134
        %1223 = vmatprep.subr.mxu0 0.0
        %1224 = vmatpush1.msra.mxu0 %v1135
        %1225 = vmatprep.subr.mxu0 0.0
        %1226 = vmatpush1.msra.mxu0 %v1136
        %1227 = vmatprep.subr.mxu0 0.0
        %1228 = vmatpush1.msra.mxu0 %v1137
        %1229 = vmatprep.subr.mxu0 0.0
        %1230 = vmatpush1.msra.mxu0 %v1138
        %1231 = vmatprep.mubr.f32.mxu0 %v821
        %1232 = vmatmul.mubr.f32.gmra.mrb[0].mxu0 %v820
        %v1233 = vpop.f32.mrb[0].mxu0
        %v1234 = vadd.f32 0.0, %v1233
        %v1235 = vpop.f32.mrb[0].mxu0
        %1236 = vdwg.mxu0
        %1237 = vmatprep.subr.mxu0 0.0
        %1238 = vmatpush1.msra.mxu0 %v1139
        %1239 = vmatprep.subr.mxu0 0.0
        %1240 = vmatpush1.msra.mxu0 %v1140
        %1241 = vmatprep.subr.mxu0 0.0
        %1242 = vmatpush1.msra.mxu0 %v1141
        %1243 = vmatprep.subr.mxu0 0.0
        %1244 = vmatpush1.msra.mxu0 %v1142
        %1245 = vmatprep.subr.mxu0 0.0
        %1246 = vmatpush1.msra.mxu0 %v1143
        %1247 = vmatprep.subr.mxu0 0.0
        %1248 = vmatpush1.msra.mxu0 %v1144
        %1249 = vmatprep.subr.mxu0 0.0
        %1250 = vmatpush1.msra.mxu0 %v1145
        %1251 = vmatprep.subr.mxu0 0.0
        %1252 = vmatpush1.msra.mxu0 %v1146
        %1253 = vmatprep.subr.mxu0 0.0
        %1254 = vmatpush1.msra.mxu0 %v1147
        %1255 = vmatprep.subr.mxu0 0.0
        %1256 = vmatpush1.msra.mxu0 %v1148
        %1257 = vmatprep.subr.mxu0 0.0
        %1258 = vmatpush1.msra.mxu0 %v1149
        %1259 = vmatprep.subr.mxu0 0.0
        %1260 = vmatpush1.msra.mxu0 %v1150
        %1261 = vmatprep.subr.mxu0 0.0
        %1262 = vmatpush1.msra.mxu0 %v1151
        %1263 = vmatprep.subr.mxu0 0.0
        %1264 = vmatpush1.msra.mxu0 %v1152
        %1265 = vmatprep.subr.mxu0 0.0
        %1266 = vmatpush1.msra.mxu0 %v1153
        %1267 = vmatprep.subr.mxu0 0.0
        %1268 = vmatpush1.msra.mxu0 %v1154
        %1269 = vmatprep.subr.mxu0 0.0
        %1270 = vmatpush1.msra.mxu0 %v1155
        %1271 = vmatprep.subr.mxu0 0.0
        %1272 = vmatpush1.msra.mxu0 %v1156
        %1273 = vmatprep.subr.mxu0 0.0
        %1274 = vmatpush1.msra.mxu0 %v1157
        %1275 = vmatprep.subr.mxu0 0.0
        %1276 = vmatpush1.msra.mxu0 %v1158
        %1277 = vmatprep.subr.mxu0 0.0
        %1278 = vmatpush1.msra.mxu0 %v1159
        %1279 = vmatprep.subr.mxu0 0.0
        %1280 = vmatpush1.msra.mxu0 %v1160
        %1281 = vmatprep.subr.mxu0 0.0
        %1282 = vmatpush1.msra.mxu0 %v1161
        %1283 = vmatprep.subr.mxu0 0.0
        %1284 = vmatpush1.msra.mxu0 %v1162
        %1285 = vmatprep.subr.mxu0 0.0
        %1286 = vmatpush1.msra.mxu0 0.0
        %1287 = vmatprep.subr.mxu0 0.0
        %1288 = vmatpush1.msra.mxu0 0.0
        %1289 = vmatprep.subr.mxu0 0.0
        %1290 = vmatpush1.msra.mxu0 0.0
        %1291 = vmatprep.subr.mxu0 0.0
        %1292 = vmatpush1.msra.mxu0 0.0
        %1293 = vmatprep.subr.mxu0 0.0
        %1294 = vmatpush1.msra.mxu0 0.0
        %1295 = vmatprep.subr.mxu0 0.0
        %1296 = vmatpush1.msra.mxu0 0.0
        %1297 = vmatprep.subr.mxu0 0.0
        %1298 = vmatpush1.msra.mxu0 0.0
        %1299 = vmatprep.subr.mxu0 0.0
        %1300 = vmatpush1.msra.mxu0 0.0
        %1301 = vmatprep.mubr.f32.mxu0 %v1165
        %1302 = vmatmul.mubr.f32.gmra.mrb[0].mxu0 %v822
        %v1303 = vpop.f32.mrb[0].mxu0
        %v1304 = vadd.f32 %v1234, %v1303
        %v1305 = vpop.f32.mrb[0].mxu0
        %1306 = vdwg.mxu0
        %1308 = vrot.lane.b32.xlu0 %v1304, 3
        %v1309 = vpop.permute.xlu0 %1308
        %vm1311 = vcmask 89112
        %1312 = vst.msk [vmem:[%s297] sm:$0xff] %vm1311, %v1309
        %v1313 = vmul.f32 %v335, 0.125
        %v1314 = vmax.f32 %v1313, 0.0
        %v1315 = vmin.f32 %v1314, 27.0
        %v1316 = vmul.f32 %v344, 0.125
        %v1317 = vmax.f32 %v1316, 0.0
        %v1318 = vmin.f32 %v1317, 27.0
        %v1319 = vfloor.f32 %v1315
        %v1320 = vceil.f32 %v1315
        %v1321 = vfloor.f32 %v1318
        %v1322 = vceil.f32 %v1318
        %v1323 = vsub.f32 %v1320, %v1315
        %v1324 = vsub.f32 %v1315, %v1319
        %v1325 = vsub.f32 %v1322, %v1318
        %v1326 = vsub.f32 %v1318, %v1321
        %v1327 = vcvt.f32.s32.to.zero.pseudo %v1319
        %v1328 = vcvt.f32.s32.to.zero.pseudo %v1320
        %v1329 = vcvt.f32.s32.to.zero.pseudo %v1321
        %v1330 = vcvt.f32.s32.to.zero.pseudo %v1322
        %1331 = vset.pattern.permute.xlu0 0
        %1332 = vperm.xlu0 %1331, %v1329
        %v1333 = vpop.permute.xlu0 %1332
        %vm1334 = vcmp.eq.s32.totalorder %v364, %v1333
        %1336 = vset.pattern.permute.xlu0 0
        %1337 = vperm.xlu0 %1336, %v1325
        %v1338 = vpop.permute.xlu0 %1337
        %v1340 = vsel %vm1334, %v1338, 0.0
        %1341 = vset.pattern.permute.xlu0 0
        %1342 = vperm.xlu0 %1341, %v1330
        %v1343 = vpop.permute.xlu0 %1342
        %vm1344 = vcmp.eq.s32.totalorder %v364, %v1343
        %1346 = vset.pattern.permute.xlu0 0
        %1347 = vperm.xlu0 %1346, %v1326
        %v1348 = vpop.permute.xlu0 %1347
        %v1350 = vsel %vm1344, %v1348, 0.0
        %v1351 = vadd.f32 %v1340, %v1350
        %v1352 = vld [vmem:[%s314] sm:$0xff]
        %v1353 = vld [vmem:[%s314 + $0x8] sm:$0xff]
        %v1354 = vld [vmem:[%s314 + $0x10] sm:$0xff]
        %v1355 = vld [vmem:[%s314 + $0x18] sm:$0xff]
        %v1356 = vld [vmem:[%s314 + $0x20] sm:$0xff]
        %v1357 = vld [vmem:[%s314 + $0x28] sm:$0xff]
        %v1358 = vld [vmem:[%s314 + $0x30] sm:$0xff]
        %v1359 = vld [vmem:[%s314 + $0x38] sm:$0xff]
        %v1360 = vld [vmem:[%s314 + $0x40] sm:$0xff]
        %v1361 = vld [vmem:[%s314 + $0x48] sm:$0xff]
        %v1362 = vld [vmem:[%s314 + $0x50] sm:$0xff]
        %v1363 = vld [vmem:[%s314 + $0x58] sm:$0xff]
        %v1364 = vld [vmem:[%s314 + $0x60] sm:$0xff]
        %v1365 = vld [vmem:[%s314 + $0x68] sm:$0xff]
        %v1366 = vld [vmem:[%s314 + $0x70] sm:$0xff]
        %v1367 = vld [vmem:[%s314 + $0x78] sm:$0xff]
        %v1368 = vld [vmem:[%s314 + $0x80] sm:$0xff]
        %v1369 = vld [vmem:[%s314 + $0x88] sm:$0xff]
        %v1370 = vld [vmem:[%s314 + $0x90] sm:$0xff]
        %v1371 = vld [vmem:[%s314 + $0x98] sm:$0xff]
        %v1372 = vld [vmem:[%s314 + $0xa0] sm:$0xff]
        %v1373 = vld [vmem:[%s314 + $0xa8] sm:$0xff]
        %v1374 = vld [vmem:[%s314 + $0xb0] sm:$0xff]
        %v1375 = vld [vmem:[%s314 + $0xb8] sm:$0xff]
        %v1376 = vld [vmem:[%s314 + $0xc0] sm:$0xff]
        %v1377 = vld [vmem:[%s314 + $0xc8] sm:$0xff]
        %v1378 = vld [vmem:[%s314 + $0xd0] sm:$0xff]
        %v1379 = vld [vmem:[%s314 + $0xd8] sm:$0xff]
        %v1380 = vld [vmem:[%s314 + $0xe0] sm:$0xff]
        %v1381 = vld [vmem:[%s314 + $0xe8] sm:$0xff]
        %v1382 = vld [vmem:[%s314 + $0xf0] sm:$0xff]
        %v1383 = vld [vmem:[%s314 + $0xf8] sm:$0xff]
        %v1384 = vld [vmem:[%s314 + $0x100] sm:$0xff]
        %v1385 = vld [vmem:[%s314 + $0x108] sm:$0xff]
        %v1386 = vld [vmem:[%s314 + $0x110] sm:$0xff]
        %v1387 = vld [vmem:[%s314 + $0x118] sm:$0xff]
        %v1388 = vld [vmem:[%s314 + $0x120] sm:$0xff]
        %v1389 = vld [vmem:[%s314 + $0x128] sm:$0xff]
        %v1390 = vld [vmem:[%s314 + $0x130] sm:$0xff]
        %v1391 = vld [vmem:[%s314 + $0x138] sm:$0xff]
        %v1392 = vld [vmem:[%s314 + $0x140] sm:$0xff]
        %v1393 = vld [vmem:[%s314 + $0x148] sm:$0xff]
        %v1394 = vld [vmem:[%s314 + $0x150] sm:$0xff]
        %v1395 = vld [vmem:[%s314 + $0x158] sm:$0xff]
        %v1396 = vld [vmem:[%s314 + $0x160] sm:$0xff]
        %v1397 = vld [vmem:[%s314 + $0x168] sm:$0xff]
        %v1398 = vld [vmem:[%s314 + $0x170] sm:$0xff]
        %v1399 = vld [vmem:[%s314 + $0x178] sm:$0xff]
        %v1400 = vld [vmem:[%s314 + $0x180] sm:$0xff]
        %v1401 = vld [vmem:[%s314 + $0x188] sm:$0xff]
        %v1402 = vld [vmem:[%s314 + $0x190] sm:$0xff]
        %v1403 = vld [vmem:[%s314 + $0x198] sm:$0xff]
        %v1404 = vld [vmem:[%s314 + $0x1a0] sm:$0xff]
        %v1405 = vld [vmem:[%s314 + $0x1a8] sm:$0xff]
        %v1406 = vld [vmem:[%s314 + $0x1b0] sm:$0xff]
        %v1407 = vld [vmem:[%s314 + $0x1b8] sm:$0xff]
        %vm1408 = vcmask 228352
        %v1410 = vsel %vm1408, %v1351, 0
        %v1413 = vsel %vm1408, %v1352, 0
        %v1416 = vsel %vm1408, %v1353, 0
        %v1419 = vsel %vm1408, %v1354, 0
        %v1422 = vsel %vm1408, %v1355, 0
        %v1425 = vsel %vm1408, %v1356, 0
        %v1428 = vsel %vm1408, %v1357, 0
        %v1431 = vsel %vm1408, %v1358, 0
        %v1434 = vsel %vm1408, %v1359, 0
        %v1437 = vsel %vm1408, %v1360, 0
        %v1440 = vsel %vm1408, %v1361, 0
        %v1443 = vsel %vm1408, %v1362, 0
        %v1446 = vsel %vm1408, %v1363, 0
        %v1449 = vsel %vm1408, %v1364, 0
        %v1452 = vsel %vm1408, %v1365, 0
        %v1455 = vsel %vm1408, %v1366, 0
        %v1458 = vsel %vm1408, %v1367, 0
        %v1461 = vsel %vm1408, %v1368, 0
        %v1464 = vsel %vm1408, %v1369, 0
        %v1467 = vsel %vm1408, %v1370, 0
        %v1470 = vsel %vm1408, %v1371, 0
        %v1473 = vsel %vm1408, %v1372, 0
        %v1476 = vsel %vm1408, %v1373, 0
        %v1479 = vsel %vm1408, %v1374, 0
        %v1482 = vsel %vm1408, %v1375, 0
        %v1485 = vsel %vm1408, %v1376, 0
        %v1488 = vsel %vm1408, %v1377, 0
        %v1491 = vsel %vm1408, %v1378, 0
        %v1494 = vsel %vm1408, %v1379, 0
        %v1497 = vsel %vm1408, %v1380, 0
        %v1500 = vsel %vm1408, %v1381, 0
        %v1503 = vsel %vm1408, %v1382, 0
        %v1506 = vsel %vm1408, %v1383, 0
        %v1509 = vsel %vm1408, %v1384, 0
        %v1512 = vsel %vm1408, %v1385, 0
        %v1515 = vsel %vm1408, %v1386, 0
        %v1518 = vsel %vm1408, %v1387, 0
        %v1521 = vsel %vm1408, %v1388, 0
        %v1524 = vsel %vm1408, %v1389, 0
        %v1527 = vsel %vm1408, %v1390, 0
        %v1530 = vsel %vm1408, %v1391, 0
        %v1533 = vsel %vm1408, %v1392, 0
        %v1536 = vsel %vm1408, %v1393, 0
        %v1539 = vsel %vm1408, %v1394, 0
        %v1542 = vsel %vm1408, %v1395, 0
        %v1545 = vsel %vm1408, %v1396, 0
        %v1548 = vsel %vm1408, %v1397, 0
        %v1551 = vsel %vm1408, %v1398, 0
        %v1554 = vsel %vm1408, %v1399, 0
        %v1557 = vsel %vm1408, %v1400, 0
        %v1560 = vsel %vm1408, %v1401, 0
        %v1563 = vsel %vm1408, %v1402, 0
        %v1566 = vsel %vm1408, %v1403, 0
        %v1569 = vsel %vm1408, %v1404, 0
        %v1572 = vsel %vm1408, %v1405, 0
        %v1575 = vsel %vm1408, %v1406, 0
        %v1578 = vsel %vm1408, %v1407, 0
        %1580 = vmatprep.subr.mxu0 0.0
        %1581 = vmatpush1.xpose.msra.mxu0 %v1413
        %1582 = vmatprep.subr.mxu0 0.0
        %1583 = vmatpush1.xpose.msra.mxu0 %v1416
        %1584 = vmatprep.subr.mxu0 0.0
        %1585 = vmatpush1.xpose.msra.mxu0 %v1419
        %1586 = vmatprep.subr.mxu0 0.0
        %1587 = vmatpush1.xpose.msra.mxu0 %v1422
        %1588 = vmatprep.subr.mxu0 0.0
        %1589 = vmatpush1.xpose.msra.mxu0 %v1425
        %1590 = vmatprep.subr.mxu0 0.0
        %1591 = vmatpush1.xpose.msra.mxu0 %v1428
        %1592 = vmatprep.subr.mxu0 0.0
        %1593 = vmatpush1.xpose.msra.mxu0 %v1431
        %1594 = vmatprep.subr.mxu0 0.0
        %1595 = vmatpush1.xpose.msra.mxu0 %v1434
        %1596 = vmatprep.subr.mxu0 0.0
        %1597 = vmatpush1.xpose.msra.mxu0 %v1437
        %1598 = vmatprep.subr.mxu0 0.0
        %1599 = vmatpush1.xpose.msra.mxu0 %v1440
        %1600 = vmatprep.subr.mxu0 0.0
        %1601 = vmatpush1.xpose.msra.mxu0 %v1443
        %1602 = vmatprep.subr.mxu0 0.0
        %1603 = vmatpush1.xpose.msra.mxu0 %v1446
        %1604 = vmatprep.subr.mxu0 0.0
        %1605 = vmatpush1.xpose.msra.mxu0 %v1449
        %1606 = vmatprep.subr.mxu0 0.0
        %1607 = vmatpush1.xpose.msra.mxu0 %v1452
        %1608 = vmatprep.subr.mxu0 0.0
        %1609 = vmatpush1.xpose.msra.mxu0 %v1455
        %1610 = vmatprep.subr.mxu0 0.0
        %1611 = vmatpush1.xpose.msra.mxu0 %v1458
        %1612 = vmatprep.subr.mxu0 0.0
        %1613 = vmatpush1.xpose.msra.mxu0 %v1461
        %1614 = vmatprep.subr.mxu0 0.0
        %1615 = vmatpush1.xpose.msra.mxu0 %v1464
        %1616 = vmatprep.subr.mxu0 0.0
        %1617 = vmatpush1.xpose.msra.mxu0 %v1467
        %1618 = vmatprep.subr.mxu0 0.0
        %1619 = vmatpush1.xpose.msra.mxu0 %v1470
        %1620 = vmatprep.subr.mxu0 0.0
        %1621 = vmatpush1.xpose.msra.mxu0 %v1473
        %1622 = vmatprep.subr.mxu0 0.0
        %1623 = vmatpush1.xpose.msra.mxu0 %v1476
        %1624 = vmatprep.subr.mxu0 0.0
        %1625 = vmatpush1.xpose.msra.mxu0 %v1479
        %1626 = vmatprep.subr.mxu0 0.0
        %1627 = vmatpush1.xpose.msra.mxu0 %v1482
        %1628 = vmatprep.subr.mxu0 0.0
        %1629 = vmatpush1.xpose.msra.mxu0 %v1485
        %1630 = vmatprep.subr.mxu0 0.0
        %1631 = vmatpush1.xpose.msra.mxu0 %v1488
        %1632 = vmatprep.subr.mxu0 0.0
        %1633 = vmatpush1.xpose.msra.mxu0 %v1491
        %1634 = vmatprep.subr.mxu0 0.0
        %1635 = vmatpush1.xpose.msra.mxu0 %v1494
        %1636 = vmatprep.subr.mxu0 0.0
        %1637 = vmatpush1.xpose.msra.mxu0 %v1497
        %1638 = vmatprep.subr.mxu0 0.0
        %1639 = vmatpush1.xpose.msra.mxu0 %v1500
        %1640 = vmatprep.subr.mxu0 0.0
        %1641 = vmatpush1.xpose.msra.mxu0 %v1503
        %1642 = vmatprep.subr.mxu0 0.0
        %1643 = vmatpush1.xpose.msra.mxu0 %v1506
        %1644 = vmatprep.mubr.f32.mxu0 0.0
        %1645 = vmatmul.mubr.f32.gmra.mrb[0].mxu0 %v1410
        %v1646 = vpop.f32.mrb[0].mxu0
        %v1647 = vadd.f32 0.0, %v1646
        %v1648 = vpop.f32.mrb[0].mxu0
        %v1649 = vadd.f32 0.0, %v1648
        %1650 = vdwg.mxu0
        %1651 = vmatprep.subr.mxu0 0.0
        %1652 = vmatpush1.xpose.msra.mxu0 %v1509
        %1653 = vmatprep.subr.mxu0 0.0
        %1654 = vmatpush1.xpose.msra.mxu0 %v1512
        %1655 = vmatprep.subr.mxu0 0.0
        %1656 = vmatpush1.xpose.msra.mxu0 %v1515
        %1657 = vmatprep.subr.mxu0 0.0
        %1658 = vmatpush1.xpose.msra.mxu0 %v1518
        %1659 = vmatprep.subr.mxu0 0.0
        %1660 = vmatpush1.xpose.msra.mxu0 %v1521
        %1661 = vmatprep.subr.mxu0 0.0
        %1662 = vmatpush1.xpose.msra.mxu0 %v1524
        %1663 = vmatprep.subr.mxu0 0.0
        %1664 = vmatpush1.xpose.msra.mxu0 %v1527
        %1665 = vmatprep.subr.mxu0 0.0
        %1666 = vmatpush1.xpose.msra.mxu0 %v1530
        %1667 = vmatprep.subr.mxu0 0.0
        %1668 = vmatpush1.xpose.msra.mxu0 %v1533
        %1669 = vmatprep.subr.mxu0 0.0
        %1670 = vmatpush1.xpose.msra.mxu0 %v1536
        %1671 = vmatprep.subr.mxu0 0.0
        %1672 = vmatpush1.xpose.msra.mxu0 %v1539
        %1673 = vmatprep.subr.mxu0 0.0
        %1674 = vmatpush1.xpose.msra.mxu0 %v1542
        %1675 = vmatprep.subr.mxu0 0.0
        %1676 = vmatpush1.xpose.msra.mxu0 %v1545
        %1677 = vmatprep.subr.mxu0 0.0
        %1678 = vmatpush1.xpose.msra.mxu0 %v1548
        %1679 = vmatprep.subr.mxu0 0.0
        %1680 = vmatpush1.xpose.msra.mxu0 %v1551
        %1681 = vmatprep.subr.mxu0 0.0
        %1682 = vmatpush1.xpose.msra.mxu0 %v1554
        %1683 = vmatprep.subr.mxu0 0.0
        %1684 = vmatpush1.xpose.msra.mxu0 %v1557
        %1685 = vmatprep.subr.mxu0 0.0
        %1686 = vmatpush1.xpose.msra.mxu0 %v1560
        %1687 = vmatprep.subr.mxu0 0.0
        %1688 = vmatpush1.xpose.msra.mxu0 %v1563
        %1689 = vmatprep.subr.mxu0 0.0
        %1690 = vmatpush1.xpose.msra.mxu0 %v1566
        %1691 = vmatprep.subr.mxu0 0.0
        %1692 = vmatpush1.xpose.msra.mxu0 %v1569
        %1693 = vmatprep.subr.mxu0 0.0
        %1694 = vmatpush1.xpose.msra.mxu0 %v1572
        %1695 = vmatprep.subr.mxu0 0.0
        %1696 = vmatpush1.xpose.msra.mxu0 %v1575
        %1697 = vmatprep.subr.mxu0 0.0
        %1698 = vmatpush1.xpose.msra.mxu0 %v1578
        %1699 = vmatprep.subr.mxu0 0.0
        %1700 = vmatpush1.xpose.msra.mxu0 0.0
        %1701 = vmatprep.subr.mxu0 0.0
        %1702 = vmatpush1.xpose.msra.mxu0 0.0
        %1703 = vmatprep.subr.mxu0 0.0
        %1704 = vmatpush1.xpose.msra.mxu0 0.0
        %1705 = vmatprep.subr.mxu0 0.0
        %1706 = vmatpush1.xpose.msra.mxu0 0.0
        %1707 = vmatprep.subr.mxu0 0.0
        %1708 = vmatpush1.xpose.msra.mxu0 0.0
        %1709 = vmatprep.subr.mxu0 0.0
        %1710 = vmatpush1.xpose.msra.mxu0 0.0
        %1711 = vmatprep.subr.mxu0 0.0
        %1712 = vmatpush1.xpose.msra.mxu0 0.0
        %1713 = vmatprep.subr.mxu0 0.0
        %1714 = vmatpush1.xpose.msra.mxu0 0.0
        %1715 = vmatprep.mubr.f32.mxu0 0.0
        %1716 = vmatmul.mubr.f32.gmra.mrb[0].mxu0 %v1410
        %v1717 = vpop.f32.mrb[0].mxu0
        %v1718 = vadd.f32 0.0, %v1717
        %v1719 = vpop.f32.mrb[0].mxu0
        %v1720 = vadd.f32 0.0, %v1719
        %1721 = vdwg.mxu0
        %v1722 = vrcp.pop 28.0
        %v1723 = vmul.f32 %v759, %v1722
        %v1724 = vmul.f32 %v760, %v1722
        %v1725 = vmul.f32 %v761, %v1722
        %v1726 = vmul.f32 %v762, %v1722
        %v1727 = vfloor.f32 %v1723
        %v1728 = vfloor.f32 %v1724
        %v1729 = vfloor.f32 %v1725
        %v1730 = vfloor.f32 %v1726
        %v1731 = vmul.f32 %v1727, 28.0
        %v1732 = vmul.f32 %v1728, 28.0
        %v1733 = vmul.f32 %v1729, 28.0
        %v1734 = vmul.f32 %v1730, 28.0
        %v1735 = vsub.f32 %v759, %v1731
        %v1736 = vsub.f32 %v760, %v1732
        %v1737 = vsub.f32 %v761, %v1733
        %v1738 = vsub.f32 %v762, %v1734
        %v1739 = vcvt.f32.s32.to.zero.pseudo %v1735
        %v1740 = vcvt.f32.s32.to.zero.pseudo %v1736
        %v1741 = vcvt.f32.s32.to.zero.pseudo %v1737
        %v1742 = vcvt.f32.s32.to.zero.pseudo %v1738
        %1743 = vset.pattern.permute.xlu0 1
        %1744 = vperm.xlu0 %1743, %v1327
        %v1745 = vpop.permute.xlu0 %1744
        %vm1746 = vcmp.eq.s32.totalorder %v1739, %v1745
        %vm1747 = vcmp.eq.s32.totalorder %v1740, %v1745
        %vm1748 = vcmp.eq.s32.totalorder %v1741, %v1745
        %vm1749 = vcmp.eq.s32.totalorder %v1742, %v1745
        %1751 = vset.pattern.permute.xlu0 1
        %1752 = vperm.xlu0 %1751, %v1323
        %v1753 = vpop.permute.xlu0 %1752
        %v1755 = vsel %vm1746, %v1753, 0.0
        %v1756 = vsel %vm1747, %v1753, 0.0
        %v1757 = vsel %vm1748, %v1753, 0.0
        %v1758 = vsel %vm1749, %v1753, 0.0
        %1759 = vset.pattern.permute.xlu0 1
        %1760 = vperm.xlu0 %1759, %v1328
        %v1761 = vpop.permute.xlu0 %1760
        %vm1762 = vcmp.eq.s32.totalorder %v1739, %v1761
        %vm1763 = vcmp.eq.s32.totalorder %v1740, %v1761
        %vm1764 = vcmp.eq.s32.totalorder %v1741, %v1761
        %vm1765 = vcmp.eq.s32.totalorder %v1742, %v1761
        %1767 = vset.pattern.permute.xlu0 1
        %1768 = vperm.xlu0 %1767, %v1324
        %v1769 = vpop.permute.xlu0 %1768
        %v1771 = vsel %vm1762, %v1769, 0.0
        %v1772 = vsel %vm1763, %v1769, 0.0
        %v1773 = vsel %vm1764, %v1769, 0.0
        %v1774 = vsel %vm1765, %v1769, 0.0
        %v1775 = vadd.f32 %v1755, %v1771
        %v1776 = vadd.f32 %v1756, %v1772
        %v1777 = vadd.f32 %v1757, %v1773
        %v1778 = vadd.f32 %v1758, %v1774
        %v1779 = vmul.f32 %v1647, %v1775
        %v1780 = vmul.f32 %v1649, %v1776
        %v1781 = vmul.f32 %v1718, %v1777
        %v1782 = vmul.f32 %v1720, %v1778
        %v1783 = vmul.u32 %v364, 28
        %vm1784 = vcmp.ge.s32.totalorder %v825, %v1783
        %vm1785 = vcmp.ge.s32.totalorder %v826, %v1783
        %vm1786 = vcmp.ge.s32.totalorder %v827, %v1783
        %vm1787 = vcmp.ge.s32.totalorder %v828, %v1783
        %vm1788 = vcmp.ge.s32.totalorder %v829, %v1783
        %vm1789 = vcmp.ge.s32.totalorder %v830, %v1783
        %vm1790 = vcmp.ge.s32.totalorder %v831, %v1783
        %vm1791 = vcmp.ge.s32.totalorder %v832, %v1783
        %vm1792 = vcmp.ge.s32.totalorder %v833, %v1783
        %vm1793 = vcmp.ge.s32.totalorder %v834, %v1783
        %vm1794 = vcmp.ge.s32.totalorder %v835, %v1783
        %vm1795 = vcmp.ge.s32.totalorder %v836, %v1783
        %vm1796 = vcmp.ge.s32.totalorder %v837, %v1783
        %vm1797 = vcmp.ge.s32.totalorder %v838, %v1783
        %vm1798 = vcmp.ge.s32.totalorder %v839, %v1783
        %vm1799 = vcmp.ge.s32.totalorder %v840, %v1783
        %vm1800 = vcmp.ge.s32.totalorder %v841, %v1783
        %vm1801 = vcmp.ge.s32.totalorder %v842, %v1783
        %vm1802 = vcmp.ge.s32.totalorder %v843, %v1783
        %vm1803 = vcmp.ge.s32.totalorder %v844, %v1783
        %vm1804 = vcmp.ge.s32.totalorder %v845, %v1783
        %vm1805 = vcmp.ge.s32.totalorder %v846, %v1783
        %vm1806 = vcmp.ge.s32.totalorder %v847, %v1783
        %vm1807 = vcmp.ge.s32.totalorder %v848, %v1783
        %vm1808 = vcmp.ge.s32.totalorder %v849, %v1783
        %vm1809 = vcmp.ge.s32.totalorder %v850, %v1783
        %vm1810 = vcmp.ge.s32.totalorder %v851, %v1783
        %vm1811 = vcmp.ge.s32.totalorder %v852, %v1783
        %vm1812 = vcmp.ge.s32.totalorder %v853, %v1783
        %vm1813 = vcmp.ge.s32.totalorder %v854, %v1783
        %vm1814 = vcmp.ge.s32.totalorder %v855, %v1783
        %vm1815 = vcmp.ge.s32.totalorder %v856, %v1783
        %vm1816 = vcmp.ge.s32.totalorder %v857, %v1783
        %vm1817 = vcmp.ge.s32.totalorder %v858, %v1783
        %vm1818 = vcmp.ge.s32.totalorder %v859, %v1783
        %vm1819 = vcmp.ge.s32.totalorder %v860, %v1783
        %vm1820 = vcmp.ge.s32.totalorder %v861, %v1783
        %vm1821 = vcmp.ge.s32.totalorder %v862, %v1783
        %vm1822 = vcmp.ge.s32.totalorder %v863, %v1783
        %vm1823 = vcmp.ge.s32.totalorder %v864, %v1783
        %vm1824 = vcmp.ge.s32.totalorder %v865, %v1783
        %vm1825 = vcmp.ge.s32.totalorder %v866, %v1783
        %vm1826 = vcmp.ge.s32.totalorder %v867, %v1783
        %vm1827 = vcmp.ge.s32.totalorder %v868, %v1783
        %vm1828 = vcmp.ge.s32.totalorder %v869, %v1783
        %vm1829 = vcmp.ge.s32.totalorder %v870, %v1783
        %vm1830 = vcmp.ge.s32.totalorder %v871, %v1783
        %vm1831 = vcmp.ge.s32.totalorder %v872, %v1783
        %vm1832 = vcmp.ge.s32.totalorder %v873, %v1783
        %vm1833 = vcmp.ge.s32.totalorder %v874, %v1783
        %vm1834 = vcmp.ge.s32.totalorder %v875, %v1783
        %vm1835 = vcmp.ge.s32.totalorder %v876, %v1783
        %vm1836 = vcmp.ge.s32.totalorder %v877, %v1783
        %vm1837 = vcmp.ge.s32.totalorder %v878, %v1783
        %vm1838 = vcmp.ge.s32.totalorder %v879, %v1783
        %vm1839 = vcmp.ge.s32.totalorder %v880, %v1783
        %v1840 = vadd.s32 %v1783, 28
        %vm1841 = vcmp.lt.s32.totalorder %v825, %v1840
        %vm1842 = vcmp.lt.s32.totalorder %v826, %v1840
        %vm1843 = vcmp.lt.s32.totalorder %v827, %v1840
        %vm1844 = vcmp.lt.s32.totalorder %v828, %v1840
        %vm1845 = vcmp.lt.s32.totalorder %v829, %v1840
        %vm1846 = vcmp.lt.s32.totalorder %v830, %v1840
        %vm1847 = vcmp.lt.s32.totalorder %v831, %v1840
        %vm1848 = vcmp.lt.s32.totalorder %v832, %v1840
        %vm1849 = vcmp.lt.s32.totalorder %v833, %v1840
        %vm1850 = vcmp.lt.s32.totalorder %v834, %v1840
        %vm1851 = vcmp.lt.s32.totalorder %v835, %v1840
        %vm1852 = vcmp.lt.s32.totalorder %v836, %v1840
        %vm1853 = vcmp.lt.s32.totalorder %v837, %v1840
        %vm1854 = vcmp.lt.s32.totalorder %v838, %v1840
        %vm1855 = vcmp.lt.s32.totalorder %v839, %v1840
        %vm1856 = vcmp.lt.s32.totalorder %v840, %v1840
        %vm1857 = vcmp.lt.s32.totalorder %v841, %v1840
        %vm1858 = vcmp.lt.s32.totalorder %v842, %v1840
        %vm1859 = vcmp.lt.s32.totalorder %v843, %v1840
        %vm1860 = vcmp.lt.s32.totalorder %v844, %v1840
        %vm1861 = vcmp.lt.s32.totalorder %v845, %v1840
        %vm1862 = vcmp.lt.s32.totalorder %v846, %v1840
        %vm1863 = vcmp.lt.s32.totalorder %v847, %v1840
        %vm1864 = vcmp.lt.s32.totalorder %v848, %v1840
        %vm1865 = vcmp.lt.s32.totalorder %v849, %v1840
        %vm1866 = vcmp.lt.s32.totalorder %v850, %v1840
        %vm1867 = vcmp.lt.s32.totalorder %v851, %v1840
        %vm1868 = vcmp.lt.s32.totalorder %v852, %v1840
        %vm1869 = vcmp.lt.s32.totalorder %v853, %v1840
        %vm1870 = vcmp.lt.s32.totalorder %v854, %v1840
        %vm1871 = vcmp.lt.s32.totalorder %v855, %v1840
        %vm1872 = vcmp.lt.s32.totalorder %v856, %v1840
        %vm1873 = vcmp.lt.s32.totalorder %v857, %v1840
        %vm1874 = vcmp.lt.s32.totalorder %v858, %v1840
        %vm1875 = vcmp.lt.s32.totalorder %v859, %v1840
        %vm1876 = vcmp.lt.s32.totalorder %v860, %v1840
        %vm1877 = vcmp.lt.s32.totalorder %v861, %v1840
        %vm1878 = vcmp.lt.s32.totalorder %v862, %v1840
        %vm1879 = vcmp.lt.s32.totalorder %v863, %v1840
        %vm1880 = vcmp.lt.s32.totalorder %v864, %v1840
        %vm1881 = vcmp.lt.s32.totalorder %v865, %v1840
        %vm1882 = vcmp.lt.s32.totalorder %v866, %v1840
        %vm1883 = vcmp.lt.s32.totalorder %v867, %v1840
        %vm1884 = vcmp.lt.s32.totalorder %v868, %v1840
        %vm1885 = vcmp.lt.s32.totalorder %v869, %v1840
        %vm1886 = vcmp.lt.s32.totalorder %v870, %v1840
        %vm1887 = vcmp.lt.s32.totalorder %v871, %v1840
        %vm1888 = vcmp.lt.s32.totalorder %v872, %v1840
        %vm1889 = vcmp.lt.s32.totalorder %v873, %v1840
        %vm1890 = vcmp.lt.s32.totalorder %v874, %v1840
        %vm1891 = vcmp.lt.s32.totalorder %v875, %v1840
        %vm1892 = vcmp.lt.s32.totalorder %v876, %v1840
        %vm1893 = vcmp.lt.s32.totalorder %v877, %v1840
        %vm1894 = vcmp.lt.s32.totalorder %v878, %v1840
        %vm1895 = vcmp.lt.s32.totalorder %v879, %v1840
        %vm1896 = vcmp.lt.s32.totalorder %v880, %v1840
        %vm1897 = vmand %vm1784, %vm1841
        %vm1898 = vmand %vm1785, %vm1842
        %vm1899 = vmand %vm1786, %vm1843
        %vm1900 = vmand %vm1787, %vm1844
        %vm1901 = vmand %vm1788, %vm1845
        %vm1902 = vmand %vm1789, %vm1846
        %vm1903 = vmand %vm1790, %vm1847
        %vm1904 = vmand %vm1791, %vm1848
        %vm1905 = vmand %vm1792, %vm1849
        %vm1906 = vmand %vm1793, %vm1850
        %vm1907 = vmand %vm1794, %vm1851
        %vm1908 = vmand %vm1795, %vm1852
        %vm1909 = vmand %vm1796, %vm1853
        %vm1910 = vmand %vm1797, %vm1854
        %vm1911 = vmand %vm1798, %vm1855
        %vm1912 = vmand %vm1799, %vm1856
        %vm1913 = vmand %vm1800, %vm1857
        %vm1914 = vmand %vm1801, %vm1858
        %vm1915 = vmand %vm1802, %vm1859
        %vm1916 = vmand %vm1803, %vm1860
        %vm1917 = vmand %vm1804, %vm1861
        %vm1918 = vmand %vm1805, %vm1862
        %vm1919 = vmand %vm1806, %vm1863
        %vm1920 = vmand %vm1807, %vm1864
        %vm1921 = vmand %vm1808, %vm1865
        %vm1922 = vmand %vm1809, %vm1866
        %vm1923 = vmand %vm1810, %vm1867
        %vm1924 = vmand %vm1811, %vm1868
        %vm1925 = vmand %vm1812, %vm1869
        %vm1926 = vmand %vm1813, %vm1870
        %vm1927 = vmand %vm1814, %vm1871
        %vm1928 = vmand %vm1815, %vm1872
        %vm1929 = vmand %vm1816, %vm1873
        %vm1930 = vmand %vm1817, %vm1874
        %vm1931 = vmand %vm1818, %vm1875
        %vm1932 = vmand %vm1819, %vm1876
        %vm1933 = vmand %vm1820, %vm1877
        %vm1934 = vmand %vm1821, %vm1878
        %vm1935 = vmand %vm1822, %vm1879
        %vm1936 = vmand %vm1823, %vm1880
        %vm1937 = vmand %vm1824, %vm1881
        %vm1938 = vmand %vm1825, %vm1882
        %vm1939 = vmand %vm1826, %vm1883
        %vm1940 = vmand %vm1827, %vm1884
        %vm1941 = vmand %vm1828, %vm1885
        %vm1942 = vmand %vm1829, %vm1886
        %vm1943 = vmand %vm1830, %vm1887
        %vm1944 = vmand %vm1831, %vm1888
        %vm1945 = vmand %vm1832, %vm1889
        %vm1946 = vmand %vm1833, %vm1890
        %vm1947 = vmand %vm1834, %vm1891
        %vm1948 = vmand %vm1835, %vm1892
        %vm1949 = vmand %vm1836, %vm1893
        %vm1950 = vmand %vm1837, %vm1894
        %vm1951 = vmand %vm1838, %vm1895
        %vm1952 = vmand %vm1839, %vm1896
        %v1953 = vsel %vm1897, 1, 0
        %v1954 = vsel %vm1898, 1, 0
        %v1955 = vsel %vm1899, 1, 0
        %v1956 = vsel %vm1900, 1, 0
        %v1957 = vsel %vm1901, 1, 0
        %v1958 = vsel %vm1902, 1, 0
        %v1959 = vsel %vm1903, 1, 0
        %v1960 = vsel %vm1904, 1, 0
        %v1961 = vsel %vm1905, 1, 0
        %v1962 = vsel %vm1906, 1, 0
        %v1963 = vsel %vm1907, 1, 0
        %v1964 = vsel %vm1908, 1, 0
        %v1965 = vsel %vm1909, 1, 0
        %v1966 = vsel %vm1910, 1, 0
        %v1967 = vsel %vm1911, 1, 0
        %v1968 = vsel %vm1912, 1, 0
        %v1969 = vsel %vm1913, 1, 0
        %v1970 = vsel %vm1914, 1, 0
        %v1971 = vsel %vm1915, 1, 0
        %v1972 = vsel %vm1916, 1, 0
        %v1973 = vsel %vm1917, 1, 0
        %v1974 = vsel %vm1918, 1, 0
        %v1975 = vsel %vm1919, 1, 0
        %v1976 = vsel %vm1920, 1, 0
        %v1977 = vsel %vm1921, 1, 0
        %v1978 = vsel %vm1922, 1, 0
        %v1979 = vsel %vm1923, 1, 0
        %v1980 = vsel %vm1924, 1, 0
        %v1981 = vsel %vm1925, 1, 0
        %v1982 = vsel %vm1926, 1, 0
        %v1983 = vsel %vm1927, 1, 0
        %v1984 = vsel %vm1928, 1, 0
        %v1985 = vsel %vm1929, 1, 0
        %v1986 = vsel %vm1930, 1, 0
        %v1987 = vsel %vm1931, 1, 0
        %v1988 = vsel %vm1932, 1, 0
        %v1989 = vsel %vm1933, 1, 0
        %v1990 = vsel %vm1934, 1, 0
        %v1991 = vsel %vm1935, 1, 0
        %v1992 = vsel %vm1936, 1, 0
        %v1993 = vsel %vm1937, 1, 0
        %v1994 = vsel %vm1938, 1, 0
        %v1995 = vsel %vm1939, 1, 0
        %v1996 = vsel %vm1940, 1, 0
        %v1997 = vsel %vm1941, 1, 0
        %v1998 = vsel %vm1942, 1, 0
        %v1999 = vsel %vm1943, 1, 0
        %v2000 = vsel %vm1944, 1, 0
        %v2001 = vsel %vm1945, 1, 0
        %v2002 = vsel %vm1946, 1, 0
        %v2003 = vsel %vm1947, 1, 0
        %v2004 = vsel %vm1948, 1, 0
        %v2005 = vsel %vm1949, 1, 0
        %v2006 = vsel %vm1950, 1, 0
        %v2007 = vsel %vm1951, 1, 0
        %v2008 = vsel %vm1952, 1, 0
        %v2009 = vcvt.s32.f32 %v1953
        %v2010 = vcvt.s32.f32 %v1954
        %v2011 = vcvt.s32.f32 %v1955
        %v2012 = vcvt.s32.f32 %v1956
        %v2013 = vcvt.s32.f32 %v1957
        %v2014 = vcvt.s32.f32 %v1958
        %v2015 = vcvt.s32.f32 %v1959
        %v2016 = vcvt.s32.f32 %v1960
        %v2017 = vcvt.s32.f32 %v1961
        %v2018 = vcvt.s32.f32 %v1962
        %v2019 = vcvt.s32.f32 %v1963
        %v2020 = vcvt.s32.f32 %v1964
        %v2021 = vcvt.s32.f32 %v1965
        %v2022 = vcvt.s32.f32 %v1966
        %v2023 = vcvt.s32.f32 %v1967
        %v2024 = vcvt.s32.f32 %v1968
        %v2025 = vcvt.s32.f32 %v1969
        %v2026 = vcvt.s32.f32 %v1970
        %v2027 = vcvt.s32.f32 %v1971
        %v2028 = vcvt.s32.f32 %v1972
        %v2029 = vcvt.s32.f32 %v1973
        %v2030 = vcvt.s32.f32 %v1974
        %v2031 = vcvt.s32.f32 %v1975
        %v2032 = vcvt.s32.f32 %v1976
        %v2033 = vcvt.s32.f32 %v1977
        %v2034 = vcvt.s32.f32 %v1978
        %v2035 = vcvt.s32.f32 %v1979
        %v2036 = vcvt.s32.f32 %v1980
        %v2037 = vcvt.s32.f32 %v1981
        %v2038 = vcvt.s32.f32 %v1982
        %v2039 = vcvt.s32.f32 %v1983
        %v2040 = vcvt.s32.f32 %v1984
        %v2041 = vcvt.s32.f32 %v1985
        %v2042 = vcvt.s32.f32 %v1986
        %v2043 = vcvt.s32.f32 %v1987
        %v2044 = vcvt.s32.f32 %v1988
        %v2045 = vcvt.s32.f32 %v1989
        %v2046 = vcvt.s32.f32 %v1990
        %v2047 = vcvt.s32.f32 %v1991
        %v2048 = vcvt.s32.f32 %v1992
        %v2049 = vcvt.s32.f32 %v1993
        %v2050 = vcvt.s32.f32 %v1994
        %v2051 = vcvt.s32.f32 %v1995
        %v2052 = vcvt.s32.f32 %v1996
        %v2053 = vcvt.s32.f32 %v1997
        %v2054 = vcvt.s32.f32 %v1998
        %v2055 = vcvt.s32.f32 %v1999
        %v2056 = vcvt.s32.f32 %v2000
        %v2057 = vcvt.s32.f32 %v2001
        %v2058 = vcvt.s32.f32 %v2002
        %v2059 = vcvt.s32.f32 %v2003
        %v2060 = vcvt.s32.f32 %v2004
        %v2061 = vcvt.s32.f32 %v2005
        %v2062 = vcvt.s32.f32 %v2006
        %v2063 = vcvt.s32.f32 %v2007
        %v2064 = vcvt.s32.f32 %v2008
        %v2066 = vsel %vm1163, %v1782, 0
        %2068 = vmatprep.subr.mxu0 0.0
        %2069 = vmatpush1.msra.mxu0 %v2009
        %2070 = vmatprep.subr.mxu0 0.0
        %2071 = vmatpush1.msra.mxu0 %v2010
        %2072 = vmatprep.subr.mxu0 0.0
        %2073 = vmatpush1.msra.mxu0 %v2011
        %2074 = vmatprep.subr.mxu0 0.0
        %2075 = vmatpush1.msra.mxu0 %v2012
        %2076 = vmatprep.subr.mxu0 0.0
        %2077 = vmatpush1.msra.mxu0 %v2013
        %2078 = vmatprep.subr.mxu0 0.0
        %2079 = vmatpush1.msra.mxu0 %v2014
        %2080 = vmatprep.subr.mxu0 0.0
        %2081 = vmatpush1.msra.mxu0 %v2015
        %2082 = vmatprep.subr.mxu0 0.0
        %2083 = vmatpush1.msra.mxu0 %v2016
        %2084 = vmatprep.subr.mxu0 0.0
        %2085 = vmatpush1.msra.mxu0 %v2017
        %2086 = vmatprep.subr.mxu0 0.0
        %2087 = vmatpush1.msra.mxu0 %v2018
        %2088 = vmatprep.subr.mxu0 0.0
        %2089 = vmatpush1.msra.mxu0 %v2019
        %2090 = vmatprep.subr.mxu0 0.0
        %2091 = vmatpush1.msra.mxu0 %v2020
        %2092 = vmatprep.subr.mxu0 0.0
        %2093 = vmatpush1.msra.mxu0 %v2021
        %2094 = vmatprep.subr.mxu0 0.0
        %2095 = vmatpush1.msra.mxu0 %v2022
        %2096 = vmatprep.subr.mxu0 0.0
        %2097 = vmatpush1.msra.mxu0 %v2023
        %2098 = vmatprep.subr.mxu0 0.0
        %2099 = vmatpush1.msra.mxu0 %v2024
        %2100 = vmatprep.subr.mxu0 0.0
        %2101 = vmatpush1.msra.mxu0 %v2025
        %2102 = vmatprep.subr.mxu0 0.0
        %2103 = vmatpush1.msra.mxu0 %v2026
        %2104 = vmatprep.subr.mxu0 0.0
        %2105 = vmatpush1.msra.mxu0 %v2027
        %2106 = vmatprep.subr.mxu0 0.0
        %2107 = vmatpush1.msra.mxu0 %v2028
        %2108 = vmatprep.subr.mxu0 0.0
        %2109 = vmatpush1.msra.mxu0 %v2029
        %2110 = vmatprep.subr.mxu0 0.0
        %2111 = vmatpush1.msra.mxu0 %v2030
        %2112 = vmatprep.subr.mxu0 0.0
        %2113 = vmatpush1.msra.mxu0 %v2031
        %2114 = vmatprep.subr.mxu0 0.0
        %2115 = vmatpush1.msra.mxu0 %v2032
        %2116 = vmatprep.subr.mxu0 0.0
        %2117 = vmatpush1.msra.mxu0 %v2033
        %2118 = vmatprep.subr.mxu0 0.0
        %2119 = vmatpush1.msra.mxu0 %v2034
        %2120 = vmatprep.subr.mxu0 0.0
        %2121 = vmatpush1.msra.mxu0 %v2035
        %2122 = vmatprep.subr.mxu0 0.0
        %2123 = vmatpush1.msra.mxu0 %v2036
        %2124 = vmatprep.subr.mxu0 0.0
        %2125 = vmatpush1.msra.mxu0 %v2037
        %2126 = vmatprep.subr.mxu0 0.0
        %2127 = vmatpush1.msra.mxu0 %v2038
        %2128 = vmatprep.subr.mxu0 0.0
        %2129 = vmatpush1.msra.mxu0 %v2039
        %2130 = vmatprep.subr.mxu0 0.0
        %2131 = vmatpush1.msra.mxu0 %v2040
        %2132 = vmatprep.mubr.f32.mxu0 %v1780
        %2133 = vmatmul.mubr.f32.gmra.mrb[0].mxu0 %v1779
        %v2134 = vpop.f32.mrb[0].mxu0
        %v2135 = vadd.f32 0.0, %v2134
        %v2136 = vpop.f32.mrb[0].mxu0
        %2137 = vdwg.mxu0
        %2138 = vmatprep.subr.mxu0 0.0
        %2139 = vmatpush1.msra.mxu0 %v2041
        %2140 = vmatprep.subr.mxu0 0.0
        %2141 = vmatpush1.msra.mxu0 %v2042
        %2142 = vmatprep.subr.mxu0 0.0
        %2143 = vmatpush1.msra.mxu0 %v2043
        %2144 = vmatprep.subr.mxu0 0.0
        %2145 = vmatpush1.msra.mxu0 %v2044
        %2146 = vmatprep.subr.mxu0 0.0
        %2147 = vmatpush1.msra.mxu0 %v2045
        %2148 = vmatprep.subr.mxu0 0.0
        %2149 = vmatpush1.msra.mxu0 %v2046
        %2150 = vmatprep.subr.mxu0 0.0
        %2151 = vmatpush1.msra.mxu0 %v2047
        %2152 = vmatprep.subr.mxu0 0.0
        %2153 = vmatpush1.msra.mxu0 %v2048
        %2154 = vmatprep.subr.mxu0 0.0
        %2155 = vmatpush1.msra.mxu0 %v2049
        %2156 = vmatprep.subr.mxu0 0.0
        %2157 = vmatpush1.msra.mxu0 %v2050
        %2158 = vmatprep.subr.mxu0 0.0
        %2159 = vmatpush1.msra.mxu0 %v2051
        %2160 = vmatprep.subr.mxu0 0.0
        %2161 = vmatpush1.msra.mxu0 %v2052
        %2162 = vmatprep.subr.mxu0 0.0
        %2163 = vmatpush1.msra.mxu0 %v2053
        %2164 = vmatprep.subr.mxu0 0.0
        %2165 = vmatpush1.msra.mxu0 %v2054
        %2166 = vmatprep.subr.mxu0 0.0
        %2167 = vmatpush1.msra.mxu0 %v2055
        %2168 = vmatprep.subr.mxu0 0.0
        %2169 = vmatpush1.msra.mxu0 %v2056
        %2170 = vmatprep.subr.mxu0 0.0
        %2171 = vmatpush1.msra.mxu0 %v2057
        %2172 = vmatprep.subr.mxu0 0.0
        %2173 = vmatpush1.msra.mxu0 %v2058
        %2174 = vmatprep.subr.mxu0 0.0
        %2175 = vmatpush1.msra.mxu0 %v2059
        %2176 = vmatprep.subr.mxu0 0.0
        %2177 = vmatpush1.msra.mxu0 %v2060
        %2178 = vmatprep.subr.mxu0 0.0
        %2179 = vmatpush1.msra.mxu0 %v2061
        %2180 = vmatprep.subr.mxu0 0.0
        %2181 = vmatpush1.msra.mxu0 %v2062
        %2182 = vmatprep.subr.mxu0 0.0
        %2183 = vmatpush1.msra.mxu0 %v2063
        %2184 = vmatprep.subr.mxu0 0.0
        %2185 = vmatpush1.msra.mxu0 %v2064
        %2186 = vmatprep.subr.mxu0 0.0
        %2187 = vmatpush1.msra.mxu0 0.0
        %2188 = vmatprep.subr.mxu0 0.0
        %2189 = vmatpush1.msra.mxu0 0.0
        %2190 = vmatprep.subr.mxu0 0.0
        %2191 = vmatpush1.msra.mxu0 0.0
        %2192 = vmatprep.subr.mxu0 0.0
        %2193 = vmatpush1.msra.mxu0 0.0
        %2194 = vmatprep.subr.mxu0 0.0
        %2195 = vmatpush1.msra.mxu0 0.0
        %2196 = vmatprep.subr.mxu0 0.0
        %2197 = vmatpush1.msra.mxu0 0.0
        %2198 = vmatprep.subr.mxu0 0.0
        %2199 = vmatpush1.msra.mxu0 0.0
        %2200 = vmatprep.subr.mxu0 0.0
        %2201 = vmatpush1.msra.mxu0 0.0
        %2202 = vmatprep.mubr.f32.mxu0 %v2066
        %2203 = vmatmul.mubr.f32.gmra.mrb[0].mxu0 %v1781
        %v2204 = vpop.f32.mrb[0].mxu0
        %v2205 = vadd.f32 %v2135, %v2204
        %v2206 = vpop.f32.mrb[0].mxu0
        %2207 = vdwg.mxu0
        %2209 = vrot.lane.b32.xlu0 %v2205, 11
        %v2210 = vpop.permute.xlu0 %2209
        %vm2212 = vcmask 220248
        %2213 = vst.msk [vmem:[%s297] sm:$0xff] %vm2212, %v2210
        %v2214 = vmul.f32 %v335, 0.0625
        %v2215 = vmax.f32 %v2214, 0.0
        %v2216 = vmin.f32 %v2215, 13.0
        %v2217 = vmul.f32 %v344, 0.0625
        %v2218 = vmax.f32 %v2217, 0.0
        %v2219 = vmin.f32 %v2218, 13.0
        %v2220 = vfloor.f32 %v2216
        %v2221 = vceil.f32 %v2216
        %v2222 = vfloor.f32 %v2219
        %v2223 = vceil.f32 %v2219
        %v2224 = vsub.f32 %v2221, %v2216
        %v2225 = vsub.f32 %v2216, %v2220
        %v2226 = vsub.f32 %v2223, %v2219
        %v2227 = vsub.f32 %v2219, %v2222
        %v2228 = vcvt.f32.s32.to.zero.pseudo %v2220
        %v2229 = vcvt.f32.s32.to.zero.pseudo %v2221
        %v2230 = vcvt.f32.s32.to.zero.pseudo %v2222
        %v2231 = vcvt.f32.s32.to.zero.pseudo %v2223
        %2232 = vset.pattern.permute.xlu0 0
        %2233 = vperm.xlu0 %2232, %v2230
        %v2234 = vpop.permute.xlu0 %2233
        %vm2235 = vcmp.eq.s32.totalorder %v364, %v2234
        %2237 = vset.pattern.permute.xlu0 0
        %2238 = vperm.xlu0 %2237, %v2226
        %v2239 = vpop.permute.xlu0 %2238
        %v2241 = vsel %vm2235, %v2239, 0.0
        %2242 = vset.pattern.permute.xlu0 0
        %2243 = vperm.xlu0 %2242, %v2231
        %v2244 = vpop.permute.xlu0 %2243
        %vm2245 = vcmp.eq.s32.totalorder %v364, %v2244
        %2247 = vset.pattern.permute.xlu0 0
        %2248 = vperm.xlu0 %2247, %v2227
        %v2249 = vpop.permute.xlu0 %2248
        %v2251 = vsel %vm2245, %v2249, 0.0
        %v2252 = vadd.f32 %v2241, %v2251
        %v2253 = vld [vmem:[%s319] sm:$0xff]
        %v2254 = vld [vmem:[%s319 + $0x8] sm:$0xff]
        %v2255 = vld [vmem:[%s319 + $0x10] sm:$0xff]
        %v2256 = vld [vmem:[%s319 + $0x18] sm:$0xff]
        %v2257 = vld [vmem:[%s319 + $0x20] sm:$0xff]
        %v2258 = vld [vmem:[%s319 + $0x28] sm:$0xff]
        %v2259 = vld [vmem:[%s319 + $0x30] sm:$0xff]
        %v2260 = vld [vmem:[%s319 + $0x38] sm:$0xff]
        %v2261 = vld [vmem:[%s319 + $0x40] sm:$0xff]
        %v2262 = vld [vmem:[%s319 + $0x48] sm:$0xff]
        %v2263 = vld [vmem:[%s319 + $0x50] sm:$0xff]
        %v2264 = vld [vmem:[%s319 + $0x58] sm:$0xff]
        %v2265 = vld [vmem:[%s319 + $0x60] sm:$0xff]
        %v2266 = vld [vmem:[%s319 + $0x68] sm:$0xff]
        %v2267 = vld [vmem:[%s319 + $0x70] sm:$0xff]
        %v2268 = vld [vmem:[%s319 + $0x78] sm:$0xff]
        %v2269 = vld [vmem:[%s319 + $0x80] sm:$0xff]
        %v2270 = vld [vmem:[%s319 + $0x88] sm:$0xff]
        %v2271 = vld [vmem:[%s319 + $0x90] sm:$0xff]
        %v2272 = vld [vmem:[%s319 + $0x98] sm:$0xff]
        %v2273 = vld [vmem:[%s319 + $0xa0] sm:$0xff]
        %v2274 = vld [vmem:[%s319 + $0xa8] sm:$0xff]
        %v2275 = vld [vmem:[%s319 + $0xb0] sm:$0xff]
        %v2276 = vld [vmem:[%s319 + $0xb8] sm:$0xff]
        %v2277 = vld [vmem:[%s319 + $0xc0] sm:$0xff]
        %v2278 = vld [vmem:[%s319 + $0xc8] sm:$0xff]
        %v2279 = vld [vmem:[%s319 + $0xd0] sm:$0xff]
        %v2280 = vld [vmem:[%s319 + $0xd8] sm:$0xff]
        %v2281 = vld [vmem:[%s319 + $0xe0] sm:$0xff]
        %v2282 = vld [vmem:[%s319 + $0xe8] sm:$0xff]
        %v2283 = vld [vmem:[%s319 + $0xf0] sm:$0xff]
        %v2284 = vld [vmem:[%s319 + $0xf8] sm:$0xff]
        %v2285 = vld [vmem:[%s319 + $0x100] sm:$0xff]
        %v2286 = vld [vmem:[%s319 + $0x108] sm:$0xff]
        %v2287 = vld [vmem:[%s319 + $0x110] sm:$0xff]
        %v2288 = vld [vmem:[%s319 + $0x118] sm:$0xff]
        %v2289 = vld [vmem:[%s319 + $0x120] sm:$0xff]
        %v2290 = vld [vmem:[%s319 + $0x128] sm:$0xff]
        %v2291 = vld [vmem:[%s319 + $0x130] sm:$0xff]
        %v2292 = vld [vmem:[%s319 + $0x138] sm:$0xff]
        %v2293 = vld [vmem:[%s319 + $0x140] sm:$0xff]
        %v2294 = vld [vmem:[%s319 + $0x148] sm:$0xff]
        %v2295 = vld [vmem:[%s319 + $0x150] sm:$0xff]
        %v2296 = vld [vmem:[%s319 + $0x158] sm:$0xff]
        %v2297 = vld [vmem:[%s319 + $0x160] sm:$0xff]
        %v2298 = vld [vmem:[%s319 + $0x168] sm:$0xff]
        %v2299 = vld [vmem:[%s319 + $0x170] sm:$0xff]
        %v2300 = vld [vmem:[%s319 + $0x178] sm:$0xff]
        %v2301 = vld [vmem:[%s319 + $0x180] sm:$0xff]
        %v2302 = vld [vmem:[%s319 + $0x188] sm:$0xff]
        %v2303 = vld [vmem:[%s319 + $0x190] sm:$0xff]
        %v2304 = vld [vmem:[%s319 + $0x198] sm:$0xff]
        %v2305 = vld [vmem:[%s319 + $0x1a0] sm:$0xff]
        %v2306 = vld [vmem:[%s319 + $0x1a8] sm:$0xff]
        %v2307 = vld [vmem:[%s319 + $0x1b0] sm:$0xff]
        %v2308 = vld [vmem:[%s319 + $0x1b8] sm:$0xff]
        %vm2309 = vcmask 113664
        %v2311 = vsel %vm2309, %v2252, 0
        %v2314 = vsel %vm2309, %v2253, 0
        %v2317 = vsel %vm2309, %v2254, 0
        %v2320 = vsel %vm2309, %v2255, 0
        %v2323 = vsel %vm2309, %v2256, 0
        %v2326 = vsel %vm2309, %v2257, 0
        %v2329 = vsel %vm2309, %v2258, 0
        %v2332 = vsel %vm2309, %v2259, 0
        %v2335 = vsel %vm2309, %v2260, 0
        %v2338 = vsel %vm2309, %v2261, 0
        %v2341 = vsel %vm2309, %v2262, 0
        %v2344 = vsel %vm2309, %v2263, 0
        %v2347 = vsel %vm2309, %v2264, 0
        %v2350 = vsel %vm2309, %v2265, 0
        %v2353 = vsel %vm2309, %v2266, 0
        %v2356 = vsel %vm2309, %v2267, 0
        %v2359 = vsel %vm2309, %v2268, 0
        %v2362 = vsel %vm2309, %v2269, 0
        %v2365 = vsel %vm2309, %v2270, 0
        %v2368 = vsel %vm2309, %v2271, 0
        %v2371 = vsel %vm2309, %v2272, 0
        %v2374 = vsel %vm2309, %v2273, 0
        %v2377 = vsel %vm2309, %v2274, 0
        %v2380 = vsel %vm2309, %v2275, 0
        %v2383 = vsel %vm2309, %v2276, 0
        %v2386 = vsel %vm2309, %v2277, 0
        %v2389 = vsel %vm2309, %v2278, 0
        %v2392 = vsel %vm2309, %v2279, 0
        %v2395 = vsel %vm2309, %v2280, 0
        %v2398 = vsel %vm2309, %v2281, 0
        %v2401 = vsel %vm2309, %v2282, 0
        %v2404 = vsel %vm2309, %v2283, 0
        %v2407 = vsel %vm2309, %v2284, 0
        %v2410 = vsel %vm2309, %v2285, 0
        %v2413 = vsel %vm2309, %v2286, 0
        %v2416 = vsel %vm2309, %v2287, 0
        %v2419 = vsel %vm2309, %v2288, 0
        %v2422 = vsel %vm2309, %v2289, 0
        %v2425 = vsel %vm2309, %v2290, 0
        %v2428 = vsel %vm2309, %v2291, 0
        %v2431 = vsel %vm2309, %v2292, 0
        %v2434 = vsel %vm2309, %v2293, 0
        %v2437 = vsel %vm2309, %v2294, 0
        %v2440 = vsel %vm2309, %v2295, 0
        %v2443 = vsel %vm2309, %v2296, 0
        %v2446 = vsel %vm2309, %v2297, 0
        %v2449 = vsel %vm2309, %v2298, 0
        %v2452 = vsel %vm2309, %v2299, 0
        %v2455 = vsel %vm2309, %v2300, 0
        %v2458 = vsel %vm2309, %v2301, 0
        %v2461 = vsel %vm2309, %v2302, 0
        %v2464 = vsel %vm2309, %v2303, 0
        %v2467 = vsel %vm2309, %v2304, 0
        %v2470 = vsel %vm2309, %v2305, 0
        %v2473 = vsel %vm2309, %v2306, 0
        %v2476 = vsel %vm2309, %v2307, 0
        %v2479 = vsel %vm2309, %v2308, 0
        %2481 = vmatprep.subr.mxu0 0.0
        %2482 = vmatpush1.xpose.msra.mxu0 %v2314
        %2483 = vmatprep.subr.mxu0 0.0
        %2484 = vmatpush1.xpose.msra.mxu0 %v2317
        %2485 = vmatprep.subr.mxu0 0.0
        %2486 = vmatpush1.xpose.msra.mxu0 %v2320
        %2487 = vmatprep.subr.mxu0 0.0
        %2488 = vmatpush1.xpose.msra.mxu0 %v2323
        %2489 = vmatprep.subr.mxu0 0.0
        %2490 = vmatpush1.xpose.msra.mxu0 %v2326
        %2491 = vmatprep.subr.mxu0 0.0
        %2492 = vmatpush1.xpose.msra.mxu0 %v2329
        %2493 = vmatprep.subr.mxu0 0.0
        %2494 = vmatpush1.xpose.msra.mxu0 %v2332
        %2495 = vmatprep.subr.mxu0 0.0
        %2496 = vmatpush1.xpose.msra.mxu0 %v2335
        %2497 = vmatprep.subr.mxu0 0.0
        %2498 = vmatpush1.xpose.msra.mxu0 %v2338
        %2499 = vmatprep.subr.mxu0 0.0
        %2500 = vmatpush1.xpose.msra.mxu0 %v2341
        %2501 = vmatprep.subr.mxu0 0.0
        %2502 = vmatpush1.xpose.msra.mxu0 %v2344
        %2503 = vmatprep.subr.mxu0 0.0
        %2504 = vmatpush1.xpose.msra.mxu0 %v2347
        %2505 = vmatprep.subr.mxu0 0.0
        %2506 = vmatpush1.xpose.msra.mxu0 %v2350
        %2507 = vmatprep.subr.mxu0 0.0
        %2508 = vmatpush1.xpose.msra.mxu0 %v2353
        %2509 = vmatprep.subr.mxu0 0.0
        %2510 = vmatpush1.xpose.msra.mxu0 %v2356
        %2511 = vmatprep.subr.mxu0 0.0
        %2512 = vmatpush1.xpose.msra.mxu0 %v2359
        %2513 = vmatprep.subr.mxu0 0.0
        %2514 = vmatpush1.xpose.msra.mxu0 %v2362
        %2515 = vmatprep.subr.mxu0 0.0
        %2516 = vmatpush1.xpose.msra.mxu0 %v2365
        %2517 = vmatprep.subr.mxu0 0.0
        %2518 = vmatpush1.xpose.msra.mxu0 %v2368
        %2519 = vmatprep.subr.mxu0 0.0
        %2520 = vmatpush1.xpose.msra.mxu0 %v2371
        %2521 = vmatprep.subr.mxu0 0.0
        %2522 = vmatpush1.xpose.msra.mxu0 %v2374
        %2523 = vmatprep.subr.mxu0 0.0
        %2524 = vmatpush1.xpose.msra.mxu0 %v2377
        %2525 = vmatprep.subr.mxu0 0.0
        %2526 = vmatpush1.xpose.msra.mxu0 %v2380
        %2527 = vmatprep.subr.mxu0 0.0
        %2528 = vmatpush1.xpose.msra.mxu0 %v2383
        %2529 = vmatprep.subr.mxu0 0.0
        %2530 = vmatpush1.xpose.msra.mxu0 %v2386
        %2531 = vmatprep.subr.mxu0 0.0
        %2532 = vmatpush1.xpose.msra.mxu0 %v2389
        %2533 = vmatprep.subr.mxu0 0.0
        %2534 = vmatpush1.xpose.msra.mxu0 %v2392
        %2535 = vmatprep.subr.mxu0 0.0
        %2536 = vmatpush1.xpose.msra.mxu0 %v2395
        %2537 = vmatprep.subr.mxu0 0.0
        %2538 = vmatpush1.xpose.msra.mxu0 %v2398
        %2539 = vmatprep.subr.mxu0 0.0
        %2540 = vmatpush1.xpose.msra.mxu0 %v2401
        %2541 = vmatprep.subr.mxu0 0.0
        %2542 = vmatpush1.xpose.msra.mxu0 %v2404
        %2543 = vmatprep.subr.mxu0 0.0
        %2544 = vmatpush1.xpose.msra.mxu0 %v2407
        %2545 = vmatprep.mubr.f32.mxu0 0.0
        %2546 = vmatmul.mubr.f32.gmra.mrb[0].mxu0 %v2311
        %v2547 = vpop.f32.mrb[0].mxu0
        %v2548 = vadd.f32 0.0, %v2547
        %v2549 = vpop.f32.mrb[0].mxu0
        %v2550 = vadd.f32 0.0, %v2549
        %2551 = vdwg.mxu0
        %2552 = vmatprep.subr.mxu0 0.0
        %2553 = vmatpush1.xpose.msra.mxu0 %v2410
        %2554 = vmatprep.subr.mxu0 0.0
        %2555 = vmatpush1.xpose.msra.mxu0 %v2413
        %2556 = vmatprep.subr.mxu0 0.0
        %2557 = vmatpush1.xpose.msra.mxu0 %v2416
        %2558 = vmatprep.subr.mxu0 0.0
        %2559 = vmatpush1.xpose.msra.mxu0 %v2419
        %2560 = vmatprep.subr.mxu0 0.0
        %2561 = vmatpush1.xpose.msra.mxu0 %v2422
        %2562 = vmatprep.subr.mxu0 0.0
        %2563 = vmatpush1.xpose.msra.mxu0 %v2425
        %2564 = vmatprep.subr.mxu0 0.0
        %2565 = vmatpush1.xpose.msra.mxu0 %v2428
        %2566 = vmatprep.subr.mxu0 0.0
        %2567 = vmatpush1.xpose.msra.mxu0 %v2431
        %2568 = vmatprep.subr.mxu0 0.0
        %2569 = vmatpush1.xpose.msra.mxu0 %v2434
        %2570 = vmatprep.subr.mxu0 0.0
        %2571 = vmatpush1.xpose.msra.mxu0 %v2437
        %2572 = vmatprep.subr.mxu0 0.0
        %2573 = vmatpush1.xpose.msra.mxu0 %v2440
        %2574 = vmatprep.subr.mxu0 0.0
        %2575 = vmatpush1.xpose.msra.mxu0 %v2443
        %2576 = vmatprep.subr.mxu0 0.0
        %2577 = vmatpush1.xpose.msra.mxu0 %v2446
        %2578 = vmatprep.subr.mxu0 0.0
        %2579 = vmatpush1.xpose.msra.mxu0 %v2449
        %2580 = vmatprep.subr.mxu0 0.0
        %2581 = vmatpush1.xpose.msra.mxu0 %v2452
        %2582 = vmatprep.subr.mxu0 0.0
        %2583 = vmatpush1.xpose.msra.mxu0 %v2455
        %2584 = vmatprep.subr.mxu0 0.0
        %2585 = vmatpush1.xpose.msra.mxu0 %v2458
        %2586 = vmatprep.subr.mxu0 0.0
        %2587 = vmatpush1.xpose.msra.mxu0 %v2461
        %2588 = vmatprep.subr.mxu0 0.0
        %2589 = vmatpush1.xpose.msra.mxu0 %v2464
        %2590 = vmatprep.subr.mxu0 0.0
        %2591 = vmatpush1.xpose.msra.mxu0 %v2467
        %2592 = vmatprep.subr.mxu0 0.0
        %2593 = vmatpush1.xpose.msra.mxu0 %v2470
        %2594 = vmatprep.subr.mxu0 0.0
        %2595 = vmatpush1.xpose.msra.mxu0 %v2473
        %2596 = vmatprep.subr.mxu0 0.0
        %2597 = vmatpush1.xpose.msra.mxu0 %v2476
        %2598 = vmatprep.subr.mxu0 0.0
        %2599 = vmatpush1.xpose.msra.mxu0 %v2479
        %2600 = vmatprep.subr.mxu0 0.0
        %2601 = vmatpush1.xpose.msra.mxu0 0.0
        %2602 = vmatprep.subr.mxu0 0.0
        %2603 = vmatpush1.xpose.msra.mxu0 0.0
        %2604 = vmatprep.subr.mxu0 0.0
        %2605 = vmatpush1.xpose.msra.mxu0 0.0
        %2606 = vmatprep.subr.mxu0 0.0
        %2607 = vmatpush1.xpose.msra.mxu0 0.0
        %2608 = vmatprep.subr.mxu0 0.0
        %2609 = vmatpush1.xpose.msra.mxu0 0.0
        %2610 = vmatprep.subr.mxu0 0.0
        %2611 = vmatpush1.xpose.msra.mxu0 0.0
        %2612 = vmatprep.subr.mxu0 0.0
        %2613 = vmatpush1.xpose.msra.mxu0 0.0
        %2614 = vmatprep.subr.mxu0 0.0
        %2615 = vmatpush1.xpose.msra.mxu0 0.0
        %2616 = vmatprep.mubr.f32.mxu0 0.0
        %2617 = vmatmul.mubr.f32.gmra.mrb[0].mxu0 %v2311
        %v2618 = vpop.f32.mrb[0].mxu0
        %v2619 = vadd.f32 0.0, %v2618
        %v2620 = vpop.f32.mrb[0].mxu0
        %v2621 = vadd.f32 0.0, %v2620
        %2622 = vdwg.mxu0
        %v2623 = vrcp.pop 14.0
        %v2624 = vmul.f32 %v759, %v2623
        %v2625 = vmul.f32 %v760, %v2623
        %v2626 = vmul.f32 %v761, %v2623
        %v2627 = vmul.f32 %v762, %v2623
        %v2628 = vfloor.f32 %v2624
        %v2629 = vfloor.f32 %v2625
        %v2630 = vfloor.f32 %v2626
        %v2631 = vfloor.f32 %v2627
        %v2632 = vmul.f32 %v2628, 14.0
        %v2633 = vmul.f32 %v2629, 14.0
        %v2634 = vmul.f32 %v2630, 14.0
        %v2635 = vmul.f32 %v2631, 14.0
        %v2636 = vsub.f32 %v759, %v2632
        %v2637 = vsub.f32 %v760, %v2633
        %v2638 = vsub.f32 %v761, %v2634
        %v2639 = vsub.f32 %v762, %v2635
        %v2640 = vcvt.f32.s32.to.zero.pseudo %v2636
        %v2641 = vcvt.f32.s32.to.zero.pseudo %v2637
        %v2642 = vcvt.f32.s32.to.zero.pseudo %v2638
        %v2643 = vcvt.f32.s32.to.zero.pseudo %v2639
        %2644 = vset.pattern.permute.xlu0 1
        %2645 = vperm.xlu0 %2644, %v2228
        %v2646 = vpop.permute.xlu0 %2645
        %vm2647 = vcmp.eq.s32.totalorder %v2640, %v2646
        %vm2648 = vcmp.eq.s32.totalorder %v2641, %v2646
        %vm2649 = vcmp.eq.s32.totalorder %v2642, %v2646
        %vm2650 = vcmp.eq.s32.totalorder %v2643, %v2646
        %2652 = vset.pattern.permute.xlu0 1
        %2653 = vperm.xlu0 %2652, %v2224
        %v2654 = vpop.permute.xlu0 %2653
        %v2656 = vsel %vm2647, %v2654, 0.0
        %v2657 = vsel %vm2648, %v2654, 0.0
        %v2658 = vsel %vm2649, %v2654, 0.0
        %v2659 = vsel %vm2650, %v2654, 0.0
        %2660 = vset.pattern.permute.xlu0 1
        %2661 = vperm.xlu0 %2660, %v2229
        %v2662 = vpop.permute.xlu0 %2661
        %vm2663 = vcmp.eq.s32.totalorder %v2640, %v2662
        %vm2664 = vcmp.eq.s32.totalorder %v2641, %v2662
        %vm2665 = vcmp.eq.s32.totalorder %v2642, %v2662
        %vm2666 = vcmp.eq.s32.totalorder %v2643, %v2662
        %2668 = vset.pattern.permute.xlu0 1
        %2669 = vperm.xlu0 %2668, %v2225
        %v2670 = vpop.permute.xlu0 %2669
        %v2672 = vsel %vm2663, %v2670, 0.0
        %v2673 = vsel %vm2664, %v2670, 0.0
        %v2674 = vsel %vm2665, %v2670, 0.0
        %v2675 = vsel %vm2666, %v2670, 0.0
        %v2676 = vadd.f32 %v2656, %v2672
        %v2677 = vadd.f32 %v2657, %v2673
        %v2678 = vadd.f32 %v2658, %v2674
        %v2679 = vadd.f32 %v2659, %v2675
        %v2680 = vmul.f32 %v2548, %v2676
        %v2681 = vmul.f32 %v2550, %v2677
        %v2682 = vmul.f32 %v2619, %v2678
        %v2683 = vmul.f32 %v2621, %v2679
        %v2684 = vmul.u32 %v364, 14
        %vm2685 = vcmp.ge.s32.totalorder %v825, %v2684
        %vm2686 = vcmp.ge.s32.totalorder %v826, %v2684
        %vm2687 = vcmp.ge.s32.totalorder %v827, %v2684
        %vm2688 = vcmp.ge.s32.totalorder %v828, %v2684
        %vm2689 = vcmp.ge.s32.totalorder %v829, %v2684
        %vm2690 = vcmp.ge.s32.totalorder %v830, %v2684
        %vm2691 = vcmp.ge.s32.totalorder %v831, %v2684
        %vm2692 = vcmp.ge.s32.totalorder %v832, %v2684
        %vm2693 = vcmp.ge.s32.totalorder %v833, %v2684
        %vm2694 = vcmp.ge.s32.totalorder %v834, %v2684
        %vm2695 = vcmp.ge.s32.totalorder %v835, %v2684
        %vm2696 = vcmp.ge.s32.totalorder %v836, %v2684
        %vm2697 = vcmp.ge.s32.totalorder %v837, %v2684
        %vm2698 = vcmp.ge.s32.totalorder %v838, %v2684
        %vm2699 = vcmp.ge.s32.totalorder %v839, %v2684
        %vm2700 = vcmp.ge.s32.totalorder %v840, %v2684
        %vm2701 = vcmp.ge.s32.totalorder %v841, %v2684
        %vm2702 = vcmp.ge.s32.totalorder %v842, %v2684
        %vm2703 = vcmp.ge.s32.totalorder %v843, %v2684
        %vm2704 = vcmp.ge.s32.totalorder %v844, %v2684
        %vm2705 = vcmp.ge.s32.totalorder %v845, %v2684
        %vm2706 = vcmp.ge.s32.totalorder %v846, %v2684
        %vm2707 = vcmp.ge.s32.totalorder %v847, %v2684
        %vm2708 = vcmp.ge.s32.totalorder %v848, %v2684
        %vm2709 = vcmp.ge.s32.totalorder %v849, %v2684
        %vm2710 = vcmp.ge.s32.totalorder %v850, %v2684
        %vm2711 = vcmp.ge.s32.totalorder %v851, %v2684
        %vm2712 = vcmp.ge.s32.totalorder %v852, %v2684
        %vm2713 = vcmp.ge.s32.totalorder %v853, %v2684
        %vm2714 = vcmp.ge.s32.totalorder %v854, %v2684
        %vm2715 = vcmp.ge.s32.totalorder %v855, %v2684
        %vm2716 = vcmp.ge.s32.totalorder %v856, %v2684
        %vm2717 = vcmp.ge.s32.totalorder %v857, %v2684
        %vm2718 = vcmp.ge.s32.totalorder %v858, %v2684
        %vm2719 = vcmp.ge.s32.totalorder %v859, %v2684
        %vm2720 = vcmp.ge.s32.totalorder %v860, %v2684
        %vm2721 = vcmp.ge.s32.totalorder %v861, %v2684
        %vm2722 = vcmp.ge.s32.totalorder %v862, %v2684
        %vm2723 = vcmp.ge.s32.totalorder %v863, %v2684
        %vm2724 = vcmp.ge.s32.totalorder %v864, %v2684
        %vm2725 = vcmp.ge.s32.totalorder %v865, %v2684
        %vm2726 = vcmp.ge.s32.totalorder %v866, %v2684
        %vm2727 = vcmp.ge.s32.totalorder %v867, %v2684
        %vm2728 = vcmp.ge.s32.totalorder %v868, %v2684
        %vm2729 = vcmp.ge.s32.totalorder %v869, %v2684
        %vm2730 = vcmp.ge.s32.totalorder %v870, %v2684
        %vm2731 = vcmp.ge.s32.totalorder %v871, %v2684
        %vm2732 = vcmp.ge.s32.totalorder %v872, %v2684
        %vm2733 = vcmp.ge.s32.totalorder %v873, %v2684
        %vm2734 = vcmp.ge.s32.totalorder %v874, %v2684
        %vm2735 = vcmp.ge.s32.totalorder %v875, %v2684
        %vm2736 = vcmp.ge.s32.totalorder %v876, %v2684
        %vm2737 = vcmp.ge.s32.totalorder %v877, %v2684
        %vm2738 = vcmp.ge.s32.totalorder %v878, %v2684
        %vm2739 = vcmp.ge.s32.totalorder %v879, %v2684
        %vm2740 = vcmp.ge.s32.totalorder %v880, %v2684
        %v2741 = vadd.s32 %v2684, 14
        %vm2742 = vcmp.lt.s32.totalorder %v825, %v2741
        %vm2743 = vcmp.lt.s32.totalorder %v826, %v2741
        %vm2744 = vcmp.lt.s32.totalorder %v827, %v2741
        %vm2745 = vcmp.lt.s32.totalorder %v828, %v2741
        %vm2746 = vcmp.lt.s32.totalorder %v829, %v2741
        %vm2747 = vcmp.lt.s32.totalorder %v830, %v2741
        %vm2748 = vcmp.lt.s32.totalorder %v831, %v2741
        %vm2749 = vcmp.lt.s32.totalorder %v832, %v2741
        %vm2750 = vcmp.lt.s32.totalorder %v833, %v2741
        %vm2751 = vcmp.lt.s32.totalorder %v834, %v2741
        %vm2752 = vcmp.lt.s32.totalorder %v835, %v2741
        %vm2753 = vcmp.lt.s32.totalorder %v836, %v2741
        %vm2754 = vcmp.lt.s32.totalorder %v837, %v2741
        %vm2755 = vcmp.lt.s32.totalorder %v838, %v2741
        %vm2756 = vcmp.lt.s32.totalorder %v839, %v2741
        %vm2757 = vcmp.lt.s32.totalorder %v840, %v2741
        %vm2758 = vcmp.lt.s32.totalorder %v841, %v2741
        %vm2759 = vcmp.lt.s32.totalorder %v842, %v2741
        %vm2760 = vcmp.lt.s32.totalorder %v843, %v2741
        %vm2761 = vcmp.lt.s32.totalorder %v844, %v2741
        %vm2762 = vcmp.lt.s32.totalorder %v845, %v2741
        %vm2763 = vcmp.lt.s32.totalorder %v846, %v2741
        %vm2764 = vcmp.lt.s32.totalorder %v847, %v2741
        %vm2765 = vcmp.lt.s32.totalorder %v848, %v2741
        %vm2766 = vcmp.lt.s32.totalorder %v849, %v2741
        %vm2767 = vcmp.lt.s32.totalorder %v850, %v2741
        %vm2768 = vcmp.lt.s32.totalorder %v851, %v2741
        %vm2769 = vcmp.lt.s32.totalorder %v852, %v2741
        %vm2770 = vcmp.lt.s32.totalorder %v853, %v2741
        %vm2771 = vcmp.lt.s32.totalorder %v854, %v2741
        %vm2772 = vcmp.lt.s32.totalorder %v855, %v2741
        %vm2773 = vcmp.lt.s32.totalorder %v856, %v2741
        %vm2774 = vcmp.lt.s32.totalorder %v857, %v2741
        %vm2775 = vcmp.lt.s32.totalorder %v858, %v2741
        %vm2776 = vcmp.lt.s32.totalorder %v859, %v2741
        %vm2777 = vcmp.lt.s32.totalorder %v860, %v2741
        %vm2778 = vcmp.lt.s32.totalorder %v861, %v2741
        %vm2779 = vcmp.lt.s32.totalorder %v862, %v2741
        %vm2780 = vcmp.lt.s32.totalorder %v863, %v2741
        %vm2781 = vcmp.lt.s32.totalorder %v864, %v2741
        %vm2782 = vcmp.lt.s32.totalorder %v865, %v2741
        %vm2783 = vcmp.lt.s32.totalorder %v866, %v2741
        %vm2784 = vcmp.lt.s32.totalorder %v867, %v2741
        %vm2785 = vcmp.lt.s32.totalorder %v868, %v2741
        %vm2786 = vcmp.lt.s32.totalorder %v869, %v2741
        %vm2787 = vcmp.lt.s32.totalorder %v870, %v2741
        %vm2788 = vcmp.lt.s32.totalorder %v871, %v2741
        %vm2789 = vcmp.lt.s32.totalorder %v872, %v2741
        %vm2790 = vcmp.lt.s32.totalorder %v873, %v2741
        %vm2791 = vcmp.lt.s32.totalorder %v874, %v2741
        %vm2792 = vcmp.lt.s32.totalorder %v875, %v2741
        %vm2793 = vcmp.lt.s32.totalorder %v876, %v2741
        %vm2794 = vcmp.lt.s32.totalorder %v877, %v2741
        %vm2795 = vcmp.lt.s32.totalorder %v878, %v2741
        %vm2796 = vcmp.lt.s32.totalorder %v879, %v2741
        %vm2797 = vcmp.lt.s32.totalorder %v880, %v2741
        %vm2798 = vmand %vm2685, %vm2742
        %vm2799 = vmand %vm2686, %vm2743
        %vm2800 = vmand %vm2687, %vm2744
        %vm2801 = vmand %vm2688, %vm2745
        %vm2802 = vmand %vm2689, %vm2746
        %vm2803 = vmand %vm2690, %vm2747
        %vm2804 = vmand %vm2691, %vm2748
        %vm2805 = vmand %vm2692, %vm2749
        %vm2806 = vmand %vm2693, %vm2750
        %vm2807 = vmand %vm2694, %vm2751
        %vm2808 = vmand %vm2695, %vm2752
        %vm2809 = vmand %vm2696, %vm2753
        %vm2810 = vmand %vm2697, %vm2754
        %vm2811 = vmand %vm2698, %vm2755
        %vm2812 = vmand %vm2699, %vm2756
        %vm2813 = vmand %vm2700, %vm2757
        %vm2814 = vmand %vm2701, %vm2758
        %vm2815 = vmand %vm2702, %vm2759
        %vm2816 = vmand %vm2703, %vm2760
        %vm2817 = vmand %vm2704, %vm2761
        %vm2818 = vmand %vm2705, %vm2762
        %vm2819 = vmand %vm2706, %vm2763
        %vm2820 = vmand %vm2707, %vm2764
        %vm2821 = vmand %vm2708, %vm2765
        %vm2822 = vmand %vm2709, %vm2766
        %vm2823 = vmand %vm2710, %vm2767
        %vm2824 = vmand %vm2711, %vm2768
        %vm2825 = vmand %vm2712, %vm2769
        %vm2826 = vmand %vm2713, %vm2770
        %vm2827 = vmand %vm2714, %vm2771
        %vm2828 = vmand %vm2715, %vm2772
        %vm2829 = vmand %vm2716, %vm2773
        %vm2830 = vmand %vm2717, %vm2774
        %vm2831 = vmand %vm2718, %vm2775
        %vm2832 = vmand %vm2719, %vm2776
        %vm2833 = vmand %vm2720, %vm2777
        %vm2834 = vmand %vm2721, %vm2778
        %vm2835 = vmand %vm2722, %vm2779
        %vm2836 = vmand %vm2723, %vm2780
        %vm2837 = vmand %vm2724, %vm2781
        %vm2838 = vmand %vm2725, %vm2782
        %vm2839 = vmand %vm2726, %vm2783
        %vm2840 = vmand %vm2727, %vm2784
        %vm2841 = vmand %vm2728, %vm2785
        %vm2842 = vmand %vm2729, %vm2786
        %vm2843 = vmand %vm2730, %vm2787
        %vm2844 = vmand %vm2731, %vm2788
        %vm2845 = vmand %vm2732, %vm2789
        %vm2846 = vmand %vm2733, %vm2790
        %vm2847 = vmand %vm2734, %vm2791
        %vm2848 = vmand %vm2735, %vm2792
        %vm2849 = vmand %vm2736, %vm2793
        %vm2850 = vmand %vm2737, %vm2794
        %vm2851 = vmand %vm2738, %vm2795
        %vm2852 = vmand %vm2739, %vm2796
        %vm2853 = vmand %vm2740, %vm2797
        %v2854 = vsel %vm2798, 1, 0
        %v2855 = vsel %vm2799, 1, 0
        %v2856 = vsel %vm2800, 1, 0
        %v2857 = vsel %vm2801, 1, 0
        %v2858 = vsel %vm2802, 1, 0
        %v2859 = vsel %vm2803, 1, 0
        %v2860 = vsel %vm2804, 1, 0
        %v2861 = vsel %vm2805, 1, 0
        %v2862 = vsel %vm2806, 1, 0
        %v2863 = vsel %vm2807, 1, 0
        %v2864 = vsel %vm2808, 1, 0
        %v2865 = vsel %vm2809, 1, 0
        %v2866 = vsel %vm2810, 1, 0
        %v2867 = vsel %vm2811, 1, 0
        %v2868 = vsel %vm2812, 1, 0
        %v2869 = vsel %vm2813, 1, 0
        %v2870 = vsel %vm2814, 1, 0
        %v2871 = vsel %vm2815, 1, 0
        %v2872 = vsel %vm2816, 1, 0
        %v2873 = vsel %vm2817, 1, 0
        %v2874 = vsel %vm2818, 1, 0
        %v2875 = vsel %vm2819, 1, 0
        %v2876 = vsel %vm2820, 1, 0
        %v2877 = vsel %vm2821, 1, 0
        %v2878 = vsel %vm2822, 1, 0
        %v2879 = vsel %vm2823, 1, 0
        %v2880 = vsel %vm2824, 1, 0
        %v2881 = vsel %vm2825, 1, 0
        %v2882 = vsel %vm2826, 1, 0
        %v2883 = vsel %vm2827, 1, 0
        %v2884 = vsel %vm2828, 1, 0
        %v2885 = vsel %vm2829, 1, 0
        %v2886 = vsel %vm2830, 1, 0
        %v2887 = vsel %vm2831, 1, 0
        %v2888 = vsel %vm2832, 1, 0
        %v2889 = vsel %vm2833, 1, 0
        %v2890 = vsel %vm2834, 1, 0
        %v2891 = vsel %vm2835, 1, 0
        %v2892 = vsel %vm2836, 1, 0
        %v2893 = vsel %vm2837, 1, 0
        %v2894 = vsel %vm2838, 1, 0
        %v2895 = vsel %vm2839, 1, 0
        %v2896 = vsel %vm2840, 1, 0
        %v2897 = vsel %vm2841, 1, 0
        %v2898 = vsel %vm2842, 1, 0
        %v2899 = vsel %vm2843, 1, 0
        %v2900 = vsel %vm2844, 1, 0
        %v2901 = vsel %vm2845, 1, 0
        %v2902 = vsel %vm2846, 1, 0
        %v2903 = vsel %vm2847, 1, 0
        %v2904 = vsel %vm2848, 1, 0
        %v2905 = vsel %vm2849, 1, 0
        %v2906 = vsel %vm2850, 1, 0
        %v2907 = vsel %vm2851, 1, 0
        %v2908 = vsel %vm2852, 1, 0
        %v2909 = vsel %vm2853, 1, 0
        %v2910 = vcvt.s32.f32 %v2854
        %v2911 = vcvt.s32.f32 %v2855
        %v2912 = vcvt.s32.f32 %v2856
        %v2913 = vcvt.s32.f32 %v2857
        %v2914 = vcvt.s32.f32 %v2858
        %v2915 = vcvt.s32.f32 %v2859
        %v2916 = vcvt.s32.f32 %v2860
        %v2917 = vcvt.s32.f32 %v2861
        %v2918 = vcvt.s32.f32 %v2862
        %v2919 = vcvt.s32.f32 %v2863
        %v2920 = vcvt.s32.f32 %v2864
        %v2921 = vcvt.s32.f32 %v2865
        %v2922 = vcvt.s32.f32 %v2866
        %v2923 = vcvt.s32.f32 %v2867
        %v2924 = vcvt.s32.f32 %v2868
        %v2925 = vcvt.s32.f32 %v2869
        %v2926 = vcvt.s32.f32 %v2870
        %v2927 = vcvt.s32.f32 %v2871
        %v2928 = vcvt.s32.f32 %v2872
        %v2929 = vcvt.s32.f32 %v2873
        %v2930 = vcvt.s32.f32 %v2874
        %v2931 = vcvt.s32.f32 %v2875
        %v2932 = vcvt.s32.f32 %v2876
        %v2933 = vcvt.s32.f32 %v2877
        %v2934 = vcvt.s32.f32 %v2878
        %v2935 = vcvt.s32.f32 %v2879
        %v2936 = vcvt.s32.f32 %v2880
        %v2937 = vcvt.s32.f32 %v2881
        %v2938 = vcvt.s32.f32 %v2882
        %v2939 = vcvt.s32.f32 %v2883
        %v2940 = vcvt.s32.f32 %v2884
        %v2941 = vcvt.s32.f32 %v2885
        %v2942 = vcvt.s32.f32 %v2886
        %v2943 = vcvt.s32.f32 %v2887
        %v2944 = vcvt.s32.f32 %v2888
        %v2945 = vcvt.s32.f32 %v2889
        %v2946 = vcvt.s32.f32 %v2890
        %v2947 = vcvt.s32.f32 %v2891
        %v2948 = vcvt.s32.f32 %v2892
        %v2949 = vcvt.s32.f32 %v2893
        %v2950 = vcvt.s32.f32 %v2894
        %v2951 = vcvt.s32.f32 %v2895
        %v2952 = vcvt.s32.f32 %v2896
        %v2953 = vcvt.s32.f32 %v2897
        %v2954 = vcvt.s32.f32 %v2898
        %v2955 = vcvt.s32.f32 %v2899
        %v2956 = vcvt.s32.f32 %v2900
        %v2957 = vcvt.s32.f32 %v2901
        %v2958 = vcvt.s32.f32 %v2902
        %v2959 = vcvt.s32.f32 %v2903
        %v2960 = vcvt.s32.f32 %v2904
        %v2961 = vcvt.s32.f32 %v2905
        %v2962 = vcvt.s32.f32 %v2906
        %v2963 = vcvt.s32.f32 %v2907
        %v2964 = vcvt.s32.f32 %v2908
        %v2965 = vcvt.s32.f32 %v2909
        %v2967 = vsel %vm1163, %v2683, 0
        %2969 = vmatprep.subr.mxu0 0.0
        %2970 = vmatpush1.msra.mxu0 %v2910
        %2971 = vmatprep.subr.mxu0 0.0
        %2972 = vmatpush1.msra.mxu0 %v2911
        %2973 = vmatprep.subr.mxu0 0.0
        %2974 = vmatpush1.msra.mxu0 %v2912
        %2975 = vmatprep.subr.mxu0 0.0
        %2976 = vmatpush1.msra.mxu0 %v2913
        %2977 = vmatprep.subr.mxu0 0.0
        %2978 = vmatpush1.msra.mxu0 %v2914
        %2979 = vmatprep.subr.mxu0 0.0
        %2980 = vmatpush1.msra.mxu0 %v2915
        %2981 = vmatprep.subr.mxu0 0.0
        %2982 = vmatpush1.msra.mxu0 %v2916
        %2983 = vmatprep.subr.mxu0 0.0
        %2984 = vmatpush1.msra.mxu0 %v2917
        %2985 = vmatprep.subr.mxu0 0.0
        %2986 = vmatpush1.msra.mxu0 %v2918
        %2987 = vmatprep.subr.mxu0 0.0
        %2988 = vmatpush1.msra.mxu0 %v2919
        %2989 = vmatprep.subr.mxu0 0.0
        %2990 = vmatpush1.msra.mxu0 %v2920
        %2991 = vmatprep.subr.mxu0 0.0
        %2992 = vmatpush1.msra.mxu0 %v2921
        %2993 = vmatprep.subr.mxu0 0.0
        %2994 = vmatpush1.msra.mxu0 %v2922
        %2995 = vmatprep.subr.mxu0 0.0
        %2996 = vmatpush1.msra.mxu0 %v2923
        %2997 = vmatprep.subr.mxu0 0.0
        %2998 = vmatpush1.msra.mxu0 %v2924
        %2999 = vmatprep.subr.mxu0 0.0
        %3000 = vmatpush1.msra.mxu0 %v2925
        %3001 = vmatprep.subr.mxu0 0.0
        %3002 = vmatpush1.msra.mxu0 %v2926
        %3003 = vmatprep.subr.mxu0 0.0
        %3004 = vmatpush1.msra.mxu0 %v2927
        %3005 = vmatprep.subr.mxu0 0.0
        %3006 = vmatpush1.msra.mxu0 %v2928
        %3007 = vmatprep.subr.mxu0 0.0
        %3008 = vmatpush1.msra.mxu0 %v2929
        %3009 = vmatprep.subr.mxu0 0.0
        %3010 = vmatpush1.msra.mxu0 %v2930
        %3011 = vmatprep.subr.mxu0 0.0
        %3012 = vmatpush1.msra.mxu0 %v2931
        %3013 = vmatprep.subr.mxu0 0.0
        %3014 = vmatpush1.msra.mxu0 %v2932
        %3015 = vmatprep.subr.mxu0 0.0
        %3016 = vmatpush1.msra.mxu0 %v2933
        %3017 = vmatprep.subr.mxu0 0.0
        %3018 = vmatpush1.msra.mxu0 %v2934
        %3019 = vmatprep.subr.mxu0 0.0
        %3020 = vmatpush1.msra.mxu0 %v2935
        %3021 = vmatprep.subr.mxu0 0.0
        %3022 = vmatpush1.msra.mxu0 %v2936
        %3023 = vmatprep.subr.mxu0 0.0
        %3024 = vmatpush1.msra.mxu0 %v2937
        %3025 = vmatprep.subr.mxu0 0.0
        %3026 = vmatpush1.msra.mxu0 %v2938
        %3027 = vmatprep.subr.mxu0 0.0
        %3028 = vmatpush1.msra.mxu0 %v2939
        %3029 = vmatprep.subr.mxu0 0.0
        %3030 = vmatpush1.msra.mxu0 %v2940
        %3031 = vmatprep.subr.mxu0 0.0
        %3032 = vmatpush1.msra.mxu0 %v2941
        %3033 = vmatprep.mubr.f32.mxu0 %v2681
        %3034 = vmatmul.mubr.f32.gmra.mrb[0].mxu0 %v2680
        %v3035 = vpop.f32.mrb[0].mxu0
        %v3036 = vadd.f32 0.0, %v3035
        %v3037 = vpop.f32.mrb[0].mxu0
        %3038 = vdwg.mxu0
        %3039 = vmatprep.subr.mxu0 0.0
        %3040 = vmatpush1.msra.mxu0 %v2942
        %3041 = vmatprep.subr.mxu0 0.0
        %3042 = vmatpush1.msra.mxu0 %v2943
        %3043 = vmatprep.subr.mxu0 0.0
        %3044 = vmatpush1.msra.mxu0 %v2944
        %3045 = vmatprep.subr.mxu0 0.0
        %3046 = vmatpush1.msra.mxu0 %v2945
        %3047 = vmatprep.subr.mxu0 0.0
        %3048 = vmatpush1.msra.mxu0 %v2946
        %3049 = vmatprep.subr.mxu0 0.0
        %3050 = vmatpush1.msra.mxu0 %v2947
        %3051 = vmatprep.subr.mxu0 0.0
        %3052 = vmatpush1.msra.mxu0 %v2948
        %3053 = vmatprep.subr.mxu0 0.0
        %3054 = vmatpush1.msra.mxu0 %v2949
        %3055 = vmatprep.subr.mxu0 0.0
        %3056 = vmatpush1.msra.mxu0 %v2950
        %3057 = vmatprep.subr.mxu0 0.0
        %3058 = vmatpush1.msra.mxu0 %v2951
        %3059 = vmatprep.subr.mxu0 0.0
        %3060 = vmatpush1.msra.mxu0 %v2952
        %3061 = vmatprep.subr.mxu0 0.0
        %3062 = vmatpush1.msra.mxu0 %v2953
        %3063 = vmatprep.subr.mxu0 0.0
        %3064 = vmatpush1.msra.mxu0 %v2954
        %3065 = vmatprep.subr.mxu0 0.0
        %3066 = vmatpush1.msra.mxu0 %v2955
        %3067 = vmatprep.subr.mxu0 0.0
        %3068 = vmatpush1.msra.mxu0 %v2956
        %3069 = vmatprep.subr.mxu0 0.0
        %3070 = vmatpush1.msra.mxu0 %v2957
        %3071 = vmatprep.subr.mxu0 0.0
        %3072 = vmatpush1.msra.mxu0 %v2958
        %3073 = vmatprep.subr.mxu0 0.0
        %3074 = vmatpush1.msra.mxu0 %v2959
        %3075 = vmatprep.subr.mxu0 0.0
        %3076 = vmatpush1.msra.mxu0 %v2960
        %3077 = vmatprep.subr.mxu0 0.0
        %3078 = vmatpush1.msra.mxu0 %v2961
        %3079 = vmatprep.subr.mxu0 0.0
        %3080 = vmatpush1.msra.mxu0 %v2962
        %3081 = vmatprep.subr.mxu0 0.0
        %3082 = vmatpush1.msra.mxu0 %v2963
        %3083 = vmatprep.subr.mxu0 0.0
        %3084 = vmatpush1.msra.mxu0 %v2964
        %3085 = vmatprep.subr.mxu0 0.0
        %3086 = vmatpush1.msra.mxu0 %v2965
        %3087 = vmatprep.subr.mxu0 0.0
        %3088 = vmatpush1.msra.mxu0 0.0
        %3089 = vmatprep.subr.mxu0 0.0
        %3090 = vmatpush1.msra.mxu0 0.0
        %3091 = vmatprep.subr.mxu0 0.0
        %3092 = vmatpush1.msra.mxu0 0.0
        %3093 = vmatprep.subr.mxu0 0.0
        %3094 = vmatpush1.msra.mxu0 0.0
        %3095 = vmatprep.subr.mxu0 0.0
        %3096 = vmatpush1.msra.mxu0 0.0
        %3097 = vmatprep.subr.mxu0 0.0
        %3098 = vmatpush1.msra.mxu0 0.0
        %3099 = vmatprep.subr.mxu0 0.0
        %3100 = vmatpush1.msra.mxu0 0.0
        %3101 = vmatprep.subr.mxu0 0.0
        %3102 = vmatpush1.msra.mxu0 0.0
        %3103 = vmatprep.mubr.f32.mxu0 %v2967
        %3104 = vmatmul.mubr.f32.gmra.mrb[0].mxu0 %v2682
        %v3105 = vpop.f32.mrb[0].mxu0
        %v3106 = vadd.f32 %v3036, %v3105
        %v3107 = vpop.f32.mrb[0].mxu0
        %3108 = vdwg.mxu0
        %3110 = vrot.lane.b32.xlu0 %v3106, 27
        %v3111 = vpop.permute.xlu0 %3110
        %vm3113 = vcmask 482520
        %3114 = vst.msk [vmem:[%s297] sm:$0xff] %vm3113, %v3111
        %v3115 = vmul.f32 %v335, 0.03125
        %v3116 = vmax.f32 %v3115, 0.0
        %v3117 = vmin.f32 %v3116, 6.0
        %v3118 = vmul.f32 %v344, 0.03125
        %v3119 = vmax.f32 %v3118, 0.0
        %v3120 = vmin.f32 %v3119, 6.0
        %v3121 = vfloor.f32 %v3117
        %v3122 = vceil.f32 %v3117
        %v3123 = vfloor.f32 %v3120
        %v3124 = vceil.f32 %v3120
        %v3125 = vsub.f32 %v3122, %v3117
        %v3126 = vsub.f32 %v3117, %v3121
        %v3127 = vsub.f32 %v3124, %v3120
        %v3128 = vsub.f32 %v3120, %v3123
        %v3129 = vcvt.f32.s32.to.zero.pseudo %v3121
        %v3130 = vcvt.f32.s32.to.zero.pseudo %v3122
        %v3131 = vcvt.f32.s32.to.zero.pseudo %v3123
        %v3132 = vcvt.f32.s32.to.zero.pseudo %v3124
        %3133 = vset.pattern.permute.xlu0 0
        %3134 = vperm.xlu0 %3133, %v3131
        %v3135 = vpop.permute.xlu0 %3134
        %vm3136 = vcmp.eq.s32.totalorder %v364, %v3135
        %3138 = vset.pattern.permute.xlu0 0
        %3139 = vperm.xlu0 %3138, %v3127
        %v3140 = vpop.permute.xlu0 %3139
        %v3142 = vsel %vm3136, %v3140, 0.0
        %3143 = vset.pattern.permute.xlu0 0
        %3144 = vperm.xlu0 %3143, %v3132
        %v3145 = vpop.permute.xlu0 %3144
        %vm3146 = vcmp.eq.s32.totalorder %v364, %v3145
        %3148 = vset.pattern.permute.xlu0 0
        %3149 = vperm.xlu0 %3148, %v3128
        %v3150 = vpop.permute.xlu0 %3149
        %v3152 = vsel %vm3146, %v3150, 0.0
        %v3153 = vadd.f32 %v3142, %v3152
        %v3154 = vld [vmem:[%s324] sm:$0xff]
        %v3155 = vld [vmem:[%s324 + $0x8] sm:$0xff]
        %v3156 = vld [vmem:[%s324 + $0x10] sm:$0xff]
        %v3157 = vld [vmem:[%s324 + $0x18] sm:$0xff]
        %v3158 = vld [vmem:[%s324 + $0x20] sm:$0xff]
        %v3159 = vld [vmem:[%s324 + $0x28] sm:$0xff]
        %v3160 = vld [vmem:[%s324 + $0x30] sm:$0xff]
        %v3161 = vld [vmem:[%s324 + $0x38] sm:$0xff]
        %v3162 = vld [vmem:[%s324 + $0x40] sm:$0xff]
        %v3163 = vld [vmem:[%s324 + $0x48] sm:$0xff]
        %v3164 = vld [vmem:[%s324 + $0x50] sm:$0xff]
        %v3165 = vld [vmem:[%s324 + $0x58] sm:$0xff]
        %v3166 = vld [vmem:[%s324 + $0x60] sm:$0xff]
        %v3167 = vld [vmem:[%s324 + $0x68] sm:$0xff]
        %v3168 = vld [vmem:[%s324 + $0x70] sm:$0xff]
        %v3169 = vld [vmem:[%s324 + $0x78] sm:$0xff]
        %v3170 = vld [vmem:[%s324 + $0x80] sm:$0xff]
        %v3171 = vld [vmem:[%s324 + $0x88] sm:$0xff]
        %v3172 = vld [vmem:[%s324 + $0x90] sm:$0xff]
        %v3173 = vld [vmem:[%s324 + $0x98] sm:$0xff]
        %v3174 = vld [vmem:[%s324 + $0xa0] sm:$0xff]
        %v3175 = vld [vmem:[%s324 + $0xa8] sm:$0xff]
        %v3176 = vld [vmem:[%s324 + $0xb0] sm:$0xff]
        %v3177 = vld [vmem:[%s324 + $0xb8] sm:$0xff]
        %v3178 = vld [vmem:[%s324 + $0xc0] sm:$0xff]
        %v3179 = vld [vmem:[%s324 + $0xc8] sm:$0xff]
        %v3180 = vld [vmem:[%s324 + $0xd0] sm:$0xff]
        %v3181 = vld [vmem:[%s324 + $0xd8] sm:$0xff]
        %vm3182 = vcmask 56320
        %v3184 = vsel %vm3182, %v3153, 0
        %v3187 = vsel %vm3182, %v3154, 0
        %v3190 = vsel %vm3182, %v3155, 0
        %v3193 = vsel %vm3182, %v3156, 0
        %v3196 = vsel %vm3182, %v3157, 0
        %v3199 = vsel %vm3182, %v3158, 0
        %v3202 = vsel %vm3182, %v3159, 0
        %v3205 = vsel %vm3182, %v3160, 0
        %v3208 = vsel %vm3182, %v3161, 0
        %v3211 = vsel %vm3182, %v3162, 0
        %v3214 = vsel %vm3182, %v3163, 0
        %v3217 = vsel %vm3182, %v3164, 0
        %v3220 = vsel %vm3182, %v3165, 0
        %v3223 = vsel %vm3182, %v3166, 0
        %v3226 = vsel %vm3182, %v3167, 0
        %v3229 = vsel %vm3182, %v3168, 0
        %v3232 = vsel %vm3182, %v3169, 0
        %v3235 = vsel %vm3182, %v3170, 0
        %v3238 = vsel %vm3182, %v3171, 0
        %v3241 = vsel %vm3182, %v3172, 0
        %v3244 = vsel %vm3182, %v3173, 0
        %v3247 = vsel %vm3182, %v3174, 0
        %v3250 = vsel %vm3182, %v3175, 0
        %v3253 = vsel %vm3182, %v3176, 0
        %v3256 = vsel %vm3182, %v3177, 0
        %v3259 = vsel %vm3182, %v3178, 0
        %v3262 = vsel %vm3182, %v3179, 0
        %v3265 = vsel %vm3182, %v3180, 0
        %v3268 = vsel %vm3182, %v3181, 0
        %3270 = vmatprep.subr.mxu0 0.0
        %3271 = vmatpush1.xpose.msra.mxu0 %v3187
        %3272 = vmatprep.subr.mxu0 0.0
        %3273 = vmatpush1.xpose.msra.mxu0 %v3190
        %3274 = vmatprep.subr.mxu0 0.0
        %3275 = vmatpush1.xpose.msra.mxu0 %v3193
        %3276 = vmatprep.subr.mxu0 0.0
        %3277 = vmatpush1.xpose.msra.mxu0 %v3196
        %3278 = vmatprep.subr.mxu0 0.0
        %3279 = vmatpush1.xpose.msra.mxu0 %v3199
        %3280 = vmatprep.subr.mxu0 0.0
        %3281 = vmatpush1.xpose.msra.mxu0 %v3202
        %3282 = vmatprep.subr.mxu0 0.0
        %3283 = vmatpush1.xpose.msra.mxu0 %v3205
        %3284 = vmatprep.subr.mxu0 0.0
        %3285 = vmatpush1.xpose.msra.mxu0 %v3208
        %3286 = vmatprep.subr.mxu0 0.0
        %3287 = vmatpush1.xpose.msra.mxu0 %v3211
        %3288 = vmatprep.subr.mxu0 0.0
        %3289 = vmatpush1.xpose.msra.mxu0 %v3214
        %3290 = vmatprep.subr.mxu0 0.0
        %3291 = vmatpush1.xpose.msra.mxu0 %v3217
        %3292 = vmatprep.subr.mxu0 0.0
        %3293 = vmatpush1.xpose.msra.mxu0 %v3220
        %3294 = vmatprep.subr.mxu0 0.0
        %3295 = vmatpush1.xpose.msra.mxu0 %v3223
        %3296 = vmatprep.subr.mxu0 0.0
        %3297 = vmatpush1.xpose.msra.mxu0 %v3226
        %3298 = vmatprep.subr.mxu0 0.0
        %3299 = vmatpush1.xpose.msra.mxu0 %v3229
        %3300 = vmatprep.subr.mxu0 0.0
        %3301 = vmatpush1.xpose.msra.mxu0 %v3232
        %3302 = vmatprep.subr.mxu0 0.0
        %3303 = vmatpush1.xpose.msra.mxu0 %v3235
        %3304 = vmatprep.subr.mxu0 0.0
        %3305 = vmatpush1.xpose.msra.mxu0 %v3238
        %3306 = vmatprep.subr.mxu0 0.0
        %3307 = vmatpush1.xpose.msra.mxu0 %v3241
        %3308 = vmatprep.subr.mxu0 0.0
        %3309 = vmatpush1.xpose.msra.mxu0 %v3244
        %3310 = vmatprep.subr.mxu0 0.0
        %3311 = vmatpush1.xpose.msra.mxu0 %v3247
        %3312 = vmatprep.subr.mxu0 0.0
        %3313 = vmatpush1.xpose.msra.mxu0 %v3250
        %3314 = vmatprep.subr.mxu0 0.0
        %3315 = vmatpush1.xpose.msra.mxu0 %v3253
        %3316 = vmatprep.subr.mxu0 0.0
        %3317 = vmatpush1.xpose.msra.mxu0 %v3256
        %3318 = vmatprep.subr.mxu0 0.0
        %3319 = vmatpush1.xpose.msra.mxu0 %v3259
        %3320 = vmatprep.subr.mxu0 0.0
        %3321 = vmatpush1.xpose.msra.mxu0 %v3262
        %3322 = vmatprep.subr.mxu0 0.0
        %3323 = vmatpush1.xpose.msra.mxu0 %v3265
        %3324 = vmatprep.subr.mxu0 0.0
        %3325 = vmatpush1.xpose.msra.mxu0 %v3268
        %3326 = vmatprep.subr.mxu0 0.0
        %3327 = vmatpush1.xpose.msra.mxu0 0.0
        %3328 = vmatprep.subr.mxu0 0.0
        %3329 = vmatpush1.xpose.msra.mxu0 0.0
        %3330 = vmatprep.subr.mxu0 0.0
        %3331 = vmatpush1.xpose.msra.mxu0 0.0
        %3332 = vmatprep.subr.mxu0 0.0
        %3333 = vmatpush1.xpose.msra.mxu0 0.0
        %3334 = vmatprep.mubr.f32.mxu0 0.0
        %3335 = vmatmul.mubr.f32.gmra.mrb[0].mxu0 %v3184
        %v3336 = vpop.f32.mrb[0].mxu0
        %v3337 = vadd.f32 0.0, %v3336
        %v3338 = vpop.f32.mrb[0].mxu0
        %v3339 = vadd.f32 0.0, %v3338
        %3340 = vdwg.mxu0
        %v3341 = vrcp.pop 7.0
        %v3342 = vmul.f32 %v759, %v3341
        %v3343 = vmul.f32 %v760, %v3341
        %v3344 = vfloor.f32 %v3342
        %v3345 = vfloor.f32 %v3343
        %v3346 = vmul.f32 %v3344, 7.0
        %v3347 = vmul.f32 %v3345, 7.0
        %v3348 = vsub.f32 %v759, %v3346
        %v3349 = vsub.f32 %v760, %v3347
        %v3350 = vcvt.f32.s32.to.zero.pseudo %v3348
        %v3351 = vcvt.f32.s32.to.zero.pseudo %v3349
        %3352 = vset.pattern.permute.xlu0 1
        %3353 = vperm.xlu0 %3352, %v3129
        %v3354 = vpop.permute.xlu0 %3353
        %vm3355 = vcmp.eq.s32.totalorder %v3350, %v3354
        %vm3356 = vcmp.eq.s32.totalorder %v3351, %v3354
        %3358 = vset.pattern.permute.xlu0 1
        %3359 = vperm.xlu0 %3358, %v3125
        %v3360 = vpop.permute.xlu0 %3359
        %v3362 = vsel %vm3355, %v3360, 0.0
        %v3363 = vsel %vm3356, %v3360, 0.0
        %3364 = vset.pattern.permute.xlu0 1
        %3365 = vperm.xlu0 %3364, %v3130
        %v3366 = vpop.permute.xlu0 %3365
        %vm3367 = vcmp.eq.s32.totalorder %v3350, %v3366
        %vm3368 = vcmp.eq.s32.totalorder %v3351, %v3366
        %3370 = vset.pattern.permute.xlu0 1
        %3371 = vperm.xlu0 %3370, %v3126
        %v3372 = vpop.permute.xlu0 %3371
        %v3374 = vsel %vm3367, %v3372, 0.0
        %v3375 = vsel %vm3368, %v3372, 0.0
        %v3376 = vadd.f32 %v3362, %v3374
        %v3377 = vadd.f32 %v3363, %v3375
        %v3378 = vmul.f32 %v3337, %v3376
        %v3379 = vmul.f32 %v3339, %v3377
        %v3380 = vmul.u32 %v364, 7
        %vm3381 = vcmp.ge.s32.totalorder %v825, %v3380
        %vm3382 = vcmp.ge.s32.totalorder %v826, %v3380
        %vm3383 = vcmp.ge.s32.totalorder %v827, %v3380
        %vm3384 = vcmp.ge.s32.totalorder %v828, %v3380
        %vm3385 = vcmp.ge.s32.totalorder %v829, %v3380
        %vm3386 = vcmp.ge.s32.totalorder %v830, %v3380
        %vm3387 = vcmp.ge.s32.totalorder %v831, %v3380
        %vm3388 = vcmp.ge.s32.totalorder %v832, %v3380
        %vm3389 = vcmp.ge.s32.totalorder %v833, %v3380
        %vm3390 = vcmp.ge.s32.totalorder %v834, %v3380
        %vm3391 = vcmp.ge.s32.totalorder %v835, %v3380
        %vm3392 = vcmp.ge.s32.totalorder %v836, %v3380
        %vm3393 = vcmp.ge.s32.totalorder %v837, %v3380
        %vm3394 = vcmp.ge.s32.totalorder %v838, %v3380
        %vm3395 = vcmp.ge.s32.totalorder %v839, %v3380
        %vm3396 = vcmp.ge.s32.totalorder %v840, %v3380
        %vm3397 = vcmp.ge.s32.totalorder %v841, %v3380
        %vm3398 = vcmp.ge.s32.totalorder %v842, %v3380
        %vm3399 = vcmp.ge.s32.totalorder %v843, %v3380
        %vm3400 = vcmp.ge.s32.totalorder %v844, %v3380
        %vm3401 = vcmp.ge.s32.totalorder %v845, %v3380
        %vm3402 = vcmp.ge.s32.totalorder %v846, %v3380
        %vm3403 = vcmp.ge.s32.totalorder %v847, %v3380
        %vm3404 = vcmp.ge.s32.totalorder %v848, %v3380
        %vm3405 = vcmp.ge.s32.totalorder %v849, %v3380
        %vm3406 = vcmp.ge.s32.totalorder %v850, %v3380
        %vm3407 = vcmp.ge.s32.totalorder %v851, %v3380
        %vm3408 = vcmp.ge.s32.totalorder %v852, %v3380
        %v3409 = vadd.s32 %v3380, 7
        %vm3410 = vcmp.lt.s32.totalorder %v825, %v3409
        %vm3411 = vcmp.lt.s32.totalorder %v826, %v3409
        %vm3412 = vcmp.lt.s32.totalorder %v827, %v3409
        %vm3413 = vcmp.lt.s32.totalorder %v828, %v3409
        %vm3414 = vcmp.lt.s32.totalorder %v829, %v3409
        %vm3415 = vcmp.lt.s32.totalorder %v830, %v3409
        %vm3416 = vcmp.lt.s32.totalorder %v831, %v3409
        %vm3417 = vcmp.lt.s32.totalorder %v832, %v3409
        %vm3418 = vcmp.lt.s32.totalorder %v833, %v3409
        %vm3419 = vcmp.lt.s32.totalorder %v834, %v3409
        %vm3420 = vcmp.lt.s32.totalorder %v835, %v3409
        %vm3421 = vcmp.lt.s32.totalorder %v836, %v3409
        %vm3422 = vcmp.lt.s32.totalorder %v837, %v3409
        %vm3423 = vcmp.lt.s32.totalorder %v838, %v3409
        %vm3424 = vcmp.lt.s32.totalorder %v839, %v3409
        %vm3425 = vcmp.lt.s32.totalorder %v840, %v3409
        %vm3426 = vcmp.lt.s32.totalorder %v841, %v3409
        %vm3427 = vcmp.lt.s32.totalorder %v842, %v3409
        %vm3428 = vcmp.lt.s32.totalorder %v843, %v3409
        %vm3429 = vcmp.lt.s32.totalorder %v844, %v3409
        %vm3430 = vcmp.lt.s32.totalorder %v845, %v3409
        %vm3431 = vcmp.lt.s32.totalorder %v846, %v3409
        %vm3432 = vcmp.lt.s32.totalorder %v847, %v3409
        %vm3433 = vcmp.lt.s32.totalorder %v848, %v3409
        %vm3434 = vcmp.lt.s32.totalorder %v849, %v3409
        %vm3435 = vcmp.lt.s32.totalorder %v850, %v3409
        %vm3436 = vcmp.lt.s32.totalorder %v851, %v3409
        %vm3437 = vcmp.lt.s32.totalorder %v852, %v3409
        %vm3438 = vmand %vm3381, %vm3410
        %vm3439 = vmand %vm3382, %vm3411
        %vm3440 = vmand %vm3383, %vm3412
        %vm3441 = vmand %vm3384, %vm3413
        %vm3442 = vmand %vm3385, %vm3414
        %vm3443 = vmand %vm3386, %vm3415
        %vm3444 = vmand %vm3387, %vm3416
        %vm3445 = vmand %vm3388, %vm3417
        %vm3446 = vmand %vm3389, %vm3418
        %vm3447 = vmand %vm3390, %vm3419
        %vm3448 = vmand %vm3391, %vm3420
        %vm3449 = vmand %vm3392, %vm3421
        %vm3450 = vmand %vm3393, %vm3422
        %vm3451 = vmand %vm3394, %vm3423
        %vm3452 = vmand %vm3395, %vm3424
        %vm3453 = vmand %vm3396, %vm3425
        %vm3454 = vmand %vm3397, %vm3426
        %vm3455 = vmand %vm3398, %vm3427
        %vm3456 = vmand %vm3399, %vm3428
        %vm3457 = vmand %vm3400, %vm3429
        %vm3458 = vmand %vm3401, %vm3430
        %vm3459 = vmand %vm3402, %vm3431
        %vm3460 = vmand %vm3403, %vm3432
        %vm3461 = vmand %vm3404, %vm3433
        %vm3462 = vmand %vm3405, %vm3434
        %vm3463 = vmand %vm3406, %vm3435
        %vm3464 = vmand %vm3407, %vm3436
        %vm3465 = vmand %vm3408, %vm3437
        %v3466 = vsel %vm3438, 1, 0
        %v3467 = vsel %vm3439, 1, 0
        %v3468 = vsel %vm3440, 1, 0
        %v3469 = vsel %vm3441, 1, 0
        %v3470 = vsel %vm3442, 1, 0
        %v3471 = vsel %vm3443, 1, 0
        %v3472 = vsel %vm3444, 1, 0
        %v3473 = vsel %vm3445, 1, 0
        %v3474 = vsel %vm3446, 1, 0
        %v3475 = vsel %vm3447, 1, 0
        %v3476 = vsel %vm3448, 1, 0
        %v3477 = vsel %vm3449, 1, 0
        %v3478 = vsel %vm3450, 1, 0
        %v3479 = vsel %vm3451, 1, 0
        %v3480 = vsel %vm3452, 1, 0
        %v3481 = vsel %vm3453, 1, 0
        %v3482 = vsel %vm3454, 1, 0
        %v3483 = vsel %vm3455, 1, 0
        %v3484 = vsel %vm3456, 1, 0
        %v3485 = vsel %vm3457, 1, 0
        %v3486 = vsel %vm3458, 1, 0
        %v3487 = vsel %vm3459, 1, 0
        %v3488 = vsel %vm3460, 1, 0
        %v3489 = vsel %vm3461, 1, 0
        %v3490 = vsel %vm3462, 1, 0
        %v3491 = vsel %vm3463, 1, 0
        %v3492 = vsel %vm3464, 1, 0
        %v3493 = vsel %vm3465, 1, 0
        %v3494 = vcvt.s32.f32 %v3466
        %v3495 = vcvt.s32.f32 %v3467
        %v3496 = vcvt.s32.f32 %v3468
        %v3497 = vcvt.s32.f32 %v3469
        %v3498 = vcvt.s32.f32 %v3470
        %v3499 = vcvt.s32.f32 %v3471
        %v3500 = vcvt.s32.f32 %v3472
        %v3501 = vcvt.s32.f32 %v3473
        %v3502 = vcvt.s32.f32 %v3474
        %v3503 = vcvt.s32.f32 %v3475
        %v3504 = vcvt.s32.f32 %v3476
        %v3505 = vcvt.s32.f32 %v3477
        %v3506 = vcvt.s32.f32 %v3478
        %v3507 = vcvt.s32.f32 %v3479
        %v3508 = vcvt.s32.f32 %v3480
        %v3509 = vcvt.s32.f32 %v3481
        %v3510 = vcvt.s32.f32 %v3482
        %v3511 = vcvt.s32.f32 %v3483
        %v3512 = vcvt.s32.f32 %v3484
        %v3513 = vcvt.s32.f32 %v3485
        %v3514 = vcvt.s32.f32 %v3486
        %v3515 = vcvt.s32.f32 %v3487
        %v3516 = vcvt.s32.f32 %v3488
        %v3517 = vcvt.s32.f32 %v3489
        %v3518 = vcvt.s32.f32 %v3490
        %v3519 = vcvt.s32.f32 %v3491
        %v3520 = vcvt.s32.f32 %v3492
        %v3521 = vcvt.s32.f32 %v3493
        %vm3522 = vcmask 785408
        %v3524 = vsel %vm3522, %v3379, 0
        %3526 = vmatprep.subr.mxu0 0.0
        %3527 = vmatpush1.msra.mxu0 %v3494
        %3528 = vmatprep.subr.mxu0 0.0
        %3529 = vmatpush1.msra.mxu0 %v3495
        %3530 = vmatprep.subr.mxu0 0.0
        %3531 = vmatpush1.msra.mxu0 %v3496
        %3532 = vmatprep.subr.mxu0 0.0
        %3533 = vmatpush1.msra.mxu0 %v3497
        %3534 = vmatprep.subr.mxu0 0.0
        %3535 = vmatpush1.msra.mxu0 %v3498
        %3536 = vmatprep.subr.mxu0 0.0
        %3537 = vmatpush1.msra.mxu0 %v3499
        %3538 = vmatprep.subr.mxu0 0.0
        %3539 = vmatpush1.msra.mxu0 %v3500
        %3540 = vmatprep.subr.mxu0 0.0
        %3541 = vmatpush1.msra.mxu0 %v3501
        %3542 = vmatprep.subr.mxu0 0.0
        %3543 = vmatpush1.msra.mxu0 %v3502
        %3544 = vmatprep.subr.mxu0 0.0
        %3545 = vmatpush1.msra.mxu0 %v3503
        %3546 = vmatprep.subr.mxu0 0.0
        %3547 = vmatpush1.msra.mxu0 %v3504
        %3548 = vmatprep.subr.mxu0 0.0
        %3549 = vmatpush1.msra.mxu0 %v3505
        %3550 = vmatprep.subr.mxu0 0.0
        %3551 = vmatpush1.msra.mxu0 %v3506
        %3552 = vmatprep.subr.mxu0 0.0
        %3553 = vmatpush1.msra.mxu0 %v3507
        %3554 = vmatprep.subr.mxu0 0.0
        %3555 = vmatpush1.msra.mxu0 %v3508
        %3556 = vmatprep.subr.mxu0 0.0
        %3557 = vmatpush1.msra.mxu0 %v3509
        %3558 = vmatprep.subr.mxu0 0.0
        %3559 = vmatpush1.msra.mxu0 %v3510
        %3560 = vmatprep.subr.mxu0 0.0
        %3561 = vmatpush1.msra.mxu0 %v3511
        %3562 = vmatprep.subr.mxu0 0.0
        %3563 = vmatpush1.msra.mxu0 %v3512
        %3564 = vmatprep.subr.mxu0 0.0
        %3565 = vmatpush1.msra.mxu0 %v3513
        %3566 = vmatprep.subr.mxu0 0.0
        %3567 = vmatpush1.msra.mxu0 %v3514
        %3568 = vmatprep.subr.mxu0 0.0
        %3569 = vmatpush1.msra.mxu0 %v3515
        %3570 = vmatprep.subr.mxu0 0.0
        %3571 = vmatpush1.msra.mxu0 %v3516
        %3572 = vmatprep.subr.mxu0 0.0
        %3573 = vmatpush1.msra.mxu0 %v3517
        %3574 = vmatprep.subr.mxu0 0.0
        %3575 = vmatpush1.msra.mxu0 %v3518
        %3576 = vmatprep.subr.mxu0 0.0
        %3577 = vmatpush1.msra.mxu0 %v3519
        %3578 = vmatprep.subr.mxu0 0.0
        %3579 = vmatpush1.msra.mxu0 %v3520
        %3580 = vmatprep.subr.mxu0 0.0
        %3581 = vmatpush1.msra.mxu0 %v3521
        %3582 = vmatprep.subr.mxu0 0.0
        %3583 = vmatpush1.msra.mxu0 0.0
        %3584 = vmatprep.subr.mxu0 0.0
        %3585 = vmatpush1.msra.mxu0 0.0
        %3586 = vmatprep.subr.mxu0 0.0
        %3587 = vmatpush1.msra.mxu0 0.0
        %3588 = vmatprep.subr.mxu0 0.0
        %3589 = vmatpush1.msra.mxu0 0.0
        %3590 = vmatprep.mubr.f32.mxu0 %v3524
        %3591 = vmatmul.mubr.f32.gmra.mrb[0].mxu0 %v3378
        %v3592 = vpop.f32.mrb[0].mxu0
        %v3593 = vadd.f32 0.0, %v3592
        %v3594 = vpop.f32.mrb[0].mxu0
        %3595 = vdwg.mxu0
        %3597 = vrot.lane.b32.xlu0 %v3593, 59
        %v3598 = vpop.permute.xlu0 %3597
        %vm3600 = vcmask 744920
        %3601 = vst.msk [vmem:[%s297] sm:$0xff] %vm3600, %v3598
        %s3602 = sand.u32 %s173, 1
        %s3603 = scalar_lea.sflag [#allocation3], %s3602
        %s3604 = sand.u32 %s173, 1
        %s3605 = smul.addr %s3604, 8
        %s3606 = scalar_lea.vmem [#allocation2], %s3605
        // Predicated region
        $region41: #{tpu_custom_call.1} parent=39 // pred_check
          %p3607 = pneg %p183
        $region42: #{tpu_custom_call.1} parent=39 // pred_check_branch
          %3609 = sbr.rel (%p3607) target = $region44
        $region43: #{tpu_custom_call.1} parent=39 // pred_region
          %s3611 = ssub.s32 128, 128
          %3612 = vsyncadd %s3603, %s3611
          %s3613 = sadd.s32 %s24, %s23
          %s3614 = smul.addr %s3613, 128
          %s3615 = scalar_lea.hbm %s5, %s3614
          %s3617 = sshll.u32 %s3606, 4
          %s3618 = int_to_ptr.vmem [resolvable:$true] %s3617
          %3620 = dma.vmem_to_hbm [thread:$0]  %s3618, 128, %s3615, %s3603
        $region44: #{tpu_custom_call.1} parent=39 // pred_fallthru
          _
      $region40: #{tpu_custom_call.1} parent=5 // pred_fallthru
        _
      %p3621 = scmp.le.s32.totalorder 2, %s14
      // Predicated region
      $region45: #{tpu_custom_call.1} parent=5 // pred_check
        %p3622 = pneg %p3621
      $region46: #{tpu_custom_call.1} parent=5 // pred_check_branch
        %3624 = sbr.rel (%p3622) target = $region48
      $region47: #{tpu_custom_call.1} parent=5 // pred_region
        %s3625 = ssub.s32 %s14, 2
        // Predicated region
        $region49: #{tpu_custom_call.1} parent=47 // pred_check
          %p3626 = pneg %p189
        $region50: #{tpu_custom_call.1} parent=47 // pred_check_branch
          %3628 = sbr.rel (%p3626) target = $region52
        $region51: #{tpu_custom_call.1} parent=47 // pred_region
          %s3629 = sand.u32 %s174, 1
          %s3630 = scalar_lea.sflag [#allocation3], %s3629
          %s3631 = sand.u32 %s174, 1
          %s3632 = smul.addr %s3631, 8
          %s3633 = scalar_lea.vmem [#allocation2], %s3632
          %3634 = dma.done %s3630, 128
        $region52: #{tpu_custom_call.1} parent=47 // pred_fallthru
          _
      $region48: #{tpu_custom_call.1} parent=5 // pred_fallthru
        _
    $region6: #{tpu_custom_call.1} parent=1 // loop_footer
      %s18 = sadd.s32 1, %s14
    $region7: #{tpu_custom_call.1} parent=1 // loop_footer_branch
      %13 = sbr.rel target = $region3
    $region8: #{tpu_custom_call.1} parent=1 // loop_exit
      _
    %3635 = vsyncpa [#allocation3], 1
    %s3636 = scalar_lea.sflag [#allocation3], 1
    %3637 = vsyncpa %s3636, 1

</llo_original>
